<compile_context>
chip_gen: v7x
topology: tpu7x:2x2x1
jax: 0.10.0
libtpu: 0.0.40
codegen_flags: <defaults>
</compile_context>

<pallas_src>
import jax
import jax.numpy as jnp
from jax.experimental import pallas as pl
from jax.experimental.pallas import tpu as pltpu


def _round_up(x, m):
    return ((x + m - 1) // m) * m


def _pick_tile_b(b_pad):
    """Pick the batch-tile (lane) width.

    Prefer wide tiles (halves per-grid-step overhead; keeps stores lane-dense)
    but keep the grid length >= 2 so the single "parallel" grid axis can shard
    across the 2 TensorCores per chip on v7x.
    """
    for tb in (512, 256):
        if b_pad % tb == 0 and b_pad // tb >= 2:
            return tb
    return 128


def _sgns_kernel(ids_ref, emb_t_ref, o_ref):
    """One batch tile.

    ids_ref   : (C+1, TB) int32   row 0 = target ids, rows 1..C = context ids
    emb_t_ref : (D, Vp)   bf16    transposed, padded embedding table (resident)
    o_ref     : (C, TB)   float32 dots, transposed (batch on lanes)
    """
    emb_t = emb_t_ref[...]                                    # (D, Vp)
    vp = emb_t.shape[1]
    cp1, tb = ids_ref.shape
    c_n = cp1 - 1
    n_fused = cp1 * tb

    ids = ids_ref[...]                                        # (C+1, TB)

    # Lane-concatenate the C+1 id rows into a single (1, (C+1)*TB) row.
    # Each piece is TB (multiple of 128) lanes wide, so this is a cheap
    # lane-aligned concat, not a sublane->lane relayout.
    ids_row = jnp.concatenate([ids[c:c + 1, :] for c in range(cp1)], axis=1)

    # Fused one-hot RHS for ALL gathers (target + C contexts) at once.
    # Padded vocab rows are zero and never selected; selection is exact in
    # any dtype, so the bf16 table only affects storage rounding.
    v_iota = jax.lax.broadcasted_iota(jnp.int32, (vp, n_fused), 0)
    onehot = (v_iota == ids_row).astype(emb_t.dtype)          # (Vp, (C+1)*TB)

    # Single wide-N MXU matmul gathers all rows at once; accumulate in f32.
    rows = jnp.dot(emb_t, onehot, preferred_element_type=jnp.float32)  # (D, N)

    # dots[c] = sum_D target_rows * context_rows[c]: sublane reduce only,
    # stored row-by-row directly into the output block (no concat).
    t_rows = rows[:, 0:tb]                                    # (D, TB)
    for c in range(c_n):                                      # C is small
        c_rows = rows[:, (c + 1) * tb:(c + 2) * tb]           # (D, TB)
        o_ref[c:c + 1, :] = jnp.sum(t_rows * c_rows, axis=0, keepdims=True)
    # TODO(synk): benchmark the alternative restructure (gather targets only,
    # one scores-vs-vocab matmul, per-context masked sublane reduce) which
    # cuts the V-scaling MXU FLOPs ~3.5x for C=6 at the cost of C VPU reduces.


def prepare_embedding_table(embedding, *, table_dtype=jnp.bfloat16):
    """Pad the vocab to a multiple of 128, transpose to (D, Vp), cast to bf16.

    Pure function of the weights: prepare ONCE and reuse across forward calls
    (re-padding/transposing the full table every call is an extra HBM
    read+write of the whole table outside the kernel).
    """
    v_rows, d = embedding.shape
    vp = _round_up(v_rows, 128)
    return jnp.pad(embedding, ((0, vp - v_rows), (0, 0))).T.astype(table_dtype)


def skipgram_dots(emb_t, target, context, *, tile_b=None):
    """dots[b, c] = <table[target[b]], table[context[b, c]]>.

    emb_t: prepared (D, Vp) table from prepare_embedding_table.
    """
    d, vp = emb_t.shape
    (b,) = target.shape
    c_n = context.shape[1]

    b_pad = _round_up(b, 128)
    if tile_b is None:
        tile_b = _pick_tile_b(b_pad)
    b_pad = _round_up(b_pad, tile_b)

    # ids laid out batch-on-lanes: row 0 = target, rows 1..C = contexts.
    ids = jnp.concatenate(
        [target.reshape(1, b).astype(jnp.int32),
         context.T.astype(jnp.int32)], axis=0)                 # (C+1, B)
    ids = jnp.pad(ids, ((0, 0), (0, b_pad - b)))               # (C+1, Bp)

    grid = (b_pad // tile_b,)

    # Explicit scoped-VMEM budget: single-buffered resident table + fused
    # one-hot intermediates + double-buffered id/output blocks, with headroom.
    n_fused = (c_n + 1) * tile_b
    itemsize = emb_t.dtype.itemsize
    vmem_bytes = (
        d * vp * itemsize                              # resident table block
        + 2 * (c_n + 1) * tile_b * 4                   # id blocks (x2 buffers)
        + 2 * c_n * tile_b * 4                         # output blocks (x2)
        + vp * n_fused * (4 + 4 + itemsize)            # iota + compare + one-hot
        + 3 * d * n_fused * 4                          # gathered rows / products
    )
    vmem_bytes = int(1.5 * vmem_bytes) + (2 << 20)
    vmem_bytes = min(max(vmem_bytes, 32 << 20), 64 << 20)     # v7x physical = 64 MiB

    cost = pl.CostEstimate(
        flops=2 * d * vp * (c_n + 1) * b_pad + 2 * d * c_n * b_pad,
        transcendentals=0,
        bytes_accessed=(d * vp * itemsize + ids.size * 4 + c_n * b_pad * 4),
    )

    dots_t = pl.pallas_call(
        _sgns_kernel,
        out_shape=jax.ShapeDtypeStruct((c_n, b_pad), jnp.float32),
        grid_spec=pltpu.PrefetchScalarGridSpec(
            num_scalar_prefetch=0,
            grid=grid,
            in_specs=[
                # ids: (C+1, TB) block per batch tile.
                pl.BlockSpec((c_n + 1, tile_b), lambda i: (0, i)),
                # Transposed table: constant index_map (never re-fetched) and
                # single-buffered so it doesn't double the largest VMEM user.
                pl.BlockSpec((d, vp), lambda i: (0, 0),
                             pipeline_mode=pl.Buffered(1)),
            ],
            out_specs=pl.BlockSpec((c_n, tile_b), lambda i: (0, i)),
        ),
        compiler_params=pltpu.CompilerParams(
            dimension_semantics=("parallel",),
            vmem_limit_bytes=vmem_bytes,
        ),
        cost_estimate=cost,
    )(ids, emb_t)

    return dots_t.T[:b]                                        # (B, C)


def skipgram_forward(embedding, target, context):
    """Forward pass of SkipGramNegativeSampling (returns the dots, like the module).

    For repeated calls, prepare the table once with prepare_embedding_table
    and call skipgram_dots directly (the table prep is a pure function of the
    weights and should not be re-done every step).
    """
    return skipgram_dots(prepare_embedding_table(embedding), target, context)


if __name__ == "__main__":
    # Small, deterministic setup consistent with the module: vocab V
    # (embedding table has V+1 rows), embedding_dim, a batch of target ids,
    # and C = 1 positive + 5 negative context ids per target.
    V = 1000
    embedding_dim = 32
    B = 256
    C = 6

    key = jax.random.PRNGKey(0)
    k_emb, k_tgt, k_ctx = jax.random.split(key, 3)

    # nn.Embedding(V+1, D) weight.  Values are snapped to bf16-representable
    # f32 so the f32 reference matches the bf16-stored table exactly.
    embedding = jax.random.normal(
        k_emb, (V + 1, embedding_dim), dtype=jnp.float32
    ).astype(jnp.bfloat16).astype(jnp.float32)

    target = jax.random.randint(k_tgt, (B,), 0, V + 1, dtype=jnp.int32)
    context = jax.random.randint(k_ctx, (B, C), 0, V + 1, dtype=jnp.int32)

    # Prepare (pad + transpose + bf16-cast) the table ONCE; reuse across calls.
    emb_t = prepare_embedding_table(embedding)

    dots = skipgram_dots(emb_t, target, context)
    dots = jax.block_until_ready(dots)

    # Plain-JAX reference (embedding lookup + bmm).
    t_ref = jnp.take(embedding, target, axis=0)
    c_ref = jnp.take(embedding, context.reshape(-1), axis=0).reshape(B, C, embedding_dim)
    expected = jnp.einsum("bd,bcd->bc", t_ref, c_ref)

    assert dots.shape == (B, C)
    max_err = float(jnp.max(jnp.abs(dots - expected)))
    assert jnp.allclose(dots, expected, atol=1e-3, rtol=1e-3), \
        f"max abs err {max_err}"
    print("KERNEL_OK")
</pallas_src>

<mosaic_0001>
module attributes {stable_mosaic.version = 11 : i64} {
  func.func @_sgns_kernel(%arg0: i32, %arg1: memref<7x128xi32, #tpu.memory_space<vmem>>, %arg2: memref<32x1024xbf16, #tpu.memory_space<vmem>>, %arg3: memref<6x128xf32, #tpu.memory_space<vmem>>) attributes {dimension_semantics = [#tpu.dimension_semantics<parallel>], iteration_bounds = array<i64: 2>, scalar_prefetch = 0 : i64, scratch_operands = 0 : i64, tpu.core_type = #tpu.core_type<tc>, window_params = [{transform_indices = @transform_0, window_bounds = array<i64: 7, 128>}, {pipeline_mode = #tpu.pipeline_mode<synchronous>, transform_indices = @transform_1, window_bounds = array<i64: 32, 1024>}, {transform_indices = @transform_2, window_bounds = array<i64: 6, 128>}]} {
    %c0 = arith.constant 0 : index
    %c0_0 = arith.constant 0 : index
    %0 = vector.load %arg2[%c0, %c0_0] : memref<32x1024xbf16, #tpu.memory_space<vmem>>, vector<32x1024xbf16>
    %c0_1 = arith.constant 0 : index
    %c0_2 = arith.constant 0 : index
    %1 = vector.load %arg1[%c0_1, %c0_2] : memref<7x128xi32, #tpu.memory_space<vmem>>, vector<7x128xi32>
    %2 = vector.extract_strided_slice %1 {offsets = [0, 0], sizes = [1, 128], strides = [1, 1]} : vector<7x128xi32> to vector<1x128xi32>
    %3 = vector.extract_strided_slice %1 {offsets = [1, 0], sizes = [1, 128], strides = [1, 1]} : vector<7x128xi32> to vector<1x128xi32>
    %4 = vector.extract_strided_slice %1 {offsets = [2, 0], sizes = [1, 128], strides = [1, 1]} : vector<7x128xi32> to vector<1x128xi32>
    %5 = vector.extract_strided_slice %1 {offsets = [3, 0], sizes = [1, 128], strides = [1, 1]} : vector<7x128xi32> to vector<1x128xi32>
    %6 = vector.extract_strided_slice %1 {offsets = [4, 0], sizes = [1, 128], strides = [1, 1]} : vector<7x128xi32> to vector<1x128xi32>
    %7 = vector.extract_strided_slice %1 {offsets = [5, 0], sizes = [1, 128], strides = [1, 1]} : vector<7x128xi32> to vector<1x128xi32>
    %8 = vector.extract_strided_slice %1 {offsets = [6, 0], sizes = [1, 128], strides = [1, 1]} : vector<7x128xi32> to vector<1x128xi32>
    %9 = tpu.concatenate %2, %3, %4, %5, %6, %7, %8 in 1 : vector<1x128xi32>, vector<1x128xi32>, vector<1x128xi32>, vector<1x128xi32>, vector<1x128xi32>, vector<1x128xi32>, vector<1x128xi32> -> vector<1x896xi32>
    %10 = tpu.iota {dimensions = array<i32: 0>} : vector<1024x896xi32>
    %11 = vector.broadcast %9 : vector<1x896xi32> to vector<1024x896xi32>
    %12 = arith.cmpi eq, %10, %11 : vector<1024x896xi32>
    %13 = arith.extui %12 : vector<1024x896xi1> to vector<1024x896xi32>
    %14 = arith.sitofp %13 : vector<1024x896xi32> to vector<1024x896xf32>
    %15 = arith.truncf %14 : vector<1024x896xf32> to vector<1024x896xbf16>
    %cst = arith.constant dense<0.000000e+00> : vector<32x896xf32>
    %16 = tpu.matmul %0, %15, %cst {dimension_numbers = #tpu.dot_dimension_numbers<[1], [0], [0], [1], [0, 0, 1, 1], [], []>} : vector<32x1024xbf16>, vector<1024x896xbf16>, vector<32x896xf32> -> vector<32x896xf32>
    %17 = vector.extract_strided_slice %16 {offsets = [0, 0], sizes = [32, 128], strides = [1, 1]} : vector<32x896xf32> to vector<32x128xf32>
    %18 = vector.extract_strided_slice %16 {offsets = [0, 128], sizes = [32, 128], strides = [1, 1]} : vector<32x896xf32> to vector<32x128xf32>
    %19 = arith.mulf %17, %18 : vector<32x128xf32>
    %cst_3 = arith.constant dense<0.000000e+00> : vector<128xf32>
    %20 = vector.multi_reduction <add>, %19, %cst_3 [0] : vector<32x128xf32> to vector<128xf32>
    %21 = vector.shape_cast %20 : vector<128xf32> to vector<1x128xf32>
    %c0_4 = arith.constant 0 : index
    %c0_5 = arith.constant 0 : index
    %22 = vector.load %arg3[%c0_4, %c0_5] : memref<6x128xf32, #tpu.memory_space<vmem>>, vector<1x128xf32>
    tpu.vector_store %arg3[%c0_4, %c0_5], %21 {strides = array<i32>} : memref<6x128xf32, #tpu.memory_space<vmem>>, vector<1x128xf32>,
    %23 = vector.extract_strided_slice %16 {offsets = [0, 256], sizes = [32, 128], strides = [1, 1]} : vector<32x896xf32> to vector<32x128xf32>
    %24 = arith.mulf %17, %23 : vector<32x128xf32>
    %cst_6 = arith.constant dense<0.000000e+00> : vector<128xf32>
    %25 = vector.multi_reduction <add>, %24, %cst_6 [0] : vector<32x128xf32> to vector<128xf32>
    %26 = vector.shape_cast %25 : vector<128xf32> to vector<1x128xf32>
    %c1 = arith.constant 1 : index
    %c0_7 = arith.constant 0 : index
    %27 = vector.load %arg3[%c1, %c0_7] : memref<6x128xf32, #tpu.memory_space<vmem>>, vector<1x128xf32>
    tpu.vector_store %arg3[%c1, %c0_7], %26 {strides = array<i32>} : memref<6x128xf32, #tpu.memory_space<vmem>>, vector<1x128xf32>,
    %28 = vector.extract_strided_slice %16 {offsets = [0, 384], sizes = [32, 128], strides = [1, 1]} : vector<32x896xf32> to vector<32x128xf32>
    %29 = arith.mulf %17, %28 : vector<32x128xf32>
    %cst_8 = arith.constant dense<0.000000e+00> : vector<128xf32>
    %30 = vector.multi_reduction <add>, %29, %cst_8 [0] : vector<32x128xf32> to vector<128xf32>
    %31 = vector.shape_cast %30 : vector<128xf32> to vector<1x128xf32>
    %c2 = arith.constant 2 : index
    %c0_9 = arith.constant 0 : index
    %32 = vector.load %arg3[%c2, %c0_9] : memref<6x128xf32, #tpu.memory_space<vmem>>, vector<1x128xf32>
    tpu.vector_store %arg3[%c2, %c0_9], %31 {strides = array<i32>} : memref<6x128xf32, #tpu.memory_space<vmem>>, vector<1x128xf32>,
    %33 = vector.extract_strided_slice %16 {offsets = [0, 512], sizes = [32, 128], strides = [1, 1]} : vector<32x896xf32> to vector<32x128xf32>
    %34 = arith.mulf %17, %33 : vector<32x128xf32>
    %cst_10 = arith.constant dense<0.000000e+00> : vector<128xf32>
    %35 = vector.multi_reduction <add>, %34, %cst_10 [0] : vector<32x128xf32> to vector<128xf32>
    %36 = vector.shape_cast %35 : vector<128xf32> to vector<1x128xf32>
    %c3 = arith.constant 3 : index
    %c0_11 = arith.constant 0 : index
    %37 = vector.load %arg3[%c3, %c0_11] : memref<6x128xf32, #tpu.memory_space<vmem>>, vector<1x128xf32>
    tpu.vector_store %arg3[%c3, %c0_11], %36 {strides = array<i32>} : memref<6x128xf32, #tpu.memory_space<vmem>>, vector<1x128xf32>,
    %38 = vector.extract_strided_slice %16 {offsets = [0, 640], sizes = [32, 128], strides = [1, 1]} : vector<32x896xf32> to vector<32x128xf32>
    %39 = arith.mulf %17, %38 : vector<32x128xf32>
    %cst_12 = arith.constant dense<0.000000e+00> : vector<128xf32>
    %40 = vector.multi_reduction <add>, %39, %cst_12 [0] : vector<32x128xf32> to vector<128xf32>
    %41 = vector.shape_cast %40 : vector<128xf32> to vector<1x128xf32>
    %c4 = arith.constant 4 : index
    %c0_13 = arith.constant 0 : index
    %42 = vector.load %arg3[%c4, %c0_13] : memref<6x128xf32, #tpu.memory_space<vmem>>, vector<1x128xf32>
    tpu.vector_store %arg3[%c4, %c0_13], %41 {strides = array<i32>} : memref<6x128xf32, #tpu.memory_space<vmem>>, vector<1x128xf32>,
    %43 = vector.extract_strided_slice %16 {offsets = [0, 768], sizes = [32, 128], strides = [1, 1]} : vector<32x896xf32> to vector<32x128xf32>
    %44 = arith.mulf %17, %43 : vector<32x128xf32>
    %cst_14 = arith.constant dense<0.000000e+00> : vector<128xf32>
    %45 = vector.multi_reduction <add>, %44, %cst_14 [0] : vector<32x128xf32> to vector<128xf32>
    %46 = vector.shape_cast %45 : vector<128xf32> to vector<1x128xf32>
    %c5 = arith.constant 5 : index
    %c0_15 = arith.constant 0 : index
    %47 = vector.load %arg3[%c5, %c0_15] : memref<6x128xf32, #tpu.memory_space<vmem>>, vector<1x128xf32>
    tpu.vector_store %arg3[%c5, %c0_15], %46 {strides = array<i32>} : memref<6x128xf32, #tpu.memory_space<vmem>>, vector<1x128xf32>,
    return
  }
  func.func @transform_0(%arg0: i32) -> (i32, i32) {
    %c0_i32 = arith.constant 0 : i32
    %c0_i32_0 = arith.constant 0 : i32
    return %c0_i32, %arg0 : i32, i32
  }
  func.func @transform_1(%arg0: i32) -> (i32, i32) {
    %c0_i32 = arith.constant 0 : i32
    %c0_i32_0 = arith.constant 0 : i32
    %c0_i32_1 = arith.constant 0 : i32
    return %c0_i32, %c0_i32_0 : i32, i32
  }
  func.func @transform_2(%arg0: i32) -> (i32, i32) {
    %c0_i32 = arith.constant 0 : i32
    %c0_i32_0 = arith.constant 0 : i32
    return %c0_i32, %arg0 : i32, i32
  }
}

</mosaic_0001>

<llo_original>
// kernel: tpu_custom_call.1
$region0: #{tpu_custom_call.1}
  #allocation0 [shape = 'u32[]', space=smem, size = 0x4, offset = 0x4, fixed_abs, tag = 'smem constant byte address 0x4 - core index']
  #allocation1 [shape = 'u32[144,128]{1,0:T(1,128)}', space=vmem, size = 0x12000, scoped, tag = 'internal scratch']
  %s0 = inlined_call_operand.hbm [shape: s32[7,256], index: 0, kind: input, shape index: {}]
  %s1 = inlined_call_operand.hbm [shape: bf16[32,1024], index: 1, kind: input, shape index: {}]
  %s2 = inlined_call_operand.hbm [shape: f32[6,256], index: 2, kind: output, shape index: {}]
  %s3 = sld [smem:[#allocation0]]
  $region49: #{tpu_custom_call.1} parent=0
    _
  %s5 = ssub.s32 1, %s3
  %s6 = scalar_select 0, %s5, %s3
  $region1: #{tpu_custom_call.1} parent=0
    #allocation2 [shape = 'u8[8192]{0}', space=vmem, size = 0x2000, scoped, tag = 'input window, operand 0']
    #allocation3 [shape = 's32[2]{0}', space=sflag, size = 0x8, scoped, tag = 'scoped memory for tpu_custom_call.1']
    #allocation4 [shape = 's32[2]{0}', space=sflag, size = 0x8, scoped, tag = 'scoped memory for tpu_custom_call.1']
    #allocation5 [shape = 'u8[65536]{0}', space=vmem, size = 0x10000, scoped, tag = 'input window, operand 1, single buffered']
    #allocation6 [shape = 's32[1]{0}', space=sflag, size = 0x4, scoped, tag = 'scoped memory for tpu_custom_call.1']
    #allocation7 [shape = 'u8[8192]{0}', space=vmem, size = 0x2000, scoped, tag = 'output window, operand 0']
    %7 = vsyncpa [#allocation3], 0
    %s8 = scalar_lea.sflag [#allocation3], 1
    %9 = vsyncpa %s8, 0
    %10 = vsyncpa [#allocation6], 0
    %11 = vsyncpa [#allocation4], 0
    %s12 = scalar_lea.sflag [#allocation4], 1
    %13 = vsyncpa %s12, 0
    loop: start=0, step=1, limit=4
    $region2: #{tpu_custom_call.1} parent=1 // loop_pre_header
      _
    $region3: #{tpu_custom_call.1} parent=1 // loop_header
      %s15 = sphi 0, %s19
      %p16 = scmp.ge.s32.totalorder %s15, 4
      %s25 = sphi 0, %s27
      %s28 = sphi 0, %s25
      %s29 = sphi 0, %s28
      %s45 = sphi 0, %s29
      %s49 = sphi 0, %s49
      %s51 = sphi 0, %s49
      %s52 = sphi 0, %s51
      %s66 = sphi 0, %s52
      %s72 = sphi 0, %s74
      %s75 = sphi 0, %s72
      %s76 = sphi 0, %s75
      %s92 = sphi 0, %s76
    $region4: #{tpu_custom_call.1} parent=1 // loop_header_branch
      %18 = sbr.rel (%p16) target = $region8
    $region5: #{tpu_custom_call.1} parent=1 // loop_body
      %s20 = ssub.s32 %s15, 1
      %s21 = ssub.s32 %s15, 2
      %s22 = sadd.s32 %s15, 1
      %s23 = ssub.s32 %s15, %s22
      %p24 = scmp.eq.s32.totalorder %s23, 0
      %s26 = sadd.s32 %s25, 1
      %s27 = scalar_select %p24, %s25, %s26
      %p30 = pneg %p24
      %p31 = scmp.eq.s32.totalorder %s15, 1
      %p32 = por %p30, %p31
      %p33 = scmp.ne.s32.totalorder %s25, %s28
      %p34 = scmp.eq.s32.totalorder %s15, 0
      %p35 = por %p33, %p34
      %p36 = scmp.ne.s32.totalorder %s25, %s28
      %p37 = scmp.eq.s32.totalorder %s20, 1
      %p38 = por %p36, %p37
      %p39 = scmp.ne.s32.totalorder %s28, %s29
      %p40 = scmp.eq.s32.totalorder %s20, 0
      %p41 = por %p39, %p40
      %p42 = scmp.ne.s32.totalorder %s28, %s29
      %p43 = scmp.eq.s32.totalorder %s21, 1
      %p44 = por %p42, %p43
      %p46 = scmp.ne.s32.totalorder %s29, %s45
      %p47 = scmp.eq.s32.totalorder %s21, 0
      %p48 = por %p46, %p47
      %s50 = sadd.s32 %s49, 1
      %p53 = scmp.eq.s32.totalorder %s15, 1
      %p54 = scmp.ne.s32.totalorder %s49, %s51
      %p55 = scmp.eq.s32.totalorder %s15, 0
      %p56 = por %p54, %p55
      %p57 = scmp.ne.s32.totalorder %s49, %s51
      %p58 = scmp.eq.s32.totalorder %s20, 1
      %p59 = por %p57, %p58
      %p60 = scmp.ne.s32.totalorder %s51, %s52
      %p61 = scmp.eq.s32.totalorder %s20, 0
      %p62 = por %p60, %p61
      %p63 = scmp.ne.s32.totalorder %s51, %s52
      %p64 = scmp.eq.s32.totalorder %s21, 1
      %p65 = por %p63, %p64
      %p67 = scmp.ne.s32.totalorder %s52, %s66
      %p68 = scmp.eq.s32.totalorder %s21, 0
      %p69 = por %p67, %p68
      %s70 = ssub.s32 %s15, %s22
      %p71 = scmp.eq.s32.totalorder %s70, 0
      %s73 = sadd.s32 %s72, 1
      %s74 = scalar_select %p71, %s72, %s73
      %p77 = pneg %p71
      %p78 = scmp.eq.s32.totalorder %s15, 1
      %p79 = por %p77, %p78
      %p80 = scmp.ne.s32.totalorder %s72, %s75
      %p81 = scmp.eq.s32.totalorder %s15, 0
      %p82 = por %p80, %p81
      %p83 = scmp.ne.s32.totalorder %s72, %s75
      %p84 = scmp.eq.s32.totalorder %s20, 1
      %p85 = por %p83, %p84
      %p86 = scmp.ne.s32.totalorder %s75, %s76
      %p87 = scmp.eq.s32.totalorder %s20, 0
      %p88 = por %p86, %p87
      %p89 = scmp.ne.s32.totalorder %s75, %s76
      %p90 = scmp.eq.s32.totalorder %s21, 1
      %p91 = por %p89, %p90
      %p93 = scmp.ne.s32.totalorder %s76, %s92
      %p94 = scmp.eq.s32.totalorder %s21, 0
      %p95 = por %p93, %p94
      %p96 = scmp.le.s32.totalorder 1, %s15
      %p97 = scmp.lt.s32.totalorder %s15, 3
      %p98 = pnand %p96, %p97
      %p99 = pneg %p98
      // Predicated region
      $region9: #{tpu_custom_call.1} parent=5 // pred_check
        _
      $region10: #{tpu_custom_call.1} parent=5 // pred_check_branch
        %101 = sbr.rel (%p98) target = $region12
      $region11: #{tpu_custom_call.1} parent=5 // pred_region
        %s102 = ssub.s32 %s15, 1
        // Predicated region
        $region13: #{tpu_custom_call.1} parent=11 // pred_check
          %p103 = pneg %p62
        $region14: #{tpu_custom_call.1} parent=11 // pred_check_branch
          %105 = sbr.rel (%p103) target = $region16
        $region15: #{tpu_custom_call.1} parent=11 // pred_region
          %s107 = ssub.s32 2048, 2048
          %108 = vsyncadd [#allocation6], %s107
          %s109 = sshll.u32 [#allocation5], 4
          %s110 = int_to_ptr.vmem [resolvable:$true] %s109
          %115 = dma.hbm_to_vmem [thread:$0]  %s1, 2048, %s110, [#allocation6], 512, 512, 32
        $region16: #{tpu_custom_call.1} parent=11 // pred_fallthru
          _
      $region12: #{tpu_custom_call.1} parent=5 // pred_fallthru
        _
      %p116 = scmp.lt.s32.totalorder %s15, 2
      // Predicated region
      $region17: #{tpu_custom_call.1} parent=5 // pred_check
        %p117 = pneg %p116
      $region18: #{tpu_custom_call.1} parent=5 // pred_check_branch
        %119 = sbr.rel (%p117) target = $region20
      $region19: #{tpu_custom_call.1} parent=5 // pred_region
        // Predicated region
        $region21: #{tpu_custom_call.1} parent=19 // pred_check
          %p120 = pneg %p35
        $region22: #{tpu_custom_call.1} parent=19 // pred_check_branch
          %122 = sbr.rel (%p120) target = $region24
        $region23: #{tpu_custom_call.1} parent=19 // pred_region
          %s123 = sand.u32 %s25, 1
          %s124 = scalar_lea.sflag [#allocation3], %s123
          %s125 = sand.u32 %s25, 1
          %s126 = smul.addr %s125, 8
          %s127 = scalar_lea.vmem [#allocation2], %s126
          %s129 = ssub.s32 128, 128
          %130 = vsyncadd %s124, %s129
          %s131 = smul.addr %s15, 128
          %s132 = scalar_lea.hbm %s0, %s131
          %s134 = sshll.u32 %s127, 4
          %s135 = int_to_ptr.vmem [resolvable:$true] %s134
          %137 = dma.hbm_to_vmem [thread:$0]  %s132, 128, %s135, %s124
        $region24: #{tpu_custom_call.1} parent=19 // pred_fallthru
          _
      $region20: #{tpu_custom_call.1} parent=5 // pred_fallthru
        _
      %p138 = scmp.le.s32.totalorder 1, %s15
      %p139 = scmp.lt.s32.totalorder %s15, 3
      %p140 = pnand %p138, %p139
      %p141 = pneg %p140
      // Predicated region
      $region25: #{tpu_custom_call.1} parent=5 // pred_check
        _
      $region26: #{tpu_custom_call.1} parent=5 // pred_check_branch
        %143 = sbr.rel (%p140) target = $region28
      $region27: #{tpu_custom_call.1} parent=5 // pred_region
        %s144 = ssub.s32 %s15, 1
        %s145 = sand.u32 %s28, 1
        %s146 = scalar_lea.sflag [#allocation3], %s145
        %s147 = sand.u32 %s28, 1
        %s148 = smul.addr %s147, 8
        %s149 = scalar_lea.vmem [#allocation2], %s148
        // Predicated region
        $region29: #{tpu_custom_call.1} parent=27 // pred_check
          %p150 = pneg %p41
        $region30: #{tpu_custom_call.1} parent=27 // pred_check_branch
          %152 = sbr.rel (%p150) target = $region32
        $region31: #{tpu_custom_call.1} parent=27 // pred_region
          %153 = dma.done %s146, 128
        $region32: #{tpu_custom_call.1} parent=27 // pred_fallthru
          _
        // Predicated region
        $region33: #{tpu_custom_call.1} parent=27 // pred_check
          %p154 = pneg %p62
        $region34: #{tpu_custom_call.1} parent=27 // pred_check_branch
          %156 = sbr.rel (%p154) target = $region36
        $region35: #{tpu_custom_call.1} parent=27 // pred_region
          %157 = dma.done [#allocation6], 2048
        $region36: #{tpu_custom_call.1} parent=27 // pred_fallthru
          _
        %s158 = sand.u32 %s28, 1
        %s159 = scalar_lea.sflag [#allocation3], %s158
        %s160 = sand.u32 %s28, 1
        %s161 = smul.addr %s160, 8
        %s162 = scalar_lea.vmem [#allocation2], %s161
        %p163 = pneg %p41
        %p164 = pneg %p38
        %p165 = pneg %p62
        %p166 = pneg %p59
        %p167 = pneg %p88
        %p168 = pneg %p85
        %s169 = sand.u32 %s75, 1
        %s170 = scalar_lea.sflag [#allocation4], %s169
        %s171 = sand.u32 %s75, 1
        %s172 = smul.addr %s171, 8
        %s173 = scalar_lea.vmem [#allocation7], %s172
        %v175 = vld [vmem:[#allocation5] sm:$0xff]
        %v176 = vld [vmem:[#allocation5 + $0x8] sm:$0xff]
        %v177 = vld [vmem:[#allocation5 + $0x10] sm:$0xff]
        %v178 = vld [vmem:[#allocation5 + $0x18] sm:$0xff]
        %v179 = vld [vmem:[#allocation5 + $0x20] sm:$0xff]
        %v180 = vld [vmem:[#allocation5 + $0x28] sm:$0xff]
        %v181 = vld [vmem:[#allocation5 + $0x30] sm:$0xff]
        %v182 = vld [vmem:[#allocation5 + $0x38] sm:$0xff]
        %v183 = vld [vmem:[#allocation5 + $0x40] sm:$0xff]
        %v184 = vld [vmem:[#allocation5 + $0x48] sm:$0xff]
        %v185 = vld [vmem:[#allocation5 + $0x50] sm:$0xff]
        %v186 = vld [vmem:[#allocation5 + $0x58] sm:$0xff]
        %v187 = vld [vmem:[#allocation5 + $0x60] sm:$0xff]
        %v188 = vld [vmem:[#allocation5 + $0x68] sm:$0xff]
        %v189 = vld [vmem:[#allocation5 + $0x70] sm:$0xff]
        %v190 = vld [vmem:[#allocation5 + $0x78] sm:$0xff]
        %v191 = vld [vmem:[%s149] sm:$0x7f]
        %v192 = vrot.slane %v191, 1
        %v193 = vrot.slane %v191, 2
        %v194 = vrot.slane %v191, 3
        %v195 = vrot.slane %v191, 4
        %v196 = vrot.slane %v191, 5
        %v197 = vrot.slane %v191, 6
        %v198 = vlaneseq
        %v199 = vshrl.u32 %v198, 7
        %v200 = vadd.s32 %v199, 8
        %v201 = vadd.s32 %v199, 16
        %v202 = vadd.s32 %v199, 24
        %v203 = vadd.s32 %v199, 32
        %v204 = vadd.s32 %v199, 40
        %v205 = vadd.s32 %v199, 48
        %v206 = vadd.s32 %v199, 56
        %v207 = vadd.s32 %v199, 64
        %v208 = vadd.s32 %v199, 72
        %v209 = vadd.s32 %v199, 80
        %v210 = vadd.s32 %v199, 88
        %v211 = vadd.s32 %v199, 96
        %v212 = vadd.s32 %v199, 104
        %v213 = vadd.s32 %v199, 112
        %v214 = vadd.s32 %v199, 120
        %v215 = vadd.s32 %v199, 128
        %v216 = vadd.s32 %v199, 136
        %v217 = vadd.s32 %v199, 144
        %v218 = vadd.s32 %v199, 152
        %v219 = vadd.s32 %v199, 160
        %v220 = vadd.s32 %v199, 168
        %v221 = vadd.s32 %v199, 176
        %v222 = vadd.s32 %v199, 184
        %v223 = vadd.s32 %v199, 192
        %v224 = vadd.s32 %v199, 200
        %v225 = vadd.s32 %v199, 208
        %v226 = vadd.s32 %v199, 216
        %v227 = vadd.s32 %v199, 224
        %v228 = vadd.s32 %v199, 232
        %v229 = vadd.s32 %v199, 240
        %v230 = vadd.s32 %v199, 248
        %v231 = vadd.s32 %v199, 256
        %v232 = vadd.s32 %v199, 264
        %v233 = vadd.s32 %v199, 272
        %v234 = vadd.s32 %v199, 280
        %v235 = vadd.s32 %v199, 288
        %v236 = vadd.s32 %v199, 296
        %v237 = vadd.s32 %v199, 304
        %v238 = vadd.s32 %v199, 312
        %v239 = vadd.s32 %v199, 320
        %v240 = vadd.s32 %v199, 328
        %v241 = vadd.s32 %v199, 336
        %v242 = vadd.s32 %v199, 344
        %v243 = vadd.s32 %v199, 352
        %v244 = vadd.s32 %v199, 360
        %v245 = vadd.s32 %v199, 368
        %v246 = vadd.s32 %v199, 376
        %v247 = vadd.s32 %v199, 384
        %v248 = vadd.s32 %v199, 392
        %v249 = vadd.s32 %v199, 400
        %v250 = vadd.s32 %v199, 408
        %v251 = vadd.s32 %v199, 416
        %v252 = vadd.s32 %v199, 424
        %v253 = vadd.s32 %v199, 432
        %v254 = vadd.s32 %v199, 440
        %v255 = vadd.s32 %v199, 448
        %v256 = vadd.s32 %v199, 456
        %v257 = vadd.s32 %v199, 464
        %v258 = vadd.s32 %v199, 472
        %v259 = vadd.s32 %v199, 480
        %v260 = vadd.s32 %v199, 488
        %v261 = vadd.s32 %v199, 496
        %v262 = vadd.s32 %v199, 504
        %v263 = vadd.s32 %v199, 512
        %v264 = vadd.s32 %v199, 520
        %v265 = vadd.s32 %v199, 528
        %v266 = vadd.s32 %v199, 536
        %v267 = vadd.s32 %v199, 544
        %v268 = vadd.s32 %v199, 552
        %v269 = vadd.s32 %v199, 560
        %v270 = vadd.s32 %v199, 568
        %v271 = vadd.s32 %v199, 576
        %v272 = vadd.s32 %v199, 584
        %v273 = vadd.s32 %v199, 592
        %v274 = vadd.s32 %v199, 600
        %v275 = vadd.s32 %v199, 608
        %v276 = vadd.s32 %v199, 616
        %v277 = vadd.s32 %v199, 624
        %v278 = vadd.s32 %v199, 632
        %v279 = vadd.s32 %v199, 640
        %v280 = vadd.s32 %v199, 648
        %v281 = vadd.s32 %v199, 656
        %v282 = vadd.s32 %v199, 664
        %v283 = vadd.s32 %v199, 672
        %v284 = vadd.s32 %v199, 680
        %v285 = vadd.s32 %v199, 688
        %v286 = vadd.s32 %v199, 696
        %v287 = vadd.s32 %v199, 704
        %v288 = vadd.s32 %v199, 712
        %v289 = vadd.s32 %v199, 720
        %v290 = vadd.s32 %v199, 728
        %v291 = vadd.s32 %v199, 736
        %v292 = vadd.s32 %v199, 744
        %v293 = vadd.s32 %v199, 752
        %v294 = vadd.s32 %v199, 760
        %v295 = vadd.s32 %v199, 768
        %v296 = vadd.s32 %v199, 776
        %v297 = vadd.s32 %v199, 784
        %v298 = vadd.s32 %v199, 792
        %v299 = vadd.s32 %v199, 800
        %v300 = vadd.s32 %v199, 808
        %v301 = vadd.s32 %v199, 816
        %v302 = vadd.s32 %v199, 824
        %v303 = vadd.s32 %v199, 832
        %v304 = vadd.s32 %v199, 840
        %v305 = vadd.s32 %v199, 848
        %v306 = vadd.s32 %v199, 856
        %v307 = vadd.s32 %v199, 864
        %v308 = vadd.s32 %v199, 872
        %v309 = vadd.s32 %v199, 880
        %v310 = vadd.s32 %v199, 888
        %v311 = vadd.s32 %v199, 896
        %v312 = vadd.s32 %v199, 904
        %v313 = vadd.s32 %v199, 912
        %v314 = vadd.s32 %v199, 920
        %v315 = vadd.s32 %v199, 928
        %v316 = vadd.s32 %v199, 936
        %v317 = vadd.s32 %v199, 944
        %v318 = vadd.s32 %v199, 952
        %v319 = vadd.s32 %v199, 960
        %v320 = vadd.s32 %v199, 968
        %v321 = vadd.s32 %v199, 976
        %v322 = vadd.s32 %v199, 984
        %v323 = vadd.s32 %v199, 992
        %v324 = vadd.s32 %v199, 1000
        %v325 = vadd.s32 %v199, 1008
        %v326 = vadd.s32 %v199, 1016
        %v327 = vlaneseq
        %v328 = vshrl.u32 %v327, 7
        %v329 = vsub.s32 0, %v328
        %v330 = vrot.slane %v191, %v329
        %v331 = vlaneseq
        %v332 = vshrl.u32 %v331, 7
        %v333 = vsub.s32 0, %v332
        %v334 = vrot.slane %v192, %v333
        %v335 = vlaneseq
        %v336 = vshrl.u32 %v335, 7
        %v337 = vsub.s32 0, %v336
        %v338 = vrot.slane %v193, %v337
        %v339 = vlaneseq
        %v340 = vshrl.u32 %v339, 7
        %v341 = vsub.s32 0, %v340
        %v342 = vrot.slane %v194, %v341
        %v343 = vlaneseq
        %v344 = vshrl.u32 %v343, 7
        %v345 = vsub.s32 0, %v344
        %v346 = vrot.slane %v195, %v345
        %v347 = vlaneseq
        %v348 = vshrl.u32 %v347, 7
        %v349 = vsub.s32 0, %v348
        %v350 = vrot.slane %v196, %v349
        %v351 = vlaneseq
        %v352 = vshrl.u32 %v351, 7
        %v353 = vsub.s32 0, %v352
        %v354 = vrot.slane %v197, %v353
        %vm355 = vcmp.eq.s32.totalorder %v199, %v330
        %vm356 = vcmp.eq.s32.totalorder %v199, %v334
        %vm357 = vcmp.eq.s32.totalorder %v199, %v338
        %vm358 = vcmp.eq.s32.totalorder %v199, %v342
        %vm359 = vcmp.eq.s32.totalorder %v199, %v346
        %vm360 = vcmp.eq.s32.totalorder %v199, %v350
        %vm361 = vcmp.eq.s32.totalorder %v199, %v354
        %vm362 = vcmp.eq.s32.totalorder %v200, %v330
        %vm363 = vcmp.eq.s32.totalorder %v200, %v334
        %vm364 = vcmp.eq.s32.totalorder %v200, %v338
        %vm365 = vcmp.eq.s32.totalorder %v200, %v342
        %vm366 = vcmp.eq.s32.totalorder %v200, %v346
        %vm367 = vcmp.eq.s32.totalorder %v200, %v350
        %vm368 = vcmp.eq.s32.totalorder %v200, %v354
        %vm369 = vcmp.eq.s32.totalorder %v201, %v330
        %vm370 = vcmp.eq.s32.totalorder %v201, %v334
        %vm371 = vcmp.eq.s32.totalorder %v201, %v338
        %vm372 = vcmp.eq.s32.totalorder %v201, %v342
        %vm373 = vcmp.eq.s32.totalorder %v201, %v346
        %vm374 = vcmp.eq.s32.totalorder %v201, %v350
        %vm375 = vcmp.eq.s32.totalorder %v201, %v354
        %vm376 = vcmp.eq.s32.totalorder %v202, %v330
        %vm377 = vcmp.eq.s32.totalorder %v202, %v334
        %vm378 = vcmp.eq.s32.totalorder %v202, %v338
        %vm379 = vcmp.eq.s32.totalorder %v202, %v342
        %vm380 = vcmp.eq.s32.totalorder %v202, %v346
        %vm381 = vcmp.eq.s32.totalorder %v202, %v350
        %vm382 = vcmp.eq.s32.totalorder %v202, %v354
        %vm383 = vcmp.eq.s32.totalorder %v203, %v330
        %vm384 = vcmp.eq.s32.totalorder %v203, %v334
        %vm385 = vcmp.eq.s32.totalorder %v203, %v338
        %vm386 = vcmp.eq.s32.totalorder %v203, %v342
        %vm387 = vcmp.eq.s32.totalorder %v203, %v346
        %vm388 = vcmp.eq.s32.totalorder %v203, %v350
        %vm389 = vcmp.eq.s32.totalorder %v203, %v354
        %vm390 = vcmp.eq.s32.totalorder %v204, %v330
        %vm391 = vcmp.eq.s32.totalorder %v204, %v334
        %vm392 = vcmp.eq.s32.totalorder %v204, %v338
        %vm393 = vcmp.eq.s32.totalorder %v204, %v342
        %vm394 = vcmp.eq.s32.totalorder %v204, %v346
        %vm395 = vcmp.eq.s32.totalorder %v204, %v350
        %vm396 = vcmp.eq.s32.totalorder %v204, %v354
        %vm397 = vcmp.eq.s32.totalorder %v205, %v330
        %vm398 = vcmp.eq.s32.totalorder %v205, %v334
        %vm399 = vcmp.eq.s32.totalorder %v205, %v338
        %vm400 = vcmp.eq.s32.totalorder %v205, %v342
        %vm401 = vcmp.eq.s32.totalorder %v205, %v346
        %vm402 = vcmp.eq.s32.totalorder %v205, %v350
        %vm403 = vcmp.eq.s32.totalorder %v205, %v354
        %vm404 = vcmp.eq.s32.totalorder %v206, %v330
        %vm405 = vcmp.eq.s32.totalorder %v206, %v334
        %vm406 = vcmp.eq.s32.totalorder %v206, %v338
        %vm407 = vcmp.eq.s32.totalorder %v206, %v342
        %vm408 = vcmp.eq.s32.totalorder %v206, %v346
        %vm409 = vcmp.eq.s32.totalorder %v206, %v350
        %vm410 = vcmp.eq.s32.totalorder %v206, %v354
        %vm411 = vcmp.eq.s32.totalorder %v207, %v330
        %vm412 = vcmp.eq.s32.totalorder %v207, %v334
        %vm413 = vcmp.eq.s32.totalorder %v207, %v338
        %vm414 = vcmp.eq.s32.totalorder %v207, %v342
        %vm415 = vcmp.eq.s32.totalorder %v207, %v346
        %vm416 = vcmp.eq.s32.totalorder %v207, %v350
        %vm417 = vcmp.eq.s32.totalorder %v207, %v354
        %vm418 = vcmp.eq.s32.totalorder %v208, %v330
        %vm419 = vcmp.eq.s32.totalorder %v208, %v334
        %vm420 = vcmp.eq.s32.totalorder %v208, %v338
        %vm421 = vcmp.eq.s32.totalorder %v208, %v342
        %vm422 = vcmp.eq.s32.totalorder %v208, %v346
        %vm423 = vcmp.eq.s32.totalorder %v208, %v350
        %vm424 = vcmp.eq.s32.totalorder %v208, %v354
        %vm425 = vcmp.eq.s32.totalorder %v209, %v330
        %vm426 = vcmp.eq.s32.totalorder %v209, %v334
        %vm427 = vcmp.eq.s32.totalorder %v209, %v338
        %vm428 = vcmp.eq.s32.totalorder %v209, %v342
        %vm429 = vcmp.eq.s32.totalorder %v209, %v346
        %vm430 = vcmp.eq.s32.totalorder %v209, %v350
        %vm431 = vcmp.eq.s32.totalorder %v209, %v354
        %vm432 = vcmp.eq.s32.totalorder %v210, %v330
        %vm433 = vcmp.eq.s32.totalorder %v210, %v334
        %vm434 = vcmp.eq.s32.totalorder %v210, %v338
        %vm435 = vcmp.eq.s32.totalorder %v210, %v342
        %vm436 = vcmp.eq.s32.totalorder %v210, %v346
        %vm437 = vcmp.eq.s32.totalorder %v210, %v350
        %vm438 = vcmp.eq.s32.totalorder %v210, %v354
        %vm439 = vcmp.eq.s32.totalorder %v211, %v330
        %vm440 = vcmp.eq.s32.totalorder %v211, %v334
        %vm441 = vcmp.eq.s32.totalorder %v211, %v338
        %vm442 = vcmp.eq.s32.totalorder %v211, %v342
        %vm443 = vcmp.eq.s32.totalorder %v211, %v346
        %vm444 = vcmp.eq.s32.totalorder %v211, %v350
        %vm445 = vcmp.eq.s32.totalorder %v211, %v354
        %vm446 = vcmp.eq.s32.totalorder %v212, %v330
        %vm447 = vcmp.eq.s32.totalorder %v212, %v334
        %vm448 = vcmp.eq.s32.totalorder %v212, %v338
        %vm449 = vcmp.eq.s32.totalorder %v212, %v342
        %vm450 = vcmp.eq.s32.totalorder %v212, %v346
        %vm451 = vcmp.eq.s32.totalorder %v212, %v350
        %vm452 = vcmp.eq.s32.totalorder %v212, %v354
        %vm453 = vcmp.eq.s32.totalorder %v213, %v330
        %vm454 = vcmp.eq.s32.totalorder %v213, %v334
        %vm455 = vcmp.eq.s32.totalorder %v213, %v338
        %vm456 = vcmp.eq.s32.totalorder %v213, %v342
        %vm457 = vcmp.eq.s32.totalorder %v213, %v346
        %vm458 = vcmp.eq.s32.totalorder %v213, %v350
        %vm459 = vcmp.eq.s32.totalorder %v213, %v354
        %vm460 = vcmp.eq.s32.totalorder %v214, %v330
        %vm461 = vcmp.eq.s32.totalorder %v214, %v334
        %vm462 = vcmp.eq.s32.totalorder %v214, %v338
        %vm463 = vcmp.eq.s32.totalorder %v214, %v342
        %vm464 = vcmp.eq.s32.totalorder %v214, %v346
        %vm465 = vcmp.eq.s32.totalorder %v214, %v350
        %vm466 = vcmp.eq.s32.totalorder %v214, %v354
        %vm467 = vcmp.eq.s32.totalorder %v215, %v330
        %vm468 = vcmp.eq.s32.totalorder %v215, %v334
        %vm469 = vcmp.eq.s32.totalorder %v215, %v338
        %vm470 = vcmp.eq.s32.totalorder %v215, %v342
        %vm471 = vcmp.eq.s32.totalorder %v215, %v346
        %vm472 = vcmp.eq.s32.totalorder %v215, %v350
        %vm473 = vcmp.eq.s32.totalorder %v215, %v354
        %vm474 = vcmp.eq.s32.totalorder %v216, %v330
        %vm475 = vcmp.eq.s32.totalorder %v216, %v334
        %vm476 = vcmp.eq.s32.totalorder %v216, %v338
        %vm477 = vcmp.eq.s32.totalorder %v216, %v342
        %vm478 = vcmp.eq.s32.totalorder %v216, %v346
        %vm479 = vcmp.eq.s32.totalorder %v216, %v350
        %vm480 = vcmp.eq.s32.totalorder %v216, %v354
        %vm481 = vcmp.eq.s32.totalorder %v217, %v330
        %vm482 = vcmp.eq.s32.totalorder %v217, %v334
        %vm483 = vcmp.eq.s32.totalorder %v217, %v338
        %vm484 = vcmp.eq.s32.totalorder %v217, %v342
        %vm485 = vcmp.eq.s32.totalorder %v217, %v346
        %vm486 = vcmp.eq.s32.totalorder %v217, %v350
        %vm487 = vcmp.eq.s32.totalorder %v217, %v354
        %vm488 = vcmp.eq.s32.totalorder %v218, %v330
        %vm489 = vcmp.eq.s32.totalorder %v218, %v334
        %vm490 = vcmp.eq.s32.totalorder %v218, %v338
        %vm491 = vcmp.eq.s32.totalorder %v218, %v342
        %vm492 = vcmp.eq.s32.totalorder %v218, %v346
        %vm493 = vcmp.eq.s32.totalorder %v218, %v350
        %vm494 = vcmp.eq.s32.totalorder %v218, %v354
        %vm495 = vcmp.eq.s32.totalorder %v219, %v330
        %vm496 = vcmp.eq.s32.totalorder %v219, %v334
        %vm497 = vcmp.eq.s32.totalorder %v219, %v338
        %vm498 = vcmp.eq.s32.totalorder %v219, %v342
        %vm499 = vcmp.eq.s32.totalorder %v219, %v346
        %vm500 = vcmp.eq.s32.totalorder %v219, %v350
        %vm501 = vcmp.eq.s32.totalorder %v219, %v354
        %vm502 = vcmp.eq.s32.totalorder %v220, %v330
        %vm503 = vcmp.eq.s32.totalorder %v220, %v334
        %vm504 = vcmp.eq.s32.totalorder %v220, %v338
        %vm505 = vcmp.eq.s32.totalorder %v220, %v342
        %vm506 = vcmp.eq.s32.totalorder %v220, %v346
        %vm507 = vcmp.eq.s32.totalorder %v220, %v350
        %vm508 = vcmp.eq.s32.totalorder %v220, %v354
        %vm509 = vcmp.eq.s32.totalorder %v221, %v330
        %vm510 = vcmp.eq.s32.totalorder %v221, %v334
        %vm511 = vcmp.eq.s32.totalorder %v221, %v338
        %vm512 = vcmp.eq.s32.totalorder %v221, %v342
        %vm513 = vcmp.eq.s32.totalorder %v221, %v346
        %vm514 = vcmp.eq.s32.totalorder %v221, %v350
        %vm515 = vcmp.eq.s32.totalorder %v221, %v354
        %vm516 = vcmp.eq.s32.totalorder %v222, %v330
        %vm517 = vcmp.eq.s32.totalorder %v222, %v334
        %vm518 = vcmp.eq.s32.totalorder %v222, %v338
        %vm519 = vcmp.eq.s32.totalorder %v222, %v342
        %vm520 = vcmp.eq.s32.totalorder %v222, %v346
        %vm521 = vcmp.eq.s32.totalorder %v222, %v350
        %vm522 = vcmp.eq.s32.totalorder %v222, %v354
        %vm523 = vcmp.eq.s32.totalorder %v223, %v330
        %vm524 = vcmp.eq.s32.totalorder %v223, %v334
        %vm525 = vcmp.eq.s32.totalorder %v223, %v338
        %vm526 = vcmp.eq.s32.totalorder %v223, %v342
        %vm527 = vcmp.eq.s32.totalorder %v223, %v346
        %vm528 = vcmp.eq.s32.totalorder %v223, %v350
        %vm529 = vcmp.eq.s32.totalorder %v223, %v354
        %vm530 = vcmp.eq.s32.totalorder %v224, %v330
        %vm531 = vcmp.eq.s32.totalorder %v224, %v334
        %vm532 = vcmp.eq.s32.totalorder %v224, %v338
        %vm533 = vcmp.eq.s32.totalorder %v224, %v342
        %vm534 = vcmp.eq.s32.totalorder %v224, %v346
        %vm535 = vcmp.eq.s32.totalorder %v224, %v350
        %vm536 = vcmp.eq.s32.totalorder %v224, %v354
        %vm537 = vcmp.eq.s32.totalorder %v225, %v330
        %vm538 = vcmp.eq.s32.totalorder %v225, %v334
        %vm539 = vcmp.eq.s32.totalorder %v225, %v338
        %vm540 = vcmp.eq.s32.totalorder %v225, %v342
        %vm541 = vcmp.eq.s32.totalorder %v225, %v346
        %vm542 = vcmp.eq.s32.totalorder %v225, %v350
        %vm543 = vcmp.eq.s32.totalorder %v225, %v354
        %vm544 = vcmp.eq.s32.totalorder %v226, %v330
        %vm545 = vcmp.eq.s32.totalorder %v226, %v334
        %vm546 = vcmp.eq.s32.totalorder %v226, %v338
        %vm547 = vcmp.eq.s32.totalorder %v226, %v342
        %vm548 = vcmp.eq.s32.totalorder %v226, %v346
        %vm549 = vcmp.eq.s32.totalorder %v226, %v350
        %vm550 = vcmp.eq.s32.totalorder %v226, %v354
        %vm551 = vcmp.eq.s32.totalorder %v227, %v330
        %vm552 = vcmp.eq.s32.totalorder %v227, %v334
        %vm553 = vcmp.eq.s32.totalorder %v227, %v338
        %vm554 = vcmp.eq.s32.totalorder %v227, %v342
        %vm555 = vcmp.eq.s32.totalorder %v227, %v346
        %vm556 = vcmp.eq.s32.totalorder %v227, %v350
        %vm557 = vcmp.eq.s32.totalorder %v227, %v354
        %vm558 = vcmp.eq.s32.totalorder %v228, %v330
        %vm559 = vcmp.eq.s32.totalorder %v228, %v334
        %vm560 = vcmp.eq.s32.totalorder %v228, %v338
        %vm561 = vcmp.eq.s32.totalorder %v228, %v342
        %vm562 = vcmp.eq.s32.totalorder %v228, %v346
        %vm563 = vcmp.eq.s32.totalorder %v228, %v350
        %vm564 = vcmp.eq.s32.totalorder %v228, %v354
        %vm565 = vcmp.eq.s32.totalorder %v229, %v330
        %vm566 = vcmp.eq.s32.totalorder %v229, %v334
        %vm567 = vcmp.eq.s32.totalorder %v229, %v338
        %vm568 = vcmp.eq.s32.totalorder %v229, %v342
        %vm569 = vcmp.eq.s32.totalorder %v229, %v346
        %vm570 = vcmp.eq.s32.totalorder %v229, %v350
        %vm571 = vcmp.eq.s32.totalorder %v229, %v354
        %vm572 = vcmp.eq.s32.totalorder %v230, %v330
        %vm573 = vcmp.eq.s32.totalorder %v230, %v334
        %vm574 = vcmp.eq.s32.totalorder %v230, %v338
        %vm575 = vcmp.eq.s32.totalorder %v230, %v342
        %vm576 = vcmp.eq.s32.totalorder %v230, %v346
        %vm577 = vcmp.eq.s32.totalorder %v230, %v350
        %vm578 = vcmp.eq.s32.totalorder %v230, %v354
        %vm579 = vcmp.eq.s32.totalorder %v231, %v330
        %vm580 = vcmp.eq.s32.totalorder %v231, %v334
        %vm581 = vcmp.eq.s32.totalorder %v231, %v338
        %vm582 = vcmp.eq.s32.totalorder %v231, %v342
        %vm583 = vcmp.eq.s32.totalorder %v231, %v346
        %vm584 = vcmp.eq.s32.totalorder %v231, %v350
        %vm585 = vcmp.eq.s32.totalorder %v231, %v354
        %vm586 = vcmp.eq.s32.totalorder %v232, %v330
        %vm587 = vcmp.eq.s32.totalorder %v232, %v334
        %vm588 = vcmp.eq.s32.totalorder %v232, %v338
        %vm589 = vcmp.eq.s32.totalorder %v232, %v342
        %vm590 = vcmp.eq.s32.totalorder %v232, %v346
        %vm591 = vcmp.eq.s32.totalorder %v232, %v350
        %vm592 = vcmp.eq.s32.totalorder %v232, %v354
        %vm593 = vcmp.eq.s32.totalorder %v233, %v330
        %vm594 = vcmp.eq.s32.totalorder %v233, %v334
        %vm595 = vcmp.eq.s32.totalorder %v233, %v338
        %vm596 = vcmp.eq.s32.totalorder %v233, %v342
        %vm597 = vcmp.eq.s32.totalorder %v233, %v346
        %vm598 = vcmp.eq.s32.totalorder %v233, %v350
        %vm599 = vcmp.eq.s32.totalorder %v233, %v354
        %vm600 = vcmp.eq.s32.totalorder %v234, %v330
        %vm601 = vcmp.eq.s32.totalorder %v234, %v334
        %vm602 = vcmp.eq.s32.totalorder %v234, %v338
        %vm603 = vcmp.eq.s32.totalorder %v234, %v342
        %vm604 = vcmp.eq.s32.totalorder %v234, %v346
        %vm605 = vcmp.eq.s32.totalorder %v234, %v350
        %vm606 = vcmp.eq.s32.totalorder %v234, %v354
        %vm607 = vcmp.eq.s32.totalorder %v235, %v330
        %vm608 = vcmp.eq.s32.totalorder %v235, %v334
        %vm609 = vcmp.eq.s32.totalorder %v235, %v338
        %vm610 = vcmp.eq.s32.totalorder %v235, %v342
        %vm611 = vcmp.eq.s32.totalorder %v235, %v346
        %vm612 = vcmp.eq.s32.totalorder %v235, %v350
        %vm613 = vcmp.eq.s32.totalorder %v235, %v354
        %vm614 = vcmp.eq.s32.totalorder %v236, %v330
        %vm615 = vcmp.eq.s32.totalorder %v236, %v334
        %vm616 = vcmp.eq.s32.totalorder %v236, %v338
        %vm617 = vcmp.eq.s32.totalorder %v236, %v342
        %vm618 = vcmp.eq.s32.totalorder %v236, %v346
        %vm619 = vcmp.eq.s32.totalorder %v236, %v350
        %vm620 = vcmp.eq.s32.totalorder %v236, %v354
        %vm621 = vcmp.eq.s32.totalorder %v237, %v330
        %vm622 = vcmp.eq.s32.totalorder %v237, %v334
        %vm623 = vcmp.eq.s32.totalorder %v237, %v338
        %vm624 = vcmp.eq.s32.totalorder %v237, %v342
        %vm625 = vcmp.eq.s32.totalorder %v237, %v346
        %vm626 = vcmp.eq.s32.totalorder %v237, %v350
        %vm627 = vcmp.eq.s32.totalorder %v237, %v354
        %vm628 = vcmp.eq.s32.totalorder %v238, %v330
        %vm629 = vcmp.eq.s32.totalorder %v238, %v334
        %vm630 = vcmp.eq.s32.totalorder %v238, %v338
        %vm631 = vcmp.eq.s32.totalorder %v238, %v342
        %vm632 = vcmp.eq.s32.totalorder %v238, %v346
        %vm633 = vcmp.eq.s32.totalorder %v238, %v350
        %vm634 = vcmp.eq.s32.totalorder %v238, %v354
        %vm635 = vcmp.eq.s32.totalorder %v239, %v330
        %vm636 = vcmp.eq.s32.totalorder %v239, %v334
        %vm637 = vcmp.eq.s32.totalorder %v239, %v338
        %vm638 = vcmp.eq.s32.totalorder %v239, %v342
        %vm639 = vcmp.eq.s32.totalorder %v239, %v346
        %vm640 = vcmp.eq.s32.totalorder %v239, %v350
        %vm641 = vcmp.eq.s32.totalorder %v239, %v354
        %vm642 = vcmp.eq.s32.totalorder %v240, %v330
        %vm643 = vcmp.eq.s32.totalorder %v240, %v334
        %vm644 = vcmp.eq.s32.totalorder %v240, %v338
        %vm645 = vcmp.eq.s32.totalorder %v240, %v342
        %vm646 = vcmp.eq.s32.totalorder %v240, %v346
        %vm647 = vcmp.eq.s32.totalorder %v240, %v350
        %vm648 = vcmp.eq.s32.totalorder %v240, %v354
        %vm649 = vcmp.eq.s32.totalorder %v241, %v330
        %vm650 = vcmp.eq.s32.totalorder %v241, %v334
        %vm651 = vcmp.eq.s32.totalorder %v241, %v338
        %vm652 = vcmp.eq.s32.totalorder %v241, %v342
        %vm653 = vcmp.eq.s32.totalorder %v241, %v346
        %vm654 = vcmp.eq.s32.totalorder %v241, %v350
        %vm655 = vcmp.eq.s32.totalorder %v241, %v354
        %vm656 = vcmp.eq.s32.totalorder %v242, %v330
        %vm657 = vcmp.eq.s32.totalorder %v242, %v334
        %vm658 = vcmp.eq.s32.totalorder %v242, %v338
        %vm659 = vcmp.eq.s32.totalorder %v242, %v342
        %vm660 = vcmp.eq.s32.totalorder %v242, %v346
        %vm661 = vcmp.eq.s32.totalorder %v242, %v350
        %vm662 = vcmp.eq.s32.totalorder %v242, %v354
        %vm663 = vcmp.eq.s32.totalorder %v243, %v330
        %vm664 = vcmp.eq.s32.totalorder %v243, %v334
        %vm665 = vcmp.eq.s32.totalorder %v243, %v338
        %vm666 = vcmp.eq.s32.totalorder %v243, %v342
        %vm667 = vcmp.eq.s32.totalorder %v243, %v346
        %vm668 = vcmp.eq.s32.totalorder %v243, %v350
        %vm669 = vcmp.eq.s32.totalorder %v243, %v354
        %vm670 = vcmp.eq.s32.totalorder %v244, %v330
        %vm671 = vcmp.eq.s32.totalorder %v244, %v334
        %vm672 = vcmp.eq.s32.totalorder %v244, %v338
        %vm673 = vcmp.eq.s32.totalorder %v244, %v342
        %vm674 = vcmp.eq.s32.totalorder %v244, %v346
        %vm675 = vcmp.eq.s32.totalorder %v244, %v350
        %vm676 = vcmp.eq.s32.totalorder %v244, %v354
        %vm677 = vcmp.eq.s32.totalorder %v245, %v330
        %vm678 = vcmp.eq.s32.totalorder %v245, %v334
        %vm679 = vcmp.eq.s32.totalorder %v245, %v338
        %vm680 = vcmp.eq.s32.totalorder %v245, %v342
        %vm681 = vcmp.eq.s32.totalorder %v245, %v346
        %vm682 = vcmp.eq.s32.totalorder %v245, %v350
        %vm683 = vcmp.eq.s32.totalorder %v245, %v354
        %vm684 = vcmp.eq.s32.totalorder %v246, %v330
        %vm685 = vcmp.eq.s32.totalorder %v246, %v334
        %vm686 = vcmp.eq.s32.totalorder %v246, %v338
        %vm687 = vcmp.eq.s32.totalorder %v246, %v342
        %vm688 = vcmp.eq.s32.totalorder %v246, %v346
        %vm689 = vcmp.eq.s32.totalorder %v246, %v350
        %vm690 = vcmp.eq.s32.totalorder %v246, %v354
        %vm691 = vcmp.eq.s32.totalorder %v247, %v330
        %vm692 = vcmp.eq.s32.totalorder %v247, %v334
        %vm693 = vcmp.eq.s32.totalorder %v247, %v338
        %vm694 = vcmp.eq.s32.totalorder %v247, %v342
        %vm695 = vcmp.eq.s32.totalorder %v247, %v346
        %vm696 = vcmp.eq.s32.totalorder %v247, %v350
        %vm697 = vcmp.eq.s32.totalorder %v247, %v354
        %vm698 = vcmp.eq.s32.totalorder %v248, %v330
        %vm699 = vcmp.eq.s32.totalorder %v248, %v334
        %vm700 = vcmp.eq.s32.totalorder %v248, %v338
        %vm701 = vcmp.eq.s32.totalorder %v248, %v342
        %vm702 = vcmp.eq.s32.totalorder %v248, %v346
        %vm703 = vcmp.eq.s32.totalorder %v248, %v350
        %vm704 = vcmp.eq.s32.totalorder %v248, %v354
        %vm705 = vcmp.eq.s32.totalorder %v249, %v330
        %vm706 = vcmp.eq.s32.totalorder %v249, %v334
        %vm707 = vcmp.eq.s32.totalorder %v249, %v338
        %vm708 = vcmp.eq.s32.totalorder %v249, %v342
        %vm709 = vcmp.eq.s32.totalorder %v249, %v346
        %vm710 = vcmp.eq.s32.totalorder %v249, %v350
        %vm711 = vcmp.eq.s32.totalorder %v249, %v354
        %vm712 = vcmp.eq.s32.totalorder %v250, %v330
        %vm713 = vcmp.eq.s32.totalorder %v250, %v334
        %vm714 = vcmp.eq.s32.totalorder %v250, %v338
        %vm715 = vcmp.eq.s32.totalorder %v250, %v342
        %vm716 = vcmp.eq.s32.totalorder %v250, %v346
        %vm717 = vcmp.eq.s32.totalorder %v250, %v350
        %vm718 = vcmp.eq.s32.totalorder %v250, %v354
        %vm719 = vcmp.eq.s32.totalorder %v251, %v330
        %vm720 = vcmp.eq.s32.totalorder %v251, %v334
        %vm721 = vcmp.eq.s32.totalorder %v251, %v338
        %vm722 = vcmp.eq.s32.totalorder %v251, %v342
        %vm723 = vcmp.eq.s32.totalorder %v251, %v346
        %vm724 = vcmp.eq.s32.totalorder %v251, %v350
        %vm725 = vcmp.eq.s32.totalorder %v251, %v354
        %vm726 = vcmp.eq.s32.totalorder %v252, %v330
        %vm727 = vcmp.eq.s32.totalorder %v252, %v334
        %vm728 = vcmp.eq.s32.totalorder %v252, %v338
        %vm729 = vcmp.eq.s32.totalorder %v252, %v342
        %vm730 = vcmp.eq.s32.totalorder %v252, %v346
        %vm731 = vcmp.eq.s32.totalorder %v252, %v350
        %vm732 = vcmp.eq.s32.totalorder %v252, %v354
        %vm733 = vcmp.eq.s32.totalorder %v253, %v330
        %vm734 = vcmp.eq.s32.totalorder %v253, %v334
        %vm735 = vcmp.eq.s32.totalorder %v253, %v338
        %vm736 = vcmp.eq.s32.totalorder %v253, %v342
        %vm737 = vcmp.eq.s32.totalorder %v253, %v346
        %vm738 = vcmp.eq.s32.totalorder %v253, %v350
        %vm739 = vcmp.eq.s32.totalorder %v253, %v354
        %vm740 = vcmp.eq.s32.totalorder %v254, %v330
        %vm741 = vcmp.eq.s32.totalorder %v254, %v334
        %vm742 = vcmp.eq.s32.totalorder %v254, %v338
        %vm743 = vcmp.eq.s32.totalorder %v254, %v342
        %vm744 = vcmp.eq.s32.totalorder %v254, %v346
        %vm745 = vcmp.eq.s32.totalorder %v254, %v350
        %vm746 = vcmp.eq.s32.totalorder %v254, %v354
        %vm747 = vcmp.eq.s32.totalorder %v255, %v330
        %vm748 = vcmp.eq.s32.totalorder %v255, %v334
        %vm749 = vcmp.eq.s32.totalorder %v255, %v338
        %vm750 = vcmp.eq.s32.totalorder %v255, %v342
        %vm751 = vcmp.eq.s32.totalorder %v255, %v346
        %vm752 = vcmp.eq.s32.totalorder %v255, %v350
        %vm753 = vcmp.eq.s32.totalorder %v255, %v354
        %vm754 = vcmp.eq.s32.totalorder %v256, %v330
        %vm755 = vcmp.eq.s32.totalorder %v256, %v334
        %vm756 = vcmp.eq.s32.totalorder %v256, %v338
        %vm757 = vcmp.eq.s32.totalorder %v256, %v342
        %vm758 = vcmp.eq.s32.totalorder %v256, %v346
        %vm759 = vcmp.eq.s32.totalorder %v256, %v350
        %vm760 = vcmp.eq.s32.totalorder %v256, %v354
        %vm761 = vcmp.eq.s32.totalorder %v257, %v330
        %vm762 = vcmp.eq.s32.totalorder %v257, %v334
        %vm763 = vcmp.eq.s32.totalorder %v257, %v338
        %vm764 = vcmp.eq.s32.totalorder %v257, %v342
        %vm765 = vcmp.eq.s32.totalorder %v257, %v346
        %vm766 = vcmp.eq.s32.totalorder %v257, %v350
        %vm767 = vcmp.eq.s32.totalorder %v257, %v354
        %vm768 = vcmp.eq.s32.totalorder %v258, %v330
        %vm769 = vcmp.eq.s32.totalorder %v258, %v334
        %vm770 = vcmp.eq.s32.totalorder %v258, %v338
        %vm771 = vcmp.eq.s32.totalorder %v258, %v342
        %vm772 = vcmp.eq.s32.totalorder %v258, %v346
        %vm773 = vcmp.eq.s32.totalorder %v258, %v350
        %vm774 = vcmp.eq.s32.totalorder %v258, %v354
        %vm775 = vcmp.eq.s32.totalorder %v259, %v330
        %vm776 = vcmp.eq.s32.totalorder %v259, %v334
        %vm777 = vcmp.eq.s32.totalorder %v259, %v338
        %vm778 = vcmp.eq.s32.totalorder %v259, %v342
        %vm779 = vcmp.eq.s32.totalorder %v259, %v346
        %vm780 = vcmp.eq.s32.totalorder %v259, %v350
        %vm781 = vcmp.eq.s32.totalorder %v259, %v354
        %vm782 = vcmp.eq.s32.totalorder %v260, %v330
        %vm783 = vcmp.eq.s32.totalorder %v260, %v334
        %vm784 = vcmp.eq.s32.totalorder %v260, %v338
        %vm785 = vcmp.eq.s32.totalorder %v260, %v342
        %vm786 = vcmp.eq.s32.totalorder %v260, %v346
        %vm787 = vcmp.eq.s32.totalorder %v260, %v350
        %vm788 = vcmp.eq.s32.totalorder %v260, %v354
        %vm789 = vcmp.eq.s32.totalorder %v261, %v330
        %vm790 = vcmp.eq.s32.totalorder %v261, %v334
        %vm791 = vcmp.eq.s32.totalorder %v261, %v338
        %vm792 = vcmp.eq.s32.totalorder %v261, %v342
        %vm793 = vcmp.eq.s32.totalorder %v261, %v346
        %vm794 = vcmp.eq.s32.totalorder %v261, %v350
        %vm795 = vcmp.eq.s32.totalorder %v261, %v354
        %vm796 = vcmp.eq.s32.totalorder %v262, %v330
        %vm797 = vcmp.eq.s32.totalorder %v262, %v334
        %vm798 = vcmp.eq.s32.totalorder %v262, %v338
        %vm799 = vcmp.eq.s32.totalorder %v262, %v342
        %vm800 = vcmp.eq.s32.totalorder %v262, %v346
        %vm801 = vcmp.eq.s32.totalorder %v262, %v350
        %vm802 = vcmp.eq.s32.totalorder %v262, %v354
        %vm803 = vcmp.eq.s32.totalorder %v263, %v330
        %vm804 = vcmp.eq.s32.totalorder %v263, %v334
        %vm805 = vcmp.eq.s32.totalorder %v263, %v338
        %vm806 = vcmp.eq.s32.totalorder %v263, %v342
        %vm807 = vcmp.eq.s32.totalorder %v263, %v346
        %vm808 = vcmp.eq.s32.totalorder %v263, %v350
        %vm809 = vcmp.eq.s32.totalorder %v263, %v354
        %vm810 = vcmp.eq.s32.totalorder %v264, %v330
        %vm811 = vcmp.eq.s32.totalorder %v264, %v334
        %vm812 = vcmp.eq.s32.totalorder %v264, %v338
        %vm813 = vcmp.eq.s32.totalorder %v264, %v342
        %vm814 = vcmp.eq.s32.totalorder %v264, %v346
        %vm815 = vcmp.eq.s32.totalorder %v264, %v350
        %vm816 = vcmp.eq.s32.totalorder %v264, %v354
        %vm817 = vcmp.eq.s32.totalorder %v265, %v330
        %vm818 = vcmp.eq.s32.totalorder %v265, %v334
        %vm819 = vcmp.eq.s32.totalorder %v265, %v338
        %vm820 = vcmp.eq.s32.totalorder %v265, %v342
        %vm821 = vcmp.eq.s32.totalorder %v265, %v346
        %vm822 = vcmp.eq.s32.totalorder %v265, %v350
        %vm823 = vcmp.eq.s32.totalorder %v265, %v354
        %vm824 = vcmp.eq.s32.totalorder %v266, %v330
        %vm825 = vcmp.eq.s32.totalorder %v266, %v334
        %vm826 = vcmp.eq.s32.totalorder %v266, %v338
        %vm827 = vcmp.eq.s32.totalorder %v266, %v342
        %vm828 = vcmp.eq.s32.totalorder %v266, %v346
        %vm829 = vcmp.eq.s32.totalorder %v266, %v350
        %vm830 = vcmp.eq.s32.totalorder %v266, %v354
        %vm831 = vcmp.eq.s32.totalorder %v267, %v330
        %vm832 = vcmp.eq.s32.totalorder %v267, %v334
        %vm833 = vcmp.eq.s32.totalorder %v267, %v338
        %vm834 = vcmp.eq.s32.totalorder %v267, %v342
        %vm835 = vcmp.eq.s32.totalorder %v267, %v346
        %vm836 = vcmp.eq.s32.totalorder %v267, %v350
        %vm837 = vcmp.eq.s32.totalorder %v267, %v354
        %vm838 = vcmp.eq.s32.totalorder %v268, %v330
        %vm839 = vcmp.eq.s32.totalorder %v268, %v334
        %vm840 = vcmp.eq.s32.totalorder %v268, %v338
        %vm841 = vcmp.eq.s32.totalorder %v268, %v342
        %vm842 = vcmp.eq.s32.totalorder %v268, %v346
        %vm843 = vcmp.eq.s32.totalorder %v268, %v350
        %vm844 = vcmp.eq.s32.totalorder %v268, %v354
        %vm845 = vcmp.eq.s32.totalorder %v269, %v330
        %vm846 = vcmp.eq.s32.totalorder %v269, %v334
        %vm847 = vcmp.eq.s32.totalorder %v269, %v338
        %vm848 = vcmp.eq.s32.totalorder %v269, %v342
        %vm849 = vcmp.eq.s32.totalorder %v269, %v346
        %vm850 = vcmp.eq.s32.totalorder %v269, %v350
        %vm851 = vcmp.eq.s32.totalorder %v269, %v354
        %vm852 = vcmp.eq.s32.totalorder %v270, %v330
        %vm853 = vcmp.eq.s32.totalorder %v270, %v334
        %vm854 = vcmp.eq.s32.totalorder %v270, %v338
        %vm855 = vcmp.eq.s32.totalorder %v270, %v342
        %vm856 = vcmp.eq.s32.totalorder %v270, %v346
        %vm857 = vcmp.eq.s32.totalorder %v270, %v350
        %vm858 = vcmp.eq.s32.totalorder %v270, %v354
        %vm859 = vcmp.eq.s32.totalorder %v271, %v330
        %vm860 = vcmp.eq.s32.totalorder %v271, %v334
        %vm861 = vcmp.eq.s32.totalorder %v271, %v338
        %vm862 = vcmp.eq.s32.totalorder %v271, %v342
        %vm863 = vcmp.eq.s32.totalorder %v271, %v346
        %vm864 = vcmp.eq.s32.totalorder %v271, %v350
        %vm865 = vcmp.eq.s32.totalorder %v271, %v354
        %vm866 = vcmp.eq.s32.totalorder %v272, %v330
        %vm867 = vcmp.eq.s32.totalorder %v272, %v334
        %vm868 = vcmp.eq.s32.totalorder %v272, %v338
        %vm869 = vcmp.eq.s32.totalorder %v272, %v342
        %vm870 = vcmp.eq.s32.totalorder %v272, %v346
        %vm871 = vcmp.eq.s32.totalorder %v272, %v350
        %vm872 = vcmp.eq.s32.totalorder %v272, %v354
        %vm873 = vcmp.eq.s32.totalorder %v273, %v330
        %vm874 = vcmp.eq.s32.totalorder %v273, %v334
        %vm875 = vcmp.eq.s32.totalorder %v273, %v338
        %vm876 = vcmp.eq.s32.totalorder %v273, %v342
        %vm877 = vcmp.eq.s32.totalorder %v273, %v346
        %vm878 = vcmp.eq.s32.totalorder %v273, %v350
        %vm879 = vcmp.eq.s32.totalorder %v273, %v354
        %vm880 = vcmp.eq.s32.totalorder %v274, %v330
        %vm881 = vcmp.eq.s32.totalorder %v274, %v334
        %vm882 = vcmp.eq.s32.totalorder %v274, %v338
        %vm883 = vcmp.eq.s32.totalorder %v274, %v342
        %vm884 = vcmp.eq.s32.totalorder %v274, %v346
        %vm885 = vcmp.eq.s32.totalorder %v274, %v350
        %vm886 = vcmp.eq.s32.totalorder %v274, %v354
        %vm887 = vcmp.eq.s32.totalorder %v275, %v330
        %vm888 = vcmp.eq.s32.totalorder %v275, %v334
        %vm889 = vcmp.eq.s32.totalorder %v275, %v338
        %vm890 = vcmp.eq.s32.totalorder %v275, %v342
        %vm891 = vcmp.eq.s32.totalorder %v275, %v346
        %vm892 = vcmp.eq.s32.totalorder %v275, %v350
        %vm893 = vcmp.eq.s32.totalorder %v275, %v354
        %vm894 = vcmp.eq.s32.totalorder %v276, %v330
        %vm895 = vcmp.eq.s32.totalorder %v276, %v334
        %vm896 = vcmp.eq.s32.totalorder %v276, %v338
        %vm897 = vcmp.eq.s32.totalorder %v276, %v342
        %vm898 = vcmp.eq.s32.totalorder %v276, %v346
        %vm899 = vcmp.eq.s32.totalorder %v276, %v350
        %vm900 = vcmp.eq.s32.totalorder %v276, %v354
        %vm901 = vcmp.eq.s32.totalorder %v277, %v330
        %vm902 = vcmp.eq.s32.totalorder %v277, %v334
        %vm903 = vcmp.eq.s32.totalorder %v277, %v338
        %vm904 = vcmp.eq.s32.totalorder %v277, %v342
        %vm905 = vcmp.eq.s32.totalorder %v277, %v346
        %vm906 = vcmp.eq.s32.totalorder %v277, %v350
        %vm907 = vcmp.eq.s32.totalorder %v277, %v354
        %vm908 = vcmp.eq.s32.totalorder %v278, %v330
        %vm909 = vcmp.eq.s32.totalorder %v278, %v334
        %vm910 = vcmp.eq.s32.totalorder %v278, %v338
        %vm911 = vcmp.eq.s32.totalorder %v278, %v342
        %vm912 = vcmp.eq.s32.totalorder %v278, %v346
        %vm913 = vcmp.eq.s32.totalorder %v278, %v350
        %vm914 = vcmp.eq.s32.totalorder %v278, %v354
        %vm915 = vcmp.eq.s32.totalorder %v279, %v330
        %vm916 = vcmp.eq.s32.totalorder %v279, %v334
        %vm917 = vcmp.eq.s32.totalorder %v279, %v338
        %vm918 = vcmp.eq.s32.totalorder %v279, %v342
        %vm919 = vcmp.eq.s32.totalorder %v279, %v346
        %vm920 = vcmp.eq.s32.totalorder %v279, %v350
        %vm921 = vcmp.eq.s32.totalorder %v279, %v354
        %vm922 = vcmp.eq.s32.totalorder %v280, %v330
        %vm923 = vcmp.eq.s32.totalorder %v280, %v334
        %vm924 = vcmp.eq.s32.totalorder %v280, %v338
        %vm925 = vcmp.eq.s32.totalorder %v280, %v342
        %vm926 = vcmp.eq.s32.totalorder %v280, %v346
        %vm927 = vcmp.eq.s32.totalorder %v280, %v350
        %vm928 = vcmp.eq.s32.totalorder %v280, %v354
        %vm929 = vcmp.eq.s32.totalorder %v281, %v330
        %vm930 = vcmp.eq.s32.totalorder %v281, %v334
        %vm931 = vcmp.eq.s32.totalorder %v281, %v338
        %vm932 = vcmp.eq.s32.totalorder %v281, %v342
        %vm933 = vcmp.eq.s32.totalorder %v281, %v346
        %vm934 = vcmp.eq.s32.totalorder %v281, %v350
        %vm935 = vcmp.eq.s32.totalorder %v281, %v354
        %vm936 = vcmp.eq.s32.totalorder %v282, %v330
        %vm937 = vcmp.eq.s32.totalorder %v282, %v334
        %vm938 = vcmp.eq.s32.totalorder %v282, %v338
        %vm939 = vcmp.eq.s32.totalorder %v282, %v342
        %vm940 = vcmp.eq.s32.totalorder %v282, %v346
        %vm941 = vcmp.eq.s32.totalorder %v282, %v350
        %vm942 = vcmp.eq.s32.totalorder %v282, %v354
        %vm943 = vcmp.eq.s32.totalorder %v283, %v330
        %vm944 = vcmp.eq.s32.totalorder %v283, %v334
        %vm945 = vcmp.eq.s32.totalorder %v283, %v338
        %vm946 = vcmp.eq.s32.totalorder %v283, %v342
        %vm947 = vcmp.eq.s32.totalorder %v283, %v346
        %vm948 = vcmp.eq.s32.totalorder %v283, %v350
        %vm949 = vcmp.eq.s32.totalorder %v283, %v354
        %vm950 = vcmp.eq.s32.totalorder %v284, %v330
        %vm951 = vcmp.eq.s32.totalorder %v284, %v334
        %vm952 = vcmp.eq.s32.totalorder %v284, %v338
        %vm953 = vcmp.eq.s32.totalorder %v284, %v342
        %vm954 = vcmp.eq.s32.totalorder %v284, %v346
        %vm955 = vcmp.eq.s32.totalorder %v284, %v350
        %vm956 = vcmp.eq.s32.totalorder %v284, %v354
        %vm957 = vcmp.eq.s32.totalorder %v285, %v330
        %vm958 = vcmp.eq.s32.totalorder %v285, %v334
        %vm959 = vcmp.eq.s32.totalorder %v285, %v338
        %vm960 = vcmp.eq.s32.totalorder %v285, %v342
        %vm961 = vcmp.eq.s32.totalorder %v285, %v346
        %vm962 = vcmp.eq.s32.totalorder %v285, %v350
        %vm963 = vcmp.eq.s32.totalorder %v285, %v354
        %vm964 = vcmp.eq.s32.totalorder %v286, %v330
        %vm965 = vcmp.eq.s32.totalorder %v286, %v334
        %vm966 = vcmp.eq.s32.totalorder %v286, %v338
        %vm967 = vcmp.eq.s32.totalorder %v286, %v342
        %vm968 = vcmp.eq.s32.totalorder %v286, %v346
        %vm969 = vcmp.eq.s32.totalorder %v286, %v350
        %vm970 = vcmp.eq.s32.totalorder %v286, %v354
        %vm971 = vcmp.eq.s32.totalorder %v287, %v330
        %vm972 = vcmp.eq.s32.totalorder %v287, %v334
        %vm973 = vcmp.eq.s32.totalorder %v287, %v338
        %vm974 = vcmp.eq.s32.totalorder %v287, %v342
        %vm975 = vcmp.eq.s32.totalorder %v287, %v346
        %vm976 = vcmp.eq.s32.totalorder %v287, %v350
        %vm977 = vcmp.eq.s32.totalorder %v287, %v354
        %vm978 = vcmp.eq.s32.totalorder %v288, %v330
        %vm979 = vcmp.eq.s32.totalorder %v288, %v334
        %vm980 = vcmp.eq.s32.totalorder %v288, %v338
        %vm981 = vcmp.eq.s32.totalorder %v288, %v342
        %vm982 = vcmp.eq.s32.totalorder %v288, %v346
        %vm983 = vcmp.eq.s32.totalorder %v288, %v350
        %vm984 = vcmp.eq.s32.totalorder %v288, %v354
        %vm985 = vcmp.eq.s32.totalorder %v289, %v330
        %vm986 = vcmp.eq.s32.totalorder %v289, %v334
        %vm987 = vcmp.eq.s32.totalorder %v289, %v338
        %vm988 = vcmp.eq.s32.totalorder %v289, %v342
        %vm989 = vcmp.eq.s32.totalorder %v289, %v346
        %vm990 = vcmp.eq.s32.totalorder %v289, %v350
        %vm991 = vcmp.eq.s32.totalorder %v289, %v354
        %vm992 = vcmp.eq.s32.totalorder %v290, %v330
        %vm993 = vcmp.eq.s32.totalorder %v290, %v334
        %vm994 = vcmp.eq.s32.totalorder %v290, %v338
        %vm995 = vcmp.eq.s32.totalorder %v290, %v342
        %vm996 = vcmp.eq.s32.totalorder %v290, %v346
        %vm997 = vcmp.eq.s32.totalorder %v290, %v350
        %vm998 = vcmp.eq.s32.totalorder %v290, %v354
        %vm999 = vcmp.eq.s32.totalorder %v291, %v330
        %vm1000 = vcmp.eq.s32.totalorder %v291, %v334
        %vm1001 = vcmp.eq.s32.totalorder %v291, %v338
        %vm1002 = vcmp.eq.s32.totalorder %v291, %v342
        %vm1003 = vcmp.eq.s32.totalorder %v291, %v346
        %vm1004 = vcmp.eq.s32.totalorder %v291, %v350
        %vm1005 = vcmp.eq.s32.totalorder %v291, %v354
        %vm1006 = vcmp.eq.s32.totalorder %v292, %v330
        %vm1007 = vcmp.eq.s32.totalorder %v292, %v334
        %vm1008 = vcmp.eq.s32.totalorder %v292, %v338
        %vm1009 = vcmp.eq.s32.totalorder %v292, %v342
        %vm1010 = vcmp.eq.s32.totalorder %v292, %v346
        %vm1011 = vcmp.eq.s32.totalorder %v292, %v350
        %vm1012 = vcmp.eq.s32.totalorder %v292, %v354
        %vm1013 = vcmp.eq.s32.totalorder %v293, %v330
        %vm1014 = vcmp.eq.s32.totalorder %v293, %v334
        %vm1015 = vcmp.eq.s32.totalorder %v293, %v338
        %vm1016 = vcmp.eq.s32.totalorder %v293, %v342
        %vm1017 = vcmp.eq.s32.totalorder %v293, %v346
        %vm1018 = vcmp.eq.s32.totalorder %v293, %v350
        %vm1019 = vcmp.eq.s32.totalorder %v293, %v354
        %vm1020 = vcmp.eq.s32.totalorder %v294, %v330
        %vm1021 = vcmp.eq.s32.totalorder %v294, %v334
        %vm1022 = vcmp.eq.s32.totalorder %v294, %v338
        %vm1023 = vcmp.eq.s32.totalorder %v294, %v342
        %vm1024 = vcmp.eq.s32.totalorder %v294, %v346
        %vm1025 = vcmp.eq.s32.totalorder %v294, %v350
        %vm1026 = vcmp.eq.s32.totalorder %v294, %v354
        %vm1027 = vcmp.eq.s32.totalorder %v295, %v330
        %vm1028 = vcmp.eq.s32.totalorder %v295, %v334
        %vm1029 = vcmp.eq.s32.totalorder %v295, %v338
        %vm1030 = vcmp.eq.s32.totalorder %v295, %v342
        %vm1031 = vcmp.eq.s32.totalorder %v295, %v346
        %vm1032 = vcmp.eq.s32.totalorder %v295, %v350
        %vm1033 = vcmp.eq.s32.totalorder %v295, %v354
        %vm1034 = vcmp.eq.s32.totalorder %v296, %v330
        %vm1035 = vcmp.eq.s32.totalorder %v296, %v334
        %vm1036 = vcmp.eq.s32.totalorder %v296, %v338
        %vm1037 = vcmp.eq.s32.totalorder %v296, %v342
        %vm1038 = vcmp.eq.s32.totalorder %v296, %v346
        %vm1039 = vcmp.eq.s32.totalorder %v296, %v350
        %vm1040 = vcmp.eq.s32.totalorder %v296, %v354
        %vm1041 = vcmp.eq.s32.totalorder %v297, %v330
        %vm1042 = vcmp.eq.s32.totalorder %v297, %v334
        %vm1043 = vcmp.eq.s32.totalorder %v297, %v338
        %vm1044 = vcmp.eq.s32.totalorder %v297, %v342
        %vm1045 = vcmp.eq.s32.totalorder %v297, %v346
        %vm1046 = vcmp.eq.s32.totalorder %v297, %v350
        %vm1047 = vcmp.eq.s32.totalorder %v297, %v354
        %vm1048 = vcmp.eq.s32.totalorder %v298, %v330
        %vm1049 = vcmp.eq.s32.totalorder %v298, %v334
        %vm1050 = vcmp.eq.s32.totalorder %v298, %v338
        %vm1051 = vcmp.eq.s32.totalorder %v298, %v342
        %vm1052 = vcmp.eq.s32.totalorder %v298, %v346
        %vm1053 = vcmp.eq.s32.totalorder %v298, %v350
        %vm1054 = vcmp.eq.s32.totalorder %v298, %v354
        %vm1055 = vcmp.eq.s32.totalorder %v299, %v330
        %vm1056 = vcmp.eq.s32.totalorder %v299, %v334
        %vm1057 = vcmp.eq.s32.totalorder %v299, %v338
        %vm1058 = vcmp.eq.s32.totalorder %v299, %v342
        %vm1059 = vcmp.eq.s32.totalorder %v299, %v346
        %vm1060 = vcmp.eq.s32.totalorder %v299, %v350
        %vm1061 = vcmp.eq.s32.totalorder %v299, %v354
        %vm1062 = vcmp.eq.s32.totalorder %v300, %v330
        %vm1063 = vcmp.eq.s32.totalorder %v300, %v334
        %vm1064 = vcmp.eq.s32.totalorder %v300, %v338
        %vm1065 = vcmp.eq.s32.totalorder %v300, %v342
        %vm1066 = vcmp.eq.s32.totalorder %v300, %v346
        %vm1067 = vcmp.eq.s32.totalorder %v300, %v350
        %vm1068 = vcmp.eq.s32.totalorder %v300, %v354
        %vm1069 = vcmp.eq.s32.totalorder %v301, %v330
        %vm1070 = vcmp.eq.s32.totalorder %v301, %v334
        %vm1071 = vcmp.eq.s32.totalorder %v301, %v338
        %vm1072 = vcmp.eq.s32.totalorder %v301, %v342
        %vm1073 = vcmp.eq.s32.totalorder %v301, %v346
        %vm1074 = vcmp.eq.s32.totalorder %v301, %v350
        %vm1075 = vcmp.eq.s32.totalorder %v301, %v354
        %vm1076 = vcmp.eq.s32.totalorder %v302, %v330
        %vm1077 = vcmp.eq.s32.totalorder %v302, %v334
        %vm1078 = vcmp.eq.s32.totalorder %v302, %v338
        %vm1079 = vcmp.eq.s32.totalorder %v302, %v342
        %vm1080 = vcmp.eq.s32.totalorder %v302, %v346
        %vm1081 = vcmp.eq.s32.totalorder %v302, %v350
        %vm1082 = vcmp.eq.s32.totalorder %v302, %v354
        %vm1083 = vcmp.eq.s32.totalorder %v303, %v330
        %vm1084 = vcmp.eq.s32.totalorder %v303, %v334
        %vm1085 = vcmp.eq.s32.totalorder %v303, %v338
        %vm1086 = vcmp.eq.s32.totalorder %v303, %v342
        %vm1087 = vcmp.eq.s32.totalorder %v303, %v346
        %vm1088 = vcmp.eq.s32.totalorder %v303, %v350
        %vm1089 = vcmp.eq.s32.totalorder %v303, %v354
        %vm1090 = vcmp.eq.s32.totalorder %v304, %v330
        %vm1091 = vcmp.eq.s32.totalorder %v304, %v334
        %vm1092 = vcmp.eq.s32.totalorder %v304, %v338
        %vm1093 = vcmp.eq.s32.totalorder %v304, %v342
        %vm1094 = vcmp.eq.s32.totalorder %v304, %v346
        %vm1095 = vcmp.eq.s32.totalorder %v304, %v350
        %vm1096 = vcmp.eq.s32.totalorder %v304, %v354
        %vm1097 = vcmp.eq.s32.totalorder %v305, %v330
        %vm1098 = vcmp.eq.s32.totalorder %v305, %v334
        %vm1099 = vcmp.eq.s32.totalorder %v305, %v338
        %vm1100 = vcmp.eq.s32.totalorder %v305, %v342
        %vm1101 = vcmp.eq.s32.totalorder %v305, %v346
        %vm1102 = vcmp.eq.s32.totalorder %v305, %v350
        %vm1103 = vcmp.eq.s32.totalorder %v305, %v354
        %vm1104 = vcmp.eq.s32.totalorder %v306, %v330
        %vm1105 = vcmp.eq.s32.totalorder %v306, %v334
        %vm1106 = vcmp.eq.s32.totalorder %v306, %v338
        %vm1107 = vcmp.eq.s32.totalorder %v306, %v342
        %vm1108 = vcmp.eq.s32.totalorder %v306, %v346
        %vm1109 = vcmp.eq.s32.totalorder %v306, %v350
        %vm1110 = vcmp.eq.s32.totalorder %v306, %v354
        %vm1111 = vcmp.eq.s32.totalorder %v307, %v330
        %vm1112 = vcmp.eq.s32.totalorder %v307, %v334
        %vm1113 = vcmp.eq.s32.totalorder %v307, %v338
        %vm1114 = vcmp.eq.s32.totalorder %v307, %v342
        %vm1115 = vcmp.eq.s32.totalorder %v307, %v346
        %vm1116 = vcmp.eq.s32.totalorder %v307, %v350
        %vm1117 = vcmp.eq.s32.totalorder %v307, %v354
        %vm1118 = vcmp.eq.s32.totalorder %v308, %v330
        %vm1119 = vcmp.eq.s32.totalorder %v308, %v334
        %vm1120 = vcmp.eq.s32.totalorder %v308, %v338
        %vm1121 = vcmp.eq.s32.totalorder %v308, %v342
        %vm1122 = vcmp.eq.s32.totalorder %v308, %v346
        %vm1123 = vcmp.eq.s32.totalorder %v308, %v350
        %vm1124 = vcmp.eq.s32.totalorder %v308, %v354
        %vm1125 = vcmp.eq.s32.totalorder %v309, %v330
        %vm1126 = vcmp.eq.s32.totalorder %v309, %v334
        %vm1127 = vcmp.eq.s32.totalorder %v309, %v338
        %vm1128 = vcmp.eq.s32.totalorder %v309, %v342
        %vm1129 = vcmp.eq.s32.totalorder %v309, %v346
        %vm1130 = vcmp.eq.s32.totalorder %v309, %v350
        %vm1131 = vcmp.eq.s32.totalorder %v309, %v354
        %vm1132 = vcmp.eq.s32.totalorder %v310, %v330
        %vm1133 = vcmp.eq.s32.totalorder %v310, %v334
        %vm1134 = vcmp.eq.s32.totalorder %v310, %v338
        %vm1135 = vcmp.eq.s32.totalorder %v310, %v342
        %vm1136 = vcmp.eq.s32.totalorder %v310, %v346
        %vm1137 = vcmp.eq.s32.totalorder %v310, %v350
        %vm1138 = vcmp.eq.s32.totalorder %v310, %v354
        %vm1139 = vcmp.eq.s32.totalorder %v311, %v330
        %vm1140 = vcmp.eq.s32.totalorder %v311, %v334
        %vm1141 = vcmp.eq.s32.totalorder %v311, %v338
        %vm1142 = vcmp.eq.s32.totalorder %v311, %v342
        %vm1143 = vcmp.eq.s32.totalorder %v311, %v346
        %vm1144 = vcmp.eq.s32.totalorder %v311, %v350
        %vm1145 = vcmp.eq.s32.totalorder %v311, %v354
        %vm1146 = vcmp.eq.s32.totalorder %v312, %v330
        %vm1147 = vcmp.eq.s32.totalorder %v312, %v334
        %vm1148 = vcmp.eq.s32.totalorder %v312, %v338
        %vm1149 = vcmp.eq.s32.totalorder %v312, %v342
        %vm1150 = vcmp.eq.s32.totalorder %v312, %v346
        %vm1151 = vcmp.eq.s32.totalorder %v312, %v350
        %vm1152 = vcmp.eq.s32.totalorder %v312, %v354
        %vm1153 = vcmp.eq.s32.totalorder %v313, %v330
        %vm1154 = vcmp.eq.s32.totalorder %v313, %v334
        %vm1155 = vcmp.eq.s32.totalorder %v313, %v338
        %vm1156 = vcmp.eq.s32.totalorder %v313, %v342
        %vm1157 = vcmp.eq.s32.totalorder %v313, %v346
        %vm1158 = vcmp.eq.s32.totalorder %v313, %v350
        %vm1159 = vcmp.eq.s32.totalorder %v313, %v354
        %vm1160 = vcmp.eq.s32.totalorder %v314, %v330
        %vm1161 = vcmp.eq.s32.totalorder %v314, %v334
        %vm1162 = vcmp.eq.s32.totalorder %v314, %v338
        %vm1163 = vcmp.eq.s32.totalorder %v314, %v342
        %vm1164 = vcmp.eq.s32.totalorder %v314, %v346
        %vm1165 = vcmp.eq.s32.totalorder %v314, %v350
        %vm1166 = vcmp.eq.s32.totalorder %v314, %v354
        %vm1167 = vcmp.eq.s32.totalorder %v315, %v330
        %vm1168 = vcmp.eq.s32.totalorder %v315, %v334
        %vm1169 = vcmp.eq.s32.totalorder %v315, %v338
        %vm1170 = vcmp.eq.s32.totalorder %v315, %v342
        %vm1171 = vcmp.eq.s32.totalorder %v315, %v346
        %vm1172 = vcmp.eq.s32.totalorder %v315, %v350
        %vm1173 = vcmp.eq.s32.totalorder %v315, %v354
        %vm1174 = vcmp.eq.s32.totalorder %v316, %v330
        %vm1175 = vcmp.eq.s32.totalorder %v316, %v334
        %vm1176 = vcmp.eq.s32.totalorder %v316, %v338
        %vm1177 = vcmp.eq.s32.totalorder %v316, %v342
        %vm1178 = vcmp.eq.s32.totalorder %v316, %v346
        %vm1179 = vcmp.eq.s32.totalorder %v316, %v350
        %vm1180 = vcmp.eq.s32.totalorder %v316, %v354
        %vm1181 = vcmp.eq.s32.totalorder %v317, %v330
        %vm1182 = vcmp.eq.s32.totalorder %v317, %v334
        %vm1183 = vcmp.eq.s32.totalorder %v317, %v338
        %vm1184 = vcmp.eq.s32.totalorder %v317, %v342
        %vm1185 = vcmp.eq.s32.totalorder %v317, %v346
        %vm1186 = vcmp.eq.s32.totalorder %v317, %v350
        %vm1187 = vcmp.eq.s32.totalorder %v317, %v354
        %vm1188 = vcmp.eq.s32.totalorder %v318, %v330
        %vm1189 = vcmp.eq.s32.totalorder %v318, %v334
        %vm1190 = vcmp.eq.s32.totalorder %v318, %v338
        %vm1191 = vcmp.eq.s32.totalorder %v318, %v342
        %vm1192 = vcmp.eq.s32.totalorder %v318, %v346
        %vm1193 = vcmp.eq.s32.totalorder %v318, %v350
        %vm1194 = vcmp.eq.s32.totalorder %v318, %v354
        %vm1195 = vcmp.eq.s32.totalorder %v319, %v330
        %vm1196 = vcmp.eq.s32.totalorder %v319, %v334
        %vm1197 = vcmp.eq.s32.totalorder %v319, %v338
        %vm1198 = vcmp.eq.s32.totalorder %v319, %v342
        %vm1199 = vcmp.eq.s32.totalorder %v319, %v346
        %vm1200 = vcmp.eq.s32.totalorder %v319, %v350
        %vm1201 = vcmp.eq.s32.totalorder %v319, %v354
        %vm1202 = vcmp.eq.s32.totalorder %v320, %v330
        %vm1203 = vcmp.eq.s32.totalorder %v320, %v334
        %vm1204 = vcmp.eq.s32.totalorder %v320, %v338
        %vm1205 = vcmp.eq.s32.totalorder %v320, %v342
        %vm1206 = vcmp.eq.s32.totalorder %v320, %v346
        %vm1207 = vcmp.eq.s32.totalorder %v320, %v350
        %vm1208 = vcmp.eq.s32.totalorder %v320, %v354
        %vm1209 = vcmp.eq.s32.totalorder %v321, %v330
        %vm1210 = vcmp.eq.s32.totalorder %v321, %v334
        %vm1211 = vcmp.eq.s32.totalorder %v321, %v338
        %vm1212 = vcmp.eq.s32.totalorder %v321, %v342
        %vm1213 = vcmp.eq.s32.totalorder %v321, %v346
        %vm1214 = vcmp.eq.s32.totalorder %v321, %v350
        %vm1215 = vcmp.eq.s32.totalorder %v321, %v354
        %vm1216 = vcmp.eq.s32.totalorder %v322, %v330
        %vm1217 = vcmp.eq.s32.totalorder %v322, %v334
        %vm1218 = vcmp.eq.s32.totalorder %v322, %v338
        %vm1219 = vcmp.eq.s32.totalorder %v322, %v342
        %vm1220 = vcmp.eq.s32.totalorder %v322, %v346
        %vm1221 = vcmp.eq.s32.totalorder %v322, %v350
        %vm1222 = vcmp.eq.s32.totalorder %v322, %v354
        %vm1223 = vcmp.eq.s32.totalorder %v323, %v330
        %vm1224 = vcmp.eq.s32.totalorder %v323, %v334
        %vm1225 = vcmp.eq.s32.totalorder %v323, %v338
        %vm1226 = vcmp.eq.s32.totalorder %v323, %v342
        %vm1227 = vcmp.eq.s32.totalorder %v323, %v346
        %vm1228 = vcmp.eq.s32.totalorder %v323, %v350
        %vm1229 = vcmp.eq.s32.totalorder %v323, %v354
        %vm1230 = vcmp.eq.s32.totalorder %v324, %v330
        %vm1231 = vcmp.eq.s32.totalorder %v324, %v334
        %vm1232 = vcmp.eq.s32.totalorder %v324, %v338
        %vm1233 = vcmp.eq.s32.totalorder %v324, %v342
        %vm1234 = vcmp.eq.s32.totalorder %v324, %v346
        %vm1235 = vcmp.eq.s32.totalorder %v324, %v350
        %vm1236 = vcmp.eq.s32.totalorder %v324, %v354
        %vm1237 = vcmp.eq.s32.totalorder %v325, %v330
        %vm1238 = vcmp.eq.s32.totalorder %v325, %v334
        %vm1239 = vcmp.eq.s32.totalorder %v325, %v338
        %vm1240 = vcmp.eq.s32.totalorder %v325, %v342
        %vm1241 = vcmp.eq.s32.totalorder %v325, %v346
        %vm1242 = vcmp.eq.s32.totalorder %v325, %v350
        %vm1243 = vcmp.eq.s32.totalorder %v325, %v354
        %vm1244 = vcmp.eq.s32.totalorder %v326, %v330
        %vm1245 = vcmp.eq.s32.totalorder %v326, %v334
        %vm1246 = vcmp.eq.s32.totalorder %v326, %v338
        %vm1247 = vcmp.eq.s32.totalorder %v326, %v342
        %vm1248 = vcmp.eq.s32.totalorder %v326, %v346
        %vm1249 = vcmp.eq.s32.totalorder %v326, %v350
        %vm1250 = vcmp.eq.s32.totalorder %v326, %v354
        %v1251 = vsel %vm355, 1, 0
        %v1252 = vsel %vm356, 1, 0
        %v1253 = vsel %vm357, 1, 0
        %v1254 = vsel %vm358, 1, 0
        %v1255 = vsel %vm359, 1, 0
        %v1256 = vsel %vm360, 1, 0
        %v1257 = vsel %vm361, 1, 0
        %v1258 = vsel %vm362, 1, 0
        %v1259 = vsel %vm363, 1, 0
        %v1260 = vsel %vm364, 1, 0
        %v1261 = vsel %vm365, 1, 0
        %v1262 = vsel %vm366, 1, 0
        %v1263 = vsel %vm367, 1, 0
        %v1264 = vsel %vm368, 1, 0
        %v1265 = vsel %vm369, 1, 0
        %v1266 = vsel %vm370, 1, 0
        %v1267 = vsel %vm371, 1, 0
        %v1268 = vsel %vm372, 1, 0
        %v1269 = vsel %vm373, 1, 0
        %v1270 = vsel %vm374, 1, 0
        %v1271 = vsel %vm375, 1, 0
        %v1272 = vsel %vm376, 1, 0
        %v1273 = vsel %vm377, 1, 0
        %v1274 = vsel %vm378, 1, 0
        %v1275 = vsel %vm379, 1, 0
        %v1276 = vsel %vm380, 1, 0
        %v1277 = vsel %vm381, 1, 0
        %v1278 = vsel %vm382, 1, 0
        %v1279 = vsel %vm383, 1, 0
        %v1280 = vsel %vm384, 1, 0
        %v1281 = vsel %vm385, 1, 0
        %v1282 = vsel %vm386, 1, 0
        %v1283 = vsel %vm387, 1, 0
        %v1284 = vsel %vm388, 1, 0
        %v1285 = vsel %vm389, 1, 0
        %v1286 = vsel %vm390, 1, 0
        %v1287 = vsel %vm391, 1, 0
        %v1288 = vsel %vm392, 1, 0
        %v1289 = vsel %vm393, 1, 0
        %v1290 = vsel %vm394, 1, 0
        %v1291 = vsel %vm395, 1, 0
        %v1292 = vsel %vm396, 1, 0
        %v1293 = vsel %vm397, 1, 0
        %v1294 = vsel %vm398, 1, 0
        %v1295 = vsel %vm399, 1, 0
        %v1296 = vsel %vm400, 1, 0
        %v1297 = vsel %vm401, 1, 0
        %v1298 = vsel %vm402, 1, 0
        %v1299 = vsel %vm403, 1, 0
        %v1300 = vsel %vm404, 1, 0
        %v1301 = vsel %vm405, 1, 0
        %v1302 = vsel %vm406, 1, 0
        %v1303 = vsel %vm407, 1, 0
        %v1304 = vsel %vm408, 1, 0
        %v1305 = vsel %vm409, 1, 0
        %v1306 = vsel %vm410, 1, 0
        %v1307 = vsel %vm411, 1, 0
        %v1308 = vsel %vm412, 1, 0
        %v1309 = vsel %vm413, 1, 0
        %v1310 = vsel %vm414, 1, 0
        %v1311 = vsel %vm415, 1, 0
        %v1312 = vsel %vm416, 1, 0
        %v1313 = vsel %vm417, 1, 0
        %v1314 = vsel %vm418, 1, 0
        %v1315 = vsel %vm419, 1, 0
        %v1316 = vsel %vm420, 1, 0
        %v1317 = vsel %vm421, 1, 0
        %v1318 = vsel %vm422, 1, 0
        %v1319 = vsel %vm423, 1, 0
        %v1320 = vsel %vm424, 1, 0
        %v1321 = vsel %vm425, 1, 0
        %v1322 = vsel %vm426, 1, 0
        %v1323 = vsel %vm427, 1, 0
        %v1324 = vsel %vm428, 1, 0
        %v1325 = vsel %vm429, 1, 0
        %v1326 = vsel %vm430, 1, 0
        %v1327 = vsel %vm431, 1, 0
        %v1328 = vsel %vm432, 1, 0
        %v1329 = vsel %vm433, 1, 0
        %v1330 = vsel %vm434, 1, 0
        %v1331 = vsel %vm435, 1, 0
        %v1332 = vsel %vm436, 1, 0
        %v1333 = vsel %vm437, 1, 0
        %v1334 = vsel %vm438, 1, 0
        %v1335 = vsel %vm439, 1, 0
        %v1336 = vsel %vm440, 1, 0
        %v1337 = vsel %vm441, 1, 0
        %v1338 = vsel %vm442, 1, 0
        %v1339 = vsel %vm443, 1, 0
        %v1340 = vsel %vm444, 1, 0
        %v1341 = vsel %vm445, 1, 0
        %v1342 = vsel %vm446, 1, 0
        %v1343 = vsel %vm447, 1, 0
        %v1344 = vsel %vm448, 1, 0
        %v1345 = vsel %vm449, 1, 0
        %v1346 = vsel %vm450, 1, 0
        %v1347 = vsel %vm451, 1, 0
        %v1348 = vsel %vm452, 1, 0
        %v1349 = vsel %vm453, 1, 0
        %v1350 = vsel %vm454, 1, 0
        %v1351 = vsel %vm455, 1, 0
        %v1352 = vsel %vm456, 1, 0
        %v1353 = vsel %vm457, 1, 0
        %v1354 = vsel %vm458, 1, 0
        %v1355 = vsel %vm459, 1, 0
        %v1356 = vsel %vm460, 1, 0
        %v1357 = vsel %vm461, 1, 0
        %v1358 = vsel %vm462, 1, 0
        %v1359 = vsel %vm463, 1, 0
        %v1360 = vsel %vm464, 1, 0
        %v1361 = vsel %vm465, 1, 0
        %v1362 = vsel %vm466, 1, 0
        %v1363 = vsel %vm467, 1, 0
        %v1364 = vsel %vm468, 1, 0
        %v1365 = vsel %vm469, 1, 0
        %v1366 = vsel %vm470, 1, 0
        %v1367 = vsel %vm471, 1, 0
        %v1368 = vsel %vm472, 1, 0
        %v1369 = vsel %vm473, 1, 0
        %v1370 = vsel %vm474, 1, 0
        %v1371 = vsel %vm475, 1, 0
        %v1372 = vsel %vm476, 1, 0
        %v1373 = vsel %vm477, 1, 0
        %v1374 = vsel %vm478, 1, 0
        %v1375 = vsel %vm479, 1, 0
        %v1376 = vsel %vm480, 1, 0
        %v1377 = vsel %vm481, 1, 0
        %v1378 = vsel %vm482, 1, 0
        %v1379 = vsel %vm483, 1, 0
        %v1380 = vsel %vm484, 1, 0
        %v1381 = vsel %vm485, 1, 0
        %v1382 = vsel %vm486, 1, 0
        %v1383 = vsel %vm487, 1, 0
        %v1384 = vsel %vm488, 1, 0
        %v1385 = vsel %vm489, 1, 0
        %v1386 = vsel %vm490, 1, 0
        %v1387 = vsel %vm491, 1, 0
        %v1388 = vsel %vm492, 1, 0
        %v1389 = vsel %vm493, 1, 0
        %v1390 = vsel %vm494, 1, 0
        %v1391 = vsel %vm495, 1, 0
        %v1392 = vsel %vm496, 1, 0
        %v1393 = vsel %vm497, 1, 0
        %v1394 = vsel %vm498, 1, 0
        %v1395 = vsel %vm499, 1, 0
        %v1396 = vsel %vm500, 1, 0
        %v1397 = vsel %vm501, 1, 0
        %v1398 = vsel %vm502, 1, 0
        %v1399 = vsel %vm503, 1, 0
        %v1400 = vsel %vm504, 1, 0
        %v1401 = vsel %vm505, 1, 0
        %v1402 = vsel %vm506, 1, 0
        %v1403 = vsel %vm507, 1, 0
        %v1404 = vsel %vm508, 1, 0
        %v1405 = vsel %vm509, 1, 0
        %v1406 = vsel %vm510, 1, 0
        %v1407 = vsel %vm511, 1, 0
        %v1408 = vsel %vm512, 1, 0
        %v1409 = vsel %vm513, 1, 0
        %v1410 = vsel %vm514, 1, 0
        %v1411 = vsel %vm515, 1, 0
        %v1412 = vsel %vm516, 1, 0
        %v1413 = vsel %vm517, 1, 0
        %v1414 = vsel %vm518, 1, 0
        %v1415 = vsel %vm519, 1, 0
        %v1416 = vsel %vm520, 1, 0
        %v1417 = vsel %vm521, 1, 0
        %v1418 = vsel %vm522, 1, 0
        %v1419 = vsel %vm523, 1, 0
        %v1420 = vsel %vm524, 1, 0
        %v1421 = vsel %vm525, 1, 0
        %v1422 = vsel %vm526, 1, 0
        %v1423 = vsel %vm527, 1, 0
        %v1424 = vsel %vm528, 1, 0
        %v1425 = vsel %vm529, 1, 0
        %v1426 = vsel %vm530, 1, 0
        %v1427 = vsel %vm531, 1, 0
        %v1428 = vsel %vm532, 1, 0
        %v1429 = vsel %vm533, 1, 0
        %v1430 = vsel %vm534, 1, 0
        %v1431 = vsel %vm535, 1, 0
        %v1432 = vsel %vm536, 1, 0
        %v1433 = vsel %vm537, 1, 0
        %v1434 = vsel %vm538, 1, 0
        %v1435 = vsel %vm539, 1, 0
        %v1436 = vsel %vm540, 1, 0
        %v1437 = vsel %vm541, 1, 0
        %v1438 = vsel %vm542, 1, 0
        %v1439 = vsel %vm543, 1, 0
        %v1440 = vsel %vm544, 1, 0
        %v1441 = vsel %vm545, 1, 0
        %v1442 = vsel %vm546, 1, 0
        %v1443 = vsel %vm547, 1, 0
        %v1444 = vsel %vm548, 1, 0
        %v1445 = vsel %vm549, 1, 0
        %v1446 = vsel %vm550, 1, 0
        %v1447 = vsel %vm551, 1, 0
        %v1448 = vsel %vm552, 1, 0
        %v1449 = vsel %vm553, 1, 0
        %v1450 = vsel %vm554, 1, 0
        %v1451 = vsel %vm555, 1, 0
        %v1452 = vsel %vm556, 1, 0
        %v1453 = vsel %vm557, 1, 0
        %v1454 = vsel %vm558, 1, 0
        %v1455 = vsel %vm559, 1, 0
        %v1456 = vsel %vm560, 1, 0
        %v1457 = vsel %vm561, 1, 0
        %v1458 = vsel %vm562, 1, 0
        %v1459 = vsel %vm563, 1, 0
        %v1460 = vsel %vm564, 1, 0
        %v1461 = vsel %vm565, 1, 0
        %v1462 = vsel %vm566, 1, 0
        %v1463 = vsel %vm567, 1, 0
        %v1464 = vsel %vm568, 1, 0
        %v1465 = vsel %vm569, 1, 0
        %v1466 = vsel %vm570, 1, 0
        %v1467 = vsel %vm571, 1, 0
        %v1468 = vsel %vm572, 1, 0
        %v1469 = vsel %vm573, 1, 0
        %v1470 = vsel %vm574, 1, 0
        %v1471 = vsel %vm575, 1, 0
        %v1472 = vsel %vm576, 1, 0
        %v1473 = vsel %vm577, 1, 0
        %v1474 = vsel %vm578, 1, 0
        %v1475 = vsel %vm579, 1, 0
        %v1476 = vsel %vm580, 1, 0
        %v1477 = vsel %vm581, 1, 0
        %v1478 = vsel %vm582, 1, 0
        %v1479 = vsel %vm583, 1, 0
        %v1480 = vsel %vm584, 1, 0
        %v1481 = vsel %vm585, 1, 0
        %v1482 = vsel %vm586, 1, 0
        %v1483 = vsel %vm587, 1, 0
        %v1484 = vsel %vm588, 1, 0
        %v1485 = vsel %vm589, 1, 0
        %v1486 = vsel %vm590, 1, 0
        %v1487 = vsel %vm591, 1, 0
        %v1488 = vsel %vm592, 1, 0
        %v1489 = vsel %vm593, 1, 0
        %v1490 = vsel %vm594, 1, 0
        %v1491 = vsel %vm595, 1, 0
        %v1492 = vsel %vm596, 1, 0
        %v1493 = vsel %vm597, 1, 0
        %v1494 = vsel %vm598, 1, 0
        %v1495 = vsel %vm599, 1, 0
        %v1496 = vsel %vm600, 1, 0
        %v1497 = vsel %vm601, 1, 0
        %v1498 = vsel %vm602, 1, 0
        %v1499 = vsel %vm603, 1, 0
        %v1500 = vsel %vm604, 1, 0
        %v1501 = vsel %vm605, 1, 0
        %v1502 = vsel %vm606, 1, 0
        %v1503 = vsel %vm607, 1, 0
        %v1504 = vsel %vm608, 1, 0
        %v1505 = vsel %vm609, 1, 0
        %v1506 = vsel %vm610, 1, 0
        %v1507 = vsel %vm611, 1, 0
        %v1508 = vsel %vm612, 1, 0
        %v1509 = vsel %vm613, 1, 0
        %v1510 = vsel %vm614, 1, 0
        %v1511 = vsel %vm615, 1, 0
        %v1512 = vsel %vm616, 1, 0
        %v1513 = vsel %vm617, 1, 0
        %v1514 = vsel %vm618, 1, 0
        %v1515 = vsel %vm619, 1, 0
        %v1516 = vsel %vm620, 1, 0
        %v1517 = vsel %vm621, 1, 0
        %v1518 = vsel %vm622, 1, 0
        %v1519 = vsel %vm623, 1, 0
        %v1520 = vsel %vm624, 1, 0
        %v1521 = vsel %vm625, 1, 0
        %v1522 = vsel %vm626, 1, 0
        %v1523 = vsel %vm627, 1, 0
        %v1524 = vsel %vm628, 1, 0
        %v1525 = vsel %vm629, 1, 0
        %v1526 = vsel %vm630, 1, 0
        %v1527 = vsel %vm631, 1, 0
        %v1528 = vsel %vm632, 1, 0
        %v1529 = vsel %vm633, 1, 0
        %v1530 = vsel %vm634, 1, 0
        %v1531 = vsel %vm635, 1, 0
        %v1532 = vsel %vm636, 1, 0
        %v1533 = vsel %vm637, 1, 0
        %v1534 = vsel %vm638, 1, 0
        %v1535 = vsel %vm639, 1, 0
        %v1536 = vsel %vm640, 1, 0
        %v1537 = vsel %vm641, 1, 0
        %v1538 = vsel %vm642, 1, 0
        %v1539 = vsel %vm643, 1, 0
        %v1540 = vsel %vm644, 1, 0
        %v1541 = vsel %vm645, 1, 0
        %v1542 = vsel %vm646, 1, 0
        %v1543 = vsel %vm647, 1, 0
        %v1544 = vsel %vm648, 1, 0
        %v1545 = vsel %vm649, 1, 0
        %v1546 = vsel %vm650, 1, 0
        %v1547 = vsel %vm651, 1, 0
        %v1548 = vsel %vm652, 1, 0
        %v1549 = vsel %vm653, 1, 0
        %v1550 = vsel %vm654, 1, 0
        %v1551 = vsel %vm655, 1, 0
        %v1552 = vsel %vm656, 1, 0
        %v1553 = vsel %vm657, 1, 0
        %v1554 = vsel %vm658, 1, 0
        %v1555 = vsel %vm659, 1, 0
        %v1556 = vsel %vm660, 1, 0
        %v1557 = vsel %vm661, 1, 0
        %v1558 = vsel %vm662, 1, 0
        %v1559 = vsel %vm663, 1, 0
        %v1560 = vsel %vm664, 1, 0
        %v1561 = vsel %vm665, 1, 0
        %v1562 = vsel %vm666, 1, 0
        %v1563 = vsel %vm667, 1, 0
        %v1564 = vsel %vm668, 1, 0
        %v1565 = vsel %vm669, 1, 0
        %v1566 = vsel %vm670, 1, 0
        %v1567 = vsel %vm671, 1, 0
        %v1568 = vsel %vm672, 1, 0
        %v1569 = vsel %vm673, 1, 0
        %v1570 = vsel %vm674, 1, 0
        %v1571 = vsel %vm675, 1, 0
        %v1572 = vsel %vm676, 1, 0
        %v1573 = vsel %vm677, 1, 0
        %v1574 = vsel %vm678, 1, 0
        %v1575 = vsel %vm679, 1, 0
        %v1576 = vsel %vm680, 1, 0
        %v1577 = vsel %vm681, 1, 0
        %v1578 = vsel %vm682, 1, 0
        %v1579 = vsel %vm683, 1, 0
        %v1580 = vsel %vm684, 1, 0
        %v1581 = vsel %vm685, 1, 0
        %v1582 = vsel %vm686, 1, 0
        %v1583 = vsel %vm687, 1, 0
        %v1584 = vsel %vm688, 1, 0
        %v1585 = vsel %vm689, 1, 0
        %v1586 = vsel %vm690, 1, 0
        %v1587 = vsel %vm691, 1, 0
        %v1588 = vsel %vm692, 1, 0
        %v1589 = vsel %vm693, 1, 0
        %v1590 = vsel %vm694, 1, 0
        %v1591 = vsel %vm695, 1, 0
        %v1592 = vsel %vm696, 1, 0
        %v1593 = vsel %vm697, 1, 0
        %v1594 = vsel %vm698, 1, 0
        %v1595 = vsel %vm699, 1, 0
        %v1596 = vsel %vm700, 1, 0
        %v1597 = vsel %vm701, 1, 0
        %v1598 = vsel %vm702, 1, 0
        %v1599 = vsel %vm703, 1, 0
        %v1600 = vsel %vm704, 1, 0
        %v1601 = vsel %vm705, 1, 0
        %v1602 = vsel %vm706, 1, 0
        %v1603 = vsel %vm707, 1, 0
        %v1604 = vsel %vm708, 1, 0
        %v1605 = vsel %vm709, 1, 0
        %v1606 = vsel %vm710, 1, 0
        %v1607 = vsel %vm711, 1, 0
        %v1608 = vsel %vm712, 1, 0
        %v1609 = vsel %vm713, 1, 0
        %v1610 = vsel %vm714, 1, 0
        %v1611 = vsel %vm715, 1, 0
        %v1612 = vsel %vm716, 1, 0
        %v1613 = vsel %vm717, 1, 0
        %v1614 = vsel %vm718, 1, 0
        %v1615 = vsel %vm719, 1, 0
        %v1616 = vsel %vm720, 1, 0
        %v1617 = vsel %vm721, 1, 0
        %v1618 = vsel %vm722, 1, 0
        %v1619 = vsel %vm723, 1, 0
        %v1620 = vsel %vm724, 1, 0
        %v1621 = vsel %vm725, 1, 0
        %v1622 = vsel %vm726, 1, 0
        %v1623 = vsel %vm727, 1, 0
        %v1624 = vsel %vm728, 1, 0
        %v1625 = vsel %vm729, 1, 0
        %v1626 = vsel %vm730, 1, 0
        %v1627 = vsel %vm731, 1, 0
        %v1628 = vsel %vm732, 1, 0
        %v1629 = vsel %vm733, 1, 0
        %v1630 = vsel %vm734, 1, 0
        %v1631 = vsel %vm735, 1, 0
        %v1632 = vsel %vm736, 1, 0
        %v1633 = vsel %vm737, 1, 0
        %v1634 = vsel %vm738, 1, 0
        %v1635 = vsel %vm739, 1, 0
        %v1636 = vsel %vm740, 1, 0
        %v1637 = vsel %vm741, 1, 0
        %v1638 = vsel %vm742, 1, 0
        %v1639 = vsel %vm743, 1, 0
        %v1640 = vsel %vm744, 1, 0
        %v1641 = vsel %vm745, 1, 0
        %v1642 = vsel %vm746, 1, 0
        %v1643 = vsel %vm747, 1, 0
        %v1644 = vsel %vm748, 1, 0
        %v1645 = vsel %vm749, 1, 0
        %v1646 = vsel %vm750, 1, 0
        %v1647 = vsel %vm751, 1, 0
        %v1648 = vsel %vm752, 1, 0
        %v1649 = vsel %vm753, 1, 0
        %v1650 = vsel %vm754, 1, 0
        %v1651 = vsel %vm755, 1, 0
        %v1652 = vsel %vm756, 1, 0
        %v1653 = vsel %vm757, 1, 0
        %v1654 = vsel %vm758, 1, 0
        %v1655 = vsel %vm759, 1, 0
        %v1656 = vsel %vm760, 1, 0
        %v1657 = vsel %vm761, 1, 0
        %v1658 = vsel %vm762, 1, 0
        %v1659 = vsel %vm763, 1, 0
        %v1660 = vsel %vm764, 1, 0
        %v1661 = vsel %vm765, 1, 0
        %v1662 = vsel %vm766, 1, 0
        %v1663 = vsel %vm767, 1, 0
        %v1664 = vsel %vm768, 1, 0
        %v1665 = vsel %vm769, 1, 0
        %v1666 = vsel %vm770, 1, 0
        %v1667 = vsel %vm771, 1, 0
        %v1668 = vsel %vm772, 1, 0
        %v1669 = vsel %vm773, 1, 0
        %v1670 = vsel %vm774, 1, 0
        %v1671 = vsel %vm775, 1, 0
        %v1672 = vsel %vm776, 1, 0
        %v1673 = vsel %vm777, 1, 0
        %v1674 = vsel %vm778, 1, 0
        %v1675 = vsel %vm779, 1, 0
        %v1676 = vsel %vm780, 1, 0
        %v1677 = vsel %vm781, 1, 0
        %v1678 = vsel %vm782, 1, 0
        %v1679 = vsel %vm783, 1, 0
        %v1680 = vsel %vm784, 1, 0
        %v1681 = vsel %vm785, 1, 0
        %v1682 = vsel %vm786, 1, 0
        %v1683 = vsel %vm787, 1, 0
        %v1684 = vsel %vm788, 1, 0
        %v1685 = vsel %vm789, 1, 0
        %v1686 = vsel %vm790, 1, 0
        %v1687 = vsel %vm791, 1, 0
        %v1688 = vsel %vm792, 1, 0
        %v1689 = vsel %vm793, 1, 0
        %v1690 = vsel %vm794, 1, 0
        %v1691 = vsel %vm795, 1, 0
        %v1692 = vsel %vm796, 1, 0
        %v1693 = vsel %vm797, 1, 0
        %v1694 = vsel %vm798, 1, 0
        %v1695 = vsel %vm799, 1, 0
        %v1696 = vsel %vm800, 1, 0
        %v1697 = vsel %vm801, 1, 0
        %v1698 = vsel %vm802, 1, 0
        %v1699 = vsel %vm803, 1, 0
        %v1700 = vsel %vm804, 1, 0
        %v1701 = vsel %vm805, 1, 0
        %v1702 = vsel %vm806, 1, 0
        %v1703 = vsel %vm807, 1, 0
        %v1704 = vsel %vm808, 1, 0
        %v1705 = vsel %vm809, 1, 0
        %v1706 = vsel %vm810, 1, 0
        %v1707 = vsel %vm811, 1, 0
        %v1708 = vsel %vm812, 1, 0
        %v1709 = vsel %vm813, 1, 0
        %v1710 = vsel %vm814, 1, 0
        %v1711 = vsel %vm815, 1, 0
        %v1712 = vsel %vm816, 1, 0
        %v1713 = vsel %vm817, 1, 0
        %v1714 = vsel %vm818, 1, 0
        %v1715 = vsel %vm819, 1, 0
        %v1716 = vsel %vm820, 1, 0
        %v1717 = vsel %vm821, 1, 0
        %v1718 = vsel %vm822, 1, 0
        %v1719 = vsel %vm823, 1, 0
        %v1720 = vsel %vm824, 1, 0
        %v1721 = vsel %vm825, 1, 0
        %v1722 = vsel %vm826, 1, 0
        %v1723 = vsel %vm827, 1, 0
        %v1724 = vsel %vm828, 1, 0
        %v1725 = vsel %vm829, 1, 0
        %v1726 = vsel %vm830, 1, 0
        %v1727 = vsel %vm831, 1, 0
        %v1728 = vsel %vm832, 1, 0
        %v1729 = vsel %vm833, 1, 0
        %v1730 = vsel %vm834, 1, 0
        %v1731 = vsel %vm835, 1, 0
        %v1732 = vsel %vm836, 1, 0
        %v1733 = vsel %vm837, 1, 0
        %v1734 = vsel %vm838, 1, 0
        %v1735 = vsel %vm839, 1, 0
        %v1736 = vsel %vm840, 1, 0
        %v1737 = vsel %vm841, 1, 0
        %v1738 = vsel %vm842, 1, 0
        %v1739 = vsel %vm843, 1, 0
        %v1740 = vsel %vm844, 1, 0
        %v1741 = vsel %vm845, 1, 0
        %v1742 = vsel %vm846, 1, 0
        %v1743 = vsel %vm847, 1, 0
        %v1744 = vsel %vm848, 1, 0
        %v1745 = vsel %vm849, 1, 0
        %v1746 = vsel %vm850, 1, 0
        %v1747 = vsel %vm851, 1, 0
        %v1748 = vsel %vm852, 1, 0
        %v1749 = vsel %vm853, 1, 0
        %v1750 = vsel %vm854, 1, 0
        %v1751 = vsel %vm855, 1, 0
        %v1752 = vsel %vm856, 1, 0
        %v1753 = vsel %vm857, 1, 0
        %v1754 = vsel %vm858, 1, 0
        %v1755 = vsel %vm859, 1, 0
        %v1756 = vsel %vm860, 1, 0
        %v1757 = vsel %vm861, 1, 0
        %v1758 = vsel %vm862, 1, 0
        %v1759 = vsel %vm863, 1, 0
        %v1760 = vsel %vm864, 1, 0
        %v1761 = vsel %vm865, 1, 0
        %v1762 = vsel %vm866, 1, 0
        %v1763 = vsel %vm867, 1, 0
        %v1764 = vsel %vm868, 1, 0
        %v1765 = vsel %vm869, 1, 0
        %v1766 = vsel %vm870, 1, 0
        %v1767 = vsel %vm871, 1, 0
        %v1768 = vsel %vm872, 1, 0
        %v1769 = vsel %vm873, 1, 0
        %v1770 = vsel %vm874, 1, 0
        %v1771 = vsel %vm875, 1, 0
        %v1772 = vsel %vm876, 1, 0
        %v1773 = vsel %vm877, 1, 0
        %v1774 = vsel %vm878, 1, 0
        %v1775 = vsel %vm879, 1, 0
        %v1776 = vsel %vm880, 1, 0
        %v1777 = vsel %vm881, 1, 0
        %v1778 = vsel %vm882, 1, 0
        %v1779 = vsel %vm883, 1, 0
        %v1780 = vsel %vm884, 1, 0
        %v1781 = vsel %vm885, 1, 0
        %v1782 = vsel %vm886, 1, 0
        %v1783 = vsel %vm887, 1, 0
        %v1784 = vsel %vm888, 1, 0
        %v1785 = vsel %vm889, 1, 0
        %v1786 = vsel %vm890, 1, 0
        %v1787 = vsel %vm891, 1, 0
        %v1788 = vsel %vm892, 1, 0
        %v1789 = vsel %vm893, 1, 0
        %v1790 = vsel %vm894, 1, 0
        %v1791 = vsel %vm895, 1, 0
        %v1792 = vsel %vm896, 1, 0
        %v1793 = vsel %vm897, 1, 0
        %v1794 = vsel %vm898, 1, 0
        %v1795 = vsel %vm899, 1, 0
        %v1796 = vsel %vm900, 1, 0
        %v1797 = vsel %vm901, 1, 0
        %v1798 = vsel %vm902, 1, 0
        %v1799 = vsel %vm903, 1, 0
        %v1800 = vsel %vm904, 1, 0
        %v1801 = vsel %vm905, 1, 0
        %v1802 = vsel %vm906, 1, 0
        %v1803 = vsel %vm907, 1, 0
        %v1804 = vsel %vm908, 1, 0
        %v1805 = vsel %vm909, 1, 0
        %v1806 = vsel %vm910, 1, 0
        %v1807 = vsel %vm911, 1, 0
        %v1808 = vsel %vm912, 1, 0
        %v1809 = vsel %vm913, 1, 0
        %v1810 = vsel %vm914, 1, 0
        %v1811 = vsel %vm915, 1, 0
        %v1812 = vsel %vm916, 1, 0
        %v1813 = vsel %vm917, 1, 0
        %v1814 = vsel %vm918, 1, 0
        %v1815 = vsel %vm919, 1, 0
        %v1816 = vsel %vm920, 1, 0
        %v1817 = vsel %vm921, 1, 0
        %v1818 = vsel %vm922, 1, 0
        %v1819 = vsel %vm923, 1, 0
        %v1820 = vsel %vm924, 1, 0
        %v1821 = vsel %vm925, 1, 0
        %v1822 = vsel %vm926, 1, 0
        %v1823 = vsel %vm927, 1, 0
        %v1824 = vsel %vm928, 1, 0
        %v1825 = vsel %vm929, 1, 0
        %v1826 = vsel %vm930, 1, 0
        %v1827 = vsel %vm931, 1, 0
        %v1828 = vsel %vm932, 1, 0
        %v1829 = vsel %vm933, 1, 0
        %v1830 = vsel %vm934, 1, 0
        %v1831 = vsel %vm935, 1, 0
        %v1832 = vsel %vm936, 1, 0
        %v1833 = vsel %vm937, 1, 0
        %v1834 = vsel %vm938, 1, 0
        %v1835 = vsel %vm939, 1, 0
        %v1836 = vsel %vm940, 1, 0
        %v1837 = vsel %vm941, 1, 0
        %v1838 = vsel %vm942, 1, 0
        %v1839 = vsel %vm943, 1, 0
        %v1840 = vsel %vm944, 1, 0
        %v1841 = vsel %vm945, 1, 0
        %v1842 = vsel %vm946, 1, 0
        %v1843 = vsel %vm947, 1, 0
        %v1844 = vsel %vm948, 1, 0
        %v1845 = vsel %vm949, 1, 0
        %v1846 = vsel %vm950, 1, 0
        %v1847 = vsel %vm951, 1, 0
        %v1848 = vsel %vm952, 1, 0
        %v1849 = vsel %vm953, 1, 0
        %v1850 = vsel %vm954, 1, 0
        %v1851 = vsel %vm955, 1, 0
        %v1852 = vsel %vm956, 1, 0
        %v1853 = vsel %vm957, 1, 0
        %v1854 = vsel %vm958, 1, 0
        %v1855 = vsel %vm959, 1, 0
        %v1856 = vsel %vm960, 1, 0
        %v1857 = vsel %vm961, 1, 0
        %v1858 = vsel %vm962, 1, 0
        %v1859 = vsel %vm963, 1, 0
        %v1860 = vsel %vm964, 1, 0
        %v1861 = vsel %vm965, 1, 0
        %v1862 = vsel %vm966, 1, 0
        %v1863 = vsel %vm967, 1, 0
        %v1864 = vsel %vm968, 1, 0
        %v1865 = vsel %vm969, 1, 0
        %v1866 = vsel %vm970, 1, 0
        %v1867 = vsel %vm971, 1, 0
        %v1868 = vsel %vm972, 1, 0
        %v1869 = vsel %vm973, 1, 0
        %v1870 = vsel %vm974, 1, 0
        %v1871 = vsel %vm975, 1, 0
        %v1872 = vsel %vm976, 1, 0
        %v1873 = vsel %vm977, 1, 0
        %v1874 = vsel %vm978, 1, 0
        %v1875 = vsel %vm979, 1, 0
        %v1876 = vsel %vm980, 1, 0
        %v1877 = vsel %vm981, 1, 0
        %v1878 = vsel %vm982, 1, 0
        %v1879 = vsel %vm983, 1, 0
        %v1880 = vsel %vm984, 1, 0
        %v1881 = vsel %vm985, 1, 0
        %v1882 = vsel %vm986, 1, 0
        %v1883 = vsel %vm987, 1, 0
        %v1884 = vsel %vm988, 1, 0
        %v1885 = vsel %vm989, 1, 0
        %v1886 = vsel %vm990, 1, 0
        %v1887 = vsel %vm991, 1, 0
        %v1888 = vsel %vm992, 1, 0
        %v1889 = vsel %vm993, 1, 0
        %v1890 = vsel %vm994, 1, 0
        %v1891 = vsel %vm995, 1, 0
        %v1892 = vsel %vm996, 1, 0
        %v1893 = vsel %vm997, 1, 0
        %v1894 = vsel %vm998, 1, 0
        %v1895 = vsel %vm999, 1, 0
        %v1896 = vsel %vm1000, 1, 0
        %v1897 = vsel %vm1001, 1, 0
        %v1898 = vsel %vm1002, 1, 0
        %v1899 = vsel %vm1003, 1, 0
        %v1900 = vsel %vm1004, 1, 0
        %v1901 = vsel %vm1005, 1, 0
        %v1902 = vsel %vm1006, 1, 0
        %v1903 = vsel %vm1007, 1, 0
        %v1904 = vsel %vm1008, 1, 0
        %v1905 = vsel %vm1009, 1, 0
        %v1906 = vsel %vm1010, 1, 0
        %v1907 = vsel %vm1011, 1, 0
        %v1908 = vsel %vm1012, 1, 0
        %v1909 = vsel %vm1013, 1, 0
        %v1910 = vsel %vm1014, 1, 0
        %v1911 = vsel %vm1015, 1, 0
        %v1912 = vsel %vm1016, 1, 0
        %v1913 = vsel %vm1017, 1, 0
        %v1914 = vsel %vm1018, 1, 0
        %v1915 = vsel %vm1019, 1, 0
        %v1916 = vsel %vm1020, 1, 0
        %v1917 = vsel %vm1021, 1, 0
        %v1918 = vsel %vm1022, 1, 0
        %v1919 = vsel %vm1023, 1, 0
        %v1920 = vsel %vm1024, 1, 0
        %v1921 = vsel %vm1025, 1, 0
        %v1922 = vsel %vm1026, 1, 0
        %v1923 = vsel %vm1027, 1, 0
        %v1924 = vsel %vm1028, 1, 0
        %v1925 = vsel %vm1029, 1, 0
        %v1926 = vsel %vm1030, 1, 0
        %v1927 = vsel %vm1031, 1, 0
        %v1928 = vsel %vm1032, 1, 0
        %v1929 = vsel %vm1033, 1, 0
        %v1930 = vsel %vm1034, 1, 0
        %v1931 = vsel %vm1035, 1, 0
        %v1932 = vsel %vm1036, 1, 0
        %v1933 = vsel %vm1037, 1, 0
        %v1934 = vsel %vm1038, 1, 0
        %v1935 = vsel %vm1039, 1, 0
        %v1936 = vsel %vm1040, 1, 0
        %v1937 = vsel %vm1041, 1, 0
        %v1938 = vsel %vm1042, 1, 0
        %v1939 = vsel %vm1043, 1, 0
        %v1940 = vsel %vm1044, 1, 0
        %v1941 = vsel %vm1045, 1, 0
        %v1942 = vsel %vm1046, 1, 0
        %v1943 = vsel %vm1047, 1, 0
        %v1944 = vsel %vm1048, 1, 0
        %v1945 = vsel %vm1049, 1, 0
        %v1946 = vsel %vm1050, 1, 0
        %v1947 = vsel %vm1051, 1, 0
        %v1948 = vsel %vm1052, 1, 0
        %v1949 = vsel %vm1053, 1, 0
        %v1950 = vsel %vm1054, 1, 0
        %v1951 = vsel %vm1055, 1, 0
        %v1952 = vsel %vm1056, 1, 0
        %v1953 = vsel %vm1057, 1, 0
        %v1954 = vsel %vm1058, 1, 0
        %v1955 = vsel %vm1059, 1, 0
        %v1956 = vsel %vm1060, 1, 0
        %v1957 = vsel %vm1061, 1, 0
        %v1958 = vsel %vm1062, 1, 0
        %v1959 = vsel %vm1063, 1, 0
        %v1960 = vsel %vm1064, 1, 0
        %v1961 = vsel %vm1065, 1, 0
        %v1962 = vsel %vm1066, 1, 0
        %v1963 = vsel %vm1067, 1, 0
        %v1964 = vsel %vm1068, 1, 0
        %v1965 = vsel %vm1069, 1, 0
        %v1966 = vsel %vm1070, 1, 0
        %v1967 = vsel %vm1071, 1, 0
        %v1968 = vsel %vm1072, 1, 0
        %v1969 = vsel %vm1073, 1, 0
        %v1970 = vsel %vm1074, 1, 0
        %v1971 = vsel %vm1075, 1, 0
        %v1972 = vsel %vm1076, 1, 0
        %v1973 = vsel %vm1077, 1, 0
        %v1974 = vsel %vm1078, 1, 0
        %v1975 = vsel %vm1079, 1, 0
        %v1976 = vsel %vm1080, 1, 0
        %v1977 = vsel %vm1081, 1, 0
        %v1978 = vsel %vm1082, 1, 0
        %v1979 = vsel %vm1083, 1, 0
        %v1980 = vsel %vm1084, 1, 0
        %v1981 = vsel %vm1085, 1, 0
        %v1982 = vsel %vm1086, 1, 0
        %v1983 = vsel %vm1087, 1, 0
        %v1984 = vsel %vm1088, 1, 0
        %v1985 = vsel %vm1089, 1, 0
        %v1986 = vsel %vm1090, 1, 0
        %v1987 = vsel %vm1091, 1, 0
        %v1988 = vsel %vm1092, 1, 0
        %v1989 = vsel %vm1093, 1, 0
        %v1990 = vsel %vm1094, 1, 0
        %v1991 = vsel %vm1095, 1, 0
        %v1992 = vsel %vm1096, 1, 0
        %v1993 = vsel %vm1097, 1, 0
        %v1994 = vsel %vm1098, 1, 0
        %v1995 = vsel %vm1099, 1, 0
        %v1996 = vsel %vm1100, 1, 0
        %v1997 = vsel %vm1101, 1, 0
        %v1998 = vsel %vm1102, 1, 0
        %v1999 = vsel %vm1103, 1, 0
        %v2000 = vsel %vm1104, 1, 0
        %v2001 = vsel %vm1105, 1, 0
        %v2002 = vsel %vm1106, 1, 0
        %v2003 = vsel %vm1107, 1, 0
        %v2004 = vsel %vm1108, 1, 0
        %v2005 = vsel %vm1109, 1, 0
        %v2006 = vsel %vm1110, 1, 0
        %v2007 = vsel %vm1111, 1, 0
        %v2008 = vsel %vm1112, 1, 0
        %v2009 = vsel %vm1113, 1, 0
        %v2010 = vsel %vm1114, 1, 0
        %v2011 = vsel %vm1115, 1, 0
        %v2012 = vsel %vm1116, 1, 0
        %v2013 = vsel %vm1117, 1, 0
        %v2014 = vsel %vm1118, 1, 0
        %v2015 = vsel %vm1119, 1, 0
        %v2016 = vsel %vm1120, 1, 0
        %v2017 = vsel %vm1121, 1, 0
        %v2018 = vsel %vm1122, 1, 0
        %v2019 = vsel %vm1123, 1, 0
        %v2020 = vsel %vm1124, 1, 0
        %v2021 = vsel %vm1125, 1, 0
        %v2022 = vsel %vm1126, 1, 0
        %v2023 = vsel %vm1127, 1, 0
        %v2024 = vsel %vm1128, 1, 0
        %v2025 = vsel %vm1129, 1, 0
        %v2026 = vsel %vm1130, 1, 0
        %v2027 = vsel %vm1131, 1, 0
        %v2028 = vsel %vm1132, 1, 0
        %v2029 = vsel %vm1133, 1, 0
        %v2030 = vsel %vm1134, 1, 0
        %v2031 = vsel %vm1135, 1, 0
        %v2032 = vsel %vm1136, 1, 0
        %v2033 = vsel %vm1137, 1, 0
        %v2034 = vsel %vm1138, 1, 0
        %v2035 = vsel %vm1139, 1, 0
        %v2036 = vsel %vm1140, 1, 0
        %v2037 = vsel %vm1141, 1, 0
        %v2038 = vsel %vm1142, 1, 0
        %v2039 = vsel %vm1143, 1, 0
        %v2040 = vsel %vm1144, 1, 0
        %v2041 = vsel %vm1145, 1, 0
        %v2042 = vsel %vm1146, 1, 0
        %v2043 = vsel %vm1147, 1, 0
        %v2044 = vsel %vm1148, 1, 0
        %v2045 = vsel %vm1149, 1, 0
        %v2046 = vsel %vm1150, 1, 0
        %v2047 = vsel %vm1151, 1, 0
        %v2048 = vsel %vm1152, 1, 0
        %v2049 = vsel %vm1153, 1, 0
        %v2050 = vsel %vm1154, 1, 0
        %v2051 = vsel %vm1155, 1, 0
        %v2052 = vsel %vm1156, 1, 0
        %v2053 = vsel %vm1157, 1, 0
        %v2054 = vsel %vm1158, 1, 0
        %v2055 = vsel %vm1159, 1, 0
        %v2056 = vsel %vm1160, 1, 0
        %v2057 = vsel %vm1161, 1, 0
        %v2058 = vsel %vm1162, 1, 0
        %v2059 = vsel %vm1163, 1, 0
        %v2060 = vsel %vm1164, 1, 0
        %v2061 = vsel %vm1165, 1, 0
        %v2062 = vsel %vm1166, 1, 0
        %v2063 = vsel %vm1167, 1, 0
        %v2064 = vsel %vm1168, 1, 0
        %v2065 = vsel %vm1169, 1, 0
        %v2066 = vsel %vm1170, 1, 0
        %v2067 = vsel %vm1171, 1, 0
        %v2068 = vsel %vm1172, 1, 0
        %v2069 = vsel %vm1173, 1, 0
        %v2070 = vsel %vm1174, 1, 0
        %v2071 = vsel %vm1175, 1, 0
        %v2072 = vsel %vm1176, 1, 0
        %v2073 = vsel %vm1177, 1, 0
        %v2074 = vsel %vm1178, 1, 0
        %v2075 = vsel %vm1179, 1, 0
        %v2076 = vsel %vm1180, 1, 0
        %v2077 = vsel %vm1181, 1, 0
        %v2078 = vsel %vm1182, 1, 0
        %v2079 = vsel %vm1183, 1, 0
        %v2080 = vsel %vm1184, 1, 0
        %v2081 = vsel %vm1185, 1, 0
        %v2082 = vsel %vm1186, 1, 0
        %v2083 = vsel %vm1187, 1, 0
        %v2084 = vsel %vm1188, 1, 0
        %v2085 = vsel %vm1189, 1, 0
        %v2086 = vsel %vm1190, 1, 0
        %v2087 = vsel %vm1191, 1, 0
        %v2088 = vsel %vm1192, 1, 0
        %v2089 = vsel %vm1193, 1, 0
        %v2090 = vsel %vm1194, 1, 0
        %v2091 = vsel %vm1195, 1, 0
        %v2092 = vsel %vm1196, 1, 0
        %v2093 = vsel %vm1197, 1, 0
        %v2094 = vsel %vm1198, 1, 0
        %v2095 = vsel %vm1199, 1, 0
        %v2096 = vsel %vm1200, 1, 0
        %v2097 = vsel %vm1201, 1, 0
        %v2098 = vsel %vm1202, 1, 0
        %v2099 = vsel %vm1203, 1, 0
        %v2100 = vsel %vm1204, 1, 0
        %v2101 = vsel %vm1205, 1, 0
        %v2102 = vsel %vm1206, 1, 0
        %v2103 = vsel %vm1207, 1, 0
        %v2104 = vsel %vm1208, 1, 0
        %v2105 = vsel %vm1209, 1, 0
        %v2106 = vsel %vm1210, 1, 0
        %v2107 = vsel %vm1211, 1, 0
        %v2108 = vsel %vm1212, 1, 0
        %v2109 = vsel %vm1213, 1, 0
        %v2110 = vsel %vm1214, 1, 0
        %v2111 = vsel %vm1215, 1, 0
        %v2112 = vsel %vm1216, 1, 0
        %v2113 = vsel %vm1217, 1, 0
        %v2114 = vsel %vm1218, 1, 0
        %v2115 = vsel %vm1219, 1, 0
        %v2116 = vsel %vm1220, 1, 0
        %v2117 = vsel %vm1221, 1, 0
        %v2118 = vsel %vm1222, 1, 0
        %v2119 = vsel %vm1223, 1, 0
        %v2120 = vsel %vm1224, 1, 0
        %v2121 = vsel %vm1225, 1, 0
        %v2122 = vsel %vm1226, 1, 0
        %v2123 = vsel %vm1227, 1, 0
        %v2124 = vsel %vm1228, 1, 0
        %v2125 = vsel %vm1229, 1, 0
        %v2126 = vsel %vm1230, 1, 0
        %v2127 = vsel %vm1231, 1, 0
        %v2128 = vsel %vm1232, 1, 0
        %v2129 = vsel %vm1233, 1, 0
        %v2130 = vsel %vm1234, 1, 0
        %v2131 = vsel %vm1235, 1, 0
        %v2132 = vsel %vm1236, 1, 0
        %v2133 = vsel %vm1237, 1, 0
        %v2134 = vsel %vm1238, 1, 0
        %v2135 = vsel %vm1239, 1, 0
        %v2136 = vsel %vm1240, 1, 0
        %v2137 = vsel %vm1241, 1, 0
        %v2138 = vsel %vm1242, 1, 0
        %v2139 = vsel %vm1243, 1, 0
        %v2140 = vsel %vm1244, 1, 0
        %v2141 = vsel %vm1245, 1, 0
        %v2142 = vsel %vm1246, 1, 0
        %v2143 = vsel %vm1247, 1, 0
        %v2144 = vsel %vm1248, 1, 0
        %v2145 = vsel %vm1249, 1, 0
        %v2146 = vsel %vm1250, 1, 0
        %v2147 = vcvt.s32.f32 %v1251
        %v2148 = vcvt.s32.f32 %v1252
        %v2149 = vcvt.s32.f32 %v1253
        %v2150 = vcvt.s32.f32 %v1254
        %v2151 = vcvt.s32.f32 %v1255
        %v2152 = vcvt.s32.f32 %v1256
        %v2153 = vcvt.s32.f32 %v1257
        %v2154 = vcvt.s32.f32 %v1258
        %v2155 = vcvt.s32.f32 %v1259
        %v2156 = vcvt.s32.f32 %v1260
        %v2157 = vcvt.s32.f32 %v1261
        %v2158 = vcvt.s32.f32 %v1262
        %v2159 = vcvt.s32.f32 %v1263
        %v2160 = vcvt.s32.f32 %v1264
        %v2161 = vcvt.s32.f32 %v1265
        %v2162 = vcvt.s32.f32 %v1266
        %v2163 = vcvt.s32.f32 %v1267
        %v2164 = vcvt.s32.f32 %v1268
        %v2165 = vcvt.s32.f32 %v1269
        %v2166 = vcvt.s32.f32 %v1270
        %v2167 = vcvt.s32.f32 %v1271
        %v2168 = vcvt.s32.f32 %v1272
        %v2169 = vcvt.s32.f32 %v1273
        %v2170 = vcvt.s32.f32 %v1274
        %v2171 = vcvt.s32.f32 %v1275
        %v2172 = vcvt.s32.f32 %v1276
        %v2173 = vcvt.s32.f32 %v1277
        %v2174 = vcvt.s32.f32 %v1278
        %v2175 = vcvt.s32.f32 %v1279
        %v2176 = vcvt.s32.f32 %v1280
        %v2177 = vcvt.s32.f32 %v1281
        %v2178 = vcvt.s32.f32 %v1282
        %v2179 = vcvt.s32.f32 %v1283
        %v2180 = vcvt.s32.f32 %v1284
        %v2181 = vcvt.s32.f32 %v1285
        %v2182 = vcvt.s32.f32 %v1286
        %v2183 = vcvt.s32.f32 %v1287
        %v2184 = vcvt.s32.f32 %v1288
        %v2185 = vcvt.s32.f32 %v1289
        %v2186 = vcvt.s32.f32 %v1290
        %v2187 = vcvt.s32.f32 %v1291
        %v2188 = vcvt.s32.f32 %v1292
        %v2189 = vcvt.s32.f32 %v1293
        %v2190 = vcvt.s32.f32 %v1294
        %v2191 = vcvt.s32.f32 %v1295
        %v2192 = vcvt.s32.f32 %v1296
        %v2193 = vcvt.s32.f32 %v1297
        %v2194 = vcvt.s32.f32 %v1298
        %v2195 = vcvt.s32.f32 %v1299
        %v2196 = vcvt.s32.f32 %v1300
        %v2197 = vcvt.s32.f32 %v1301
        %v2198 = vcvt.s32.f32 %v1302
        %v2199 = vcvt.s32.f32 %v1303
        %v2200 = vcvt.s32.f32 %v1304
        %v2201 = vcvt.s32.f32 %v1305
        %v2202 = vcvt.s32.f32 %v1306
        %v2203 = vcvt.s32.f32 %v1307
        %v2204 = vcvt.s32.f32 %v1308
        %v2205 = vcvt.s32.f32 %v1309
        %v2206 = vcvt.s32.f32 %v1310
        %v2207 = vcvt.s32.f32 %v1311
        %v2208 = vcvt.s32.f32 %v1312
        %v2209 = vcvt.s32.f32 %v1313
        %v2210 = vcvt.s32.f32 %v1314
        %v2211 = vcvt.s32.f32 %v1315
        %v2212 = vcvt.s32.f32 %v1316
        %v2213 = vcvt.s32.f32 %v1317
        %v2214 = vcvt.s32.f32 %v1318
        %v2215 = vcvt.s32.f32 %v1319
        %v2216 = vcvt.s32.f32 %v1320
        %v2217 = vcvt.s32.f32 %v1321
        %v2218 = vcvt.s32.f32 %v1322
        %v2219 = vcvt.s32.f32 %v1323
        %v2220 = vcvt.s32.f32 %v1324
        %v2221 = vcvt.s32.f32 %v1325
        %v2222 = vcvt.s32.f32 %v1326
        %v2223 = vcvt.s32.f32 %v1327
        %v2224 = vcvt.s32.f32 %v1328
        %v2225 = vcvt.s32.f32 %v1329
        %v2226 = vcvt.s32.f32 %v1330
        %v2227 = vcvt.s32.f32 %v1331
        %v2228 = vcvt.s32.f32 %v1332
        %v2229 = vcvt.s32.f32 %v1333
        %v2230 = vcvt.s32.f32 %v1334
        %v2231 = vcvt.s32.f32 %v1335
        %v2232 = vcvt.s32.f32 %v1336
        %v2233 = vcvt.s32.f32 %v1337
        %v2234 = vcvt.s32.f32 %v1338
        %v2235 = vcvt.s32.f32 %v1339
        %v2236 = vcvt.s32.f32 %v1340
        %v2237 = vcvt.s32.f32 %v1341
        %v2238 = vcvt.s32.f32 %v1342
        %v2239 = vcvt.s32.f32 %v1343
        %v2240 = vcvt.s32.f32 %v1344
        %v2241 = vcvt.s32.f32 %v1345
        %v2242 = vcvt.s32.f32 %v1346
        %v2243 = vcvt.s32.f32 %v1347
        %v2244 = vcvt.s32.f32 %v1348
        %v2245 = vcvt.s32.f32 %v1349
        %v2246 = vcvt.s32.f32 %v1350
        %v2247 = vcvt.s32.f32 %v1351
        %v2248 = vcvt.s32.f32 %v1352
        %v2249 = vcvt.s32.f32 %v1353
        %v2250 = vcvt.s32.f32 %v1354
        %v2251 = vcvt.s32.f32 %v1355
        %v2252 = vcvt.s32.f32 %v1356
        %v2253 = vcvt.s32.f32 %v1357
        %v2254 = vcvt.s32.f32 %v1358
        %v2255 = vcvt.s32.f32 %v1359
        %v2256 = vcvt.s32.f32 %v1360
        %v2257 = vcvt.s32.f32 %v1361
        %v2258 = vcvt.s32.f32 %v1362
        %v2259 = vcvt.s32.f32 %v1363
        %v2260 = vcvt.s32.f32 %v1364
        %v2261 = vcvt.s32.f32 %v1365
        %v2262 = vcvt.s32.f32 %v1366
        %v2263 = vcvt.s32.f32 %v1367
        %v2264 = vcvt.s32.f32 %v1368
        %v2265 = vcvt.s32.f32 %v1369
        %v2266 = vcvt.s32.f32 %v1370
        %v2267 = vcvt.s32.f32 %v1371
        %v2268 = vcvt.s32.f32 %v1372
        %v2269 = vcvt.s32.f32 %v1373
        %v2270 = vcvt.s32.f32 %v1374
        %v2271 = vcvt.s32.f32 %v1375
        %v2272 = vcvt.s32.f32 %v1376
        %v2273 = vcvt.s32.f32 %v1377
        %v2274 = vcvt.s32.f32 %v1378
        %v2275 = vcvt.s32.f32 %v1379
        %v2276 = vcvt.s32.f32 %v1380
        %v2277 = vcvt.s32.f32 %v1381
        %v2278 = vcvt.s32.f32 %v1382
        %v2279 = vcvt.s32.f32 %v1383
        %v2280 = vcvt.s32.f32 %v1384
        %v2281 = vcvt.s32.f32 %v1385
        %v2282 = vcvt.s32.f32 %v1386
        %v2283 = vcvt.s32.f32 %v1387
        %v2284 = vcvt.s32.f32 %v1388
        %v2285 = vcvt.s32.f32 %v1389
        %v2286 = vcvt.s32.f32 %v1390
        %v2287 = vcvt.s32.f32 %v1391
        %v2288 = vcvt.s32.f32 %v1392
        %v2289 = vcvt.s32.f32 %v1393
        %v2290 = vcvt.s32.f32 %v1394
        %v2291 = vcvt.s32.f32 %v1395
        %v2292 = vcvt.s32.f32 %v1396
        %v2293 = vcvt.s32.f32 %v1397
        %v2294 = vcvt.s32.f32 %v1398
        %v2295 = vcvt.s32.f32 %v1399
        %v2296 = vcvt.s32.f32 %v1400
        %v2297 = vcvt.s32.f32 %v1401
        %v2298 = vcvt.s32.f32 %v1402
        %v2299 = vcvt.s32.f32 %v1403
        %v2300 = vcvt.s32.f32 %v1404
        %v2301 = vcvt.s32.f32 %v1405
        %v2302 = vcvt.s32.f32 %v1406
        %v2303 = vcvt.s32.f32 %v1407
        %v2304 = vcvt.s32.f32 %v1408
        %v2305 = vcvt.s32.f32 %v1409
        %v2306 = vcvt.s32.f32 %v1410
        %v2307 = vcvt.s32.f32 %v1411
        %v2308 = vcvt.s32.f32 %v1412
        %v2309 = vcvt.s32.f32 %v1413
        %v2310 = vcvt.s32.f32 %v1414
        %v2311 = vcvt.s32.f32 %v1415
        %v2312 = vcvt.s32.f32 %v1416
        %v2313 = vcvt.s32.f32 %v1417
        %v2314 = vcvt.s32.f32 %v1418
        %v2315 = vcvt.s32.f32 %v1419
        %v2316 = vcvt.s32.f32 %v1420
        %v2317 = vcvt.s32.f32 %v1421
        %v2318 = vcvt.s32.f32 %v1422
        %v2319 = vcvt.s32.f32 %v1423
        %v2320 = vcvt.s32.f32 %v1424
        %v2321 = vcvt.s32.f32 %v1425
        %v2322 = vcvt.s32.f32 %v1426
        %v2323 = vcvt.s32.f32 %v1427
        %v2324 = vcvt.s32.f32 %v1428
        %v2325 = vcvt.s32.f32 %v1429
        %v2326 = vcvt.s32.f32 %v1430
        %v2327 = vcvt.s32.f32 %v1431
        %v2328 = vcvt.s32.f32 %v1432
        %v2329 = vcvt.s32.f32 %v1433
        %v2330 = vcvt.s32.f32 %v1434
        %v2331 = vcvt.s32.f32 %v1435
        %v2332 = vcvt.s32.f32 %v1436
        %v2333 = vcvt.s32.f32 %v1437
        %v2334 = vcvt.s32.f32 %v1438
        %v2335 = vcvt.s32.f32 %v1439
        %v2336 = vcvt.s32.f32 %v1440
        %v2337 = vcvt.s32.f32 %v1441
        %v2338 = vcvt.s32.f32 %v1442
        %v2339 = vcvt.s32.f32 %v1443
        %v2340 = vcvt.s32.f32 %v1444
        %v2341 = vcvt.s32.f32 %v1445
        %v2342 = vcvt.s32.f32 %v1446
        %v2343 = vcvt.s32.f32 %v1447
        %v2344 = vcvt.s32.f32 %v1448
        %v2345 = vcvt.s32.f32 %v1449
        %v2346 = vcvt.s32.f32 %v1450
        %v2347 = vcvt.s32.f32 %v1451
        %v2348 = vcvt.s32.f32 %v1452
        %v2349 = vcvt.s32.f32 %v1453
        %v2350 = vcvt.s32.f32 %v1454
        %v2351 = vcvt.s32.f32 %v1455
        %v2352 = vcvt.s32.f32 %v1456
        %v2353 = vcvt.s32.f32 %v1457
        %v2354 = vcvt.s32.f32 %v1458
        %v2355 = vcvt.s32.f32 %v1459
        %v2356 = vcvt.s32.f32 %v1460
        %v2357 = vcvt.s32.f32 %v1461
        %v2358 = vcvt.s32.f32 %v1462
        %v2359 = vcvt.s32.f32 %v1463
        %v2360 = vcvt.s32.f32 %v1464
        %v2361 = vcvt.s32.f32 %v1465
        %v2362 = vcvt.s32.f32 %v1466
        %v2363 = vcvt.s32.f32 %v1467
        %v2364 = vcvt.s32.f32 %v1468
        %v2365 = vcvt.s32.f32 %v1469
        %v2366 = vcvt.s32.f32 %v1470
        %v2367 = vcvt.s32.f32 %v1471
        %v2368 = vcvt.s32.f32 %v1472
        %v2369 = vcvt.s32.f32 %v1473
        %v2370 = vcvt.s32.f32 %v1474
        %v2371 = vcvt.s32.f32 %v1475
        %v2372 = vcvt.s32.f32 %v1476
        %v2373 = vcvt.s32.f32 %v1477
        %v2374 = vcvt.s32.f32 %v1478
        %v2375 = vcvt.s32.f32 %v1479
        %v2376 = vcvt.s32.f32 %v1480
        %v2377 = vcvt.s32.f32 %v1481
        %v2378 = vcvt.s32.f32 %v1482
        %v2379 = vcvt.s32.f32 %v1483
        %v2380 = vcvt.s32.f32 %v1484
        %v2381 = vcvt.s32.f32 %v1485
        %v2382 = vcvt.s32.f32 %v1486
        %v2383 = vcvt.s32.f32 %v1487
        %v2384 = vcvt.s32.f32 %v1488
        %v2385 = vcvt.s32.f32 %v1489
        %v2386 = vcvt.s32.f32 %v1490
        %v2387 = vcvt.s32.f32 %v1491
        %v2388 = vcvt.s32.f32 %v1492
        %v2389 = vcvt.s32.f32 %v1493
        %v2390 = vcvt.s32.f32 %v1494
        %v2391 = vcvt.s32.f32 %v1495
        %v2392 = vcvt.s32.f32 %v1496
        %v2393 = vcvt.s32.f32 %v1497
        %v2394 = vcvt.s32.f32 %v1498
        %v2395 = vcvt.s32.f32 %v1499
        %v2396 = vcvt.s32.f32 %v1500
        %v2397 = vcvt.s32.f32 %v1501
        %v2398 = vcvt.s32.f32 %v1502
        %v2399 = vcvt.s32.f32 %v1503
        %v2400 = vcvt.s32.f32 %v1504
        %v2401 = vcvt.s32.f32 %v1505
        %v2402 = vcvt.s32.f32 %v1506
        %v2403 = vcvt.s32.f32 %v1507
        %v2404 = vcvt.s32.f32 %v1508
        %v2405 = vcvt.s32.f32 %v1509
        %v2406 = vcvt.s32.f32 %v1510
        %v2407 = vcvt.s32.f32 %v1511
        %v2408 = vcvt.s32.f32 %v1512
        %v2409 = vcvt.s32.f32 %v1513
        %v2410 = vcvt.s32.f32 %v1514
        %v2411 = vcvt.s32.f32 %v1515
        %v2412 = vcvt.s32.f32 %v1516
        %v2413 = vcvt.s32.f32 %v1517
        %v2414 = vcvt.s32.f32 %v1518
        %v2415 = vcvt.s32.f32 %v1519
        %v2416 = vcvt.s32.f32 %v1520
        %v2417 = vcvt.s32.f32 %v1521
        %v2418 = vcvt.s32.f32 %v1522
        %v2419 = vcvt.s32.f32 %v1523
        %v2420 = vcvt.s32.f32 %v1524
        %v2421 = vcvt.s32.f32 %v1525
        %v2422 = vcvt.s32.f32 %v1526
        %v2423 = vcvt.s32.f32 %v1527
        %v2424 = vcvt.s32.f32 %v1528
        %v2425 = vcvt.s32.f32 %v1529
        %v2426 = vcvt.s32.f32 %v1530
        %v2427 = vcvt.s32.f32 %v1531
        %v2428 = vcvt.s32.f32 %v1532
        %v2429 = vcvt.s32.f32 %v1533
        %v2430 = vcvt.s32.f32 %v1534
        %v2431 = vcvt.s32.f32 %v1535
        %v2432 = vcvt.s32.f32 %v1536
        %v2433 = vcvt.s32.f32 %v1537
        %v2434 = vcvt.s32.f32 %v1538
        %v2435 = vcvt.s32.f32 %v1539
        %v2436 = vcvt.s32.f32 %v1540
        %v2437 = vcvt.s32.f32 %v1541
        %v2438 = vcvt.s32.f32 %v1542
        %v2439 = vcvt.s32.f32 %v1543
        %v2440 = vcvt.s32.f32 %v1544
        %v2441 = vcvt.s32.f32 %v1545
        %v2442 = vcvt.s32.f32 %v1546
        %v2443 = vcvt.s32.f32 %v1547
        %v2444 = vcvt.s32.f32 %v1548
        %v2445 = vcvt.s32.f32 %v1549
        %v2446 = vcvt.s32.f32 %v1550
        %v2447 = vcvt.s32.f32 %v1551
        %v2448 = vcvt.s32.f32 %v1552
        %v2449 = vcvt.s32.f32 %v1553
        %v2450 = vcvt.s32.f32 %v1554
        %v2451 = vcvt.s32.f32 %v1555
        %v2452 = vcvt.s32.f32 %v1556
        %v2453 = vcvt.s32.f32 %v1557
        %v2454 = vcvt.s32.f32 %v1558
        %v2455 = vcvt.s32.f32 %v1559
        %v2456 = vcvt.s32.f32 %v1560
        %v2457 = vcvt.s32.f32 %v1561
        %v2458 = vcvt.s32.f32 %v1562
        %v2459 = vcvt.s32.f32 %v1563
        %v2460 = vcvt.s32.f32 %v1564
        %v2461 = vcvt.s32.f32 %v1565
        %v2462 = vcvt.s32.f32 %v1566
        %v2463 = vcvt.s32.f32 %v1567
        %v2464 = vcvt.s32.f32 %v1568
        %v2465 = vcvt.s32.f32 %v1569
        %v2466 = vcvt.s32.f32 %v1570
        %v2467 = vcvt.s32.f32 %v1571
        %v2468 = vcvt.s32.f32 %v1572
        %v2469 = vcvt.s32.f32 %v1573
        %v2470 = vcvt.s32.f32 %v1574
        %v2471 = vcvt.s32.f32 %v1575
        %v2472 = vcvt.s32.f32 %v1576
        %v2473 = vcvt.s32.f32 %v1577
        %v2474 = vcvt.s32.f32 %v1578
        %v2475 = vcvt.s32.f32 %v1579
        %v2476 = vcvt.s32.f32 %v1580
        %v2477 = vcvt.s32.f32 %v1581
        %v2478 = vcvt.s32.f32 %v1582
        %v2479 = vcvt.s32.f32 %v1583
        %v2480 = vcvt.s32.f32 %v1584
        %v2481 = vcvt.s32.f32 %v1585
        %v2482 = vcvt.s32.f32 %v1586
        %v2483 = vcvt.s32.f32 %v1587
        %v2484 = vcvt.s32.f32 %v1588
        %v2485 = vcvt.s32.f32 %v1589
        %v2486 = vcvt.s32.f32 %v1590
        %v2487 = vcvt.s32.f32 %v1591
        %v2488 = vcvt.s32.f32 %v1592
        %v2489 = vcvt.s32.f32 %v1593
        %v2490 = vcvt.s32.f32 %v1594
        %v2491 = vcvt.s32.f32 %v1595
        %v2492 = vcvt.s32.f32 %v1596
        %v2493 = vcvt.s32.f32 %v1597
        %v2494 = vcvt.s32.f32 %v1598
        %v2495 = vcvt.s32.f32 %v1599
        %v2496 = vcvt.s32.f32 %v1600
        %v2497 = vcvt.s32.f32 %v1601
        %v2498 = vcvt.s32.f32 %v1602
        %v2499 = vcvt.s32.f32 %v1603
        %v2500 = vcvt.s32.f32 %v1604
        %v2501 = vcvt.s32.f32 %v1605
        %v2502 = vcvt.s32.f32 %v1606
        %v2503 = vcvt.s32.f32 %v1607
        %v2504 = vcvt.s32.f32 %v1608
        %v2505 = vcvt.s32.f32 %v1609
        %v2506 = vcvt.s32.f32 %v1610
        %v2507 = vcvt.s32.f32 %v1611
        %v2508 = vcvt.s32.f32 %v1612
        %v2509 = vcvt.s32.f32 %v1613
        %v2510 = vcvt.s32.f32 %v1614
        %v2511 = vcvt.s32.f32 %v1615
        %v2512 = vcvt.s32.f32 %v1616
        %v2513 = vcvt.s32.f32 %v1617
        %v2514 = vcvt.s32.f32 %v1618
        %v2515 = vcvt.s32.f32 %v1619
        %v2516 = vcvt.s32.f32 %v1620
        %v2517 = vcvt.s32.f32 %v1621
        %v2518 = vcvt.s32.f32 %v1622
        %v2519 = vcvt.s32.f32 %v1623
        %v2520 = vcvt.s32.f32 %v1624
        %v2521 = vcvt.s32.f32 %v1625
        %v2522 = vcvt.s32.f32 %v1626
        %v2523 = vcvt.s32.f32 %v1627
        %v2524 = vcvt.s32.f32 %v1628
        %v2525 = vcvt.s32.f32 %v1629
        %v2526 = vcvt.s32.f32 %v1630
        %v2527 = vcvt.s32.f32 %v1631
        %v2528 = vcvt.s32.f32 %v1632
        %v2529 = vcvt.s32.f32 %v1633
        %v2530 = vcvt.s32.f32 %v1634
        %v2531 = vcvt.s32.f32 %v1635
        %v2532 = vcvt.s32.f32 %v1636
        %v2533 = vcvt.s32.f32 %v1637
        %v2534 = vcvt.s32.f32 %v1638
        %v2535 = vcvt.s32.f32 %v1639
        %v2536 = vcvt.s32.f32 %v1640
        %v2537 = vcvt.s32.f32 %v1641
        %v2538 = vcvt.s32.f32 %v1642
        %v2539 = vcvt.s32.f32 %v1643
        %v2540 = vcvt.s32.f32 %v1644
        %v2541 = vcvt.s32.f32 %v1645
        %v2542 = vcvt.s32.f32 %v1646
        %v2543 = vcvt.s32.f32 %v1647
        %v2544 = vcvt.s32.f32 %v1648
        %v2545 = vcvt.s32.f32 %v1649
        %v2546 = vcvt.s32.f32 %v1650
        %v2547 = vcvt.s32.f32 %v1651
        %v2548 = vcvt.s32.f32 %v1652
        %v2549 = vcvt.s32.f32 %v1653
        %v2550 = vcvt.s32.f32 %v1654
        %v2551 = vcvt.s32.f32 %v1655
        %v2552 = vcvt.s32.f32 %v1656
        %v2553 = vcvt.s32.f32 %v1657
        %v2554 = vcvt.s32.f32 %v1658
        %v2555 = vcvt.s32.f32 %v1659
        %v2556 = vcvt.s32.f32 %v1660
        %v2557 = vcvt.s32.f32 %v1661
        %v2558 = vcvt.s32.f32 %v1662
        %v2559 = vcvt.s32.f32 %v1663
        %v2560 = vcvt.s32.f32 %v1664
        %v2561 = vcvt.s32.f32 %v1665
        %v2562 = vcvt.s32.f32 %v1666
        %v2563 = vcvt.s32.f32 %v1667
        %v2564 = vcvt.s32.f32 %v1668
        %v2565 = vcvt.s32.f32 %v1669
        %v2566 = vcvt.s32.f32 %v1670
        %v2567 = vcvt.s32.f32 %v1671
        %v2568 = vcvt.s32.f32 %v1672
        %v2569 = vcvt.s32.f32 %v1673
        %v2570 = vcvt.s32.f32 %v1674
        %v2571 = vcvt.s32.f32 %v1675
        %v2572 = vcvt.s32.f32 %v1676
        %v2573 = vcvt.s32.f32 %v1677
        %v2574 = vcvt.s32.f32 %v1678
        %v2575 = vcvt.s32.f32 %v1679
        %v2576 = vcvt.s32.f32 %v1680
        %v2577 = vcvt.s32.f32 %v1681
        %v2578 = vcvt.s32.f32 %v1682
        %v2579 = vcvt.s32.f32 %v1683
        %v2580 = vcvt.s32.f32 %v1684
        %v2581 = vcvt.s32.f32 %v1685
        %v2582 = vcvt.s32.f32 %v1686
        %v2583 = vcvt.s32.f32 %v1687
        %v2584 = vcvt.s32.f32 %v1688
        %v2585 = vcvt.s32.f32 %v1689
        %v2586 = vcvt.s32.f32 %v1690
        %v2587 = vcvt.s32.f32 %v1691
        %v2588 = vcvt.s32.f32 %v1692
        %v2589 = vcvt.s32.f32 %v1693
        %v2590 = vcvt.s32.f32 %v1694
        %v2591 = vcvt.s32.f32 %v1695
        %v2592 = vcvt.s32.f32 %v1696
        %v2593 = vcvt.s32.f32 %v1697
        %v2594 = vcvt.s32.f32 %v1698
        %v2595 = vcvt.s32.f32 %v1699
        %v2596 = vcvt.s32.f32 %v1700
        %v2597 = vcvt.s32.f32 %v1701
        %v2598 = vcvt.s32.f32 %v1702
        %v2599 = vcvt.s32.f32 %v1703
        %v2600 = vcvt.s32.f32 %v1704
        %v2601 = vcvt.s32.f32 %v1705
        %v2602 = vcvt.s32.f32 %v1706
        %v2603 = vcvt.s32.f32 %v1707
        %v2604 = vcvt.s32.f32 %v1708
        %v2605 = vcvt.s32.f32 %v1709
        %v2606 = vcvt.s32.f32 %v1710
        %v2607 = vcvt.s32.f32 %v1711
        %v2608 = vcvt.s32.f32 %v1712
        %v2609 = vcvt.s32.f32 %v1713
        %v2610 = vcvt.s32.f32 %v1714
        %v2611 = vcvt.s32.f32 %v1715
        %v2612 = vcvt.s32.f32 %v1716
        %v2613 = vcvt.s32.f32 %v1717
        %v2614 = vcvt.s32.f32 %v1718
        %v2615 = vcvt.s32.f32 %v1719
        %v2616 = vcvt.s32.f32 %v1720
        %v2617 = vcvt.s32.f32 %v1721
        %v2618 = vcvt.s32.f32 %v1722
        %v2619 = vcvt.s32.f32 %v1723
        %v2620 = vcvt.s32.f32 %v1724
        %v2621 = vcvt.s32.f32 %v1725
        %v2622 = vcvt.s32.f32 %v1726
        %v2623 = vcvt.s32.f32 %v1727
        %v2624 = vcvt.s32.f32 %v1728
        %v2625 = vcvt.s32.f32 %v1729
        %v2626 = vcvt.s32.f32 %v1730
        %v2627 = vcvt.s32.f32 %v1731
        %v2628 = vcvt.s32.f32 %v1732
        %v2629 = vcvt.s32.f32 %v1733
        %v2630 = vcvt.s32.f32 %v1734
        %v2631 = vcvt.s32.f32 %v1735
        %v2632 = vcvt.s32.f32 %v1736
        %v2633 = vcvt.s32.f32 %v1737
        %v2634 = vcvt.s32.f32 %v1738
        %v2635 = vcvt.s32.f32 %v1739
        %v2636 = vcvt.s32.f32 %v1740
        %v2637 = vcvt.s32.f32 %v1741
        %v2638 = vcvt.s32.f32 %v1742
        %v2639 = vcvt.s32.f32 %v1743
        %v2640 = vcvt.s32.f32 %v1744
        %v2641 = vcvt.s32.f32 %v1745
        %v2642 = vcvt.s32.f32 %v1746
        %v2643 = vcvt.s32.f32 %v1747
        %v2644 = vcvt.s32.f32 %v1748
        %v2645 = vcvt.s32.f32 %v1749
        %v2646 = vcvt.s32.f32 %v1750
        %v2647 = vcvt.s32.f32 %v1751
        %v2648 = vcvt.s32.f32 %v1752
        %v2649 = vcvt.s32.f32 %v1753
        %v2650 = vcvt.s32.f32 %v1754
        %v2651 = vcvt.s32.f32 %v1755
        %v2652 = vcvt.s32.f32 %v1756
        %v2653 = vcvt.s32.f32 %v1757
        %v2654 = vcvt.s32.f32 %v1758
        %v2655 = vcvt.s32.f32 %v1759
        %v2656 = vcvt.s32.f32 %v1760
        %v2657 = vcvt.s32.f32 %v1761
        %v2658 = vcvt.s32.f32 %v1762
        %v2659 = vcvt.s32.f32 %v1763
        %v2660 = vcvt.s32.f32 %v1764
        %v2661 = vcvt.s32.f32 %v1765
        %v2662 = vcvt.s32.f32 %v1766
        %v2663 = vcvt.s32.f32 %v1767
        %v2664 = vcvt.s32.f32 %v1768
        %v2665 = vcvt.s32.f32 %v1769
        %v2666 = vcvt.s32.f32 %v1770
        %v2667 = vcvt.s32.f32 %v1771
        %v2668 = vcvt.s32.f32 %v1772
        %v2669 = vcvt.s32.f32 %v1773
        %v2670 = vcvt.s32.f32 %v1774
        %v2671 = vcvt.s32.f32 %v1775
        %v2672 = vcvt.s32.f32 %v1776
        %v2673 = vcvt.s32.f32 %v1777
        %v2674 = vcvt.s32.f32 %v1778
        %v2675 = vcvt.s32.f32 %v1779
        %v2676 = vcvt.s32.f32 %v1780
        %v2677 = vcvt.s32.f32 %v1781
        %v2678 = vcvt.s32.f32 %v1782
        %v2679 = vcvt.s32.f32 %v1783
        %v2680 = vcvt.s32.f32 %v1784
        %v2681 = vcvt.s32.f32 %v1785
        %v2682 = vcvt.s32.f32 %v1786
        %v2683 = vcvt.s32.f32 %v1787
        %v2684 = vcvt.s32.f32 %v1788
        %v2685 = vcvt.s32.f32 %v1789
        %v2686 = vcvt.s32.f32 %v1790
        %v2687 = vcvt.s32.f32 %v1791
        %v2688 = vcvt.s32.f32 %v1792
        %v2689 = vcvt.s32.f32 %v1793
        %v2690 = vcvt.s32.f32 %v1794
        %v2691 = vcvt.s32.f32 %v1795
        %v2692 = vcvt.s32.f32 %v1796
        %v2693 = vcvt.s32.f32 %v1797
        %v2694 = vcvt.s32.f32 %v1798
        %v2695 = vcvt.s32.f32 %v1799
        %v2696 = vcvt.s32.f32 %v1800
        %v2697 = vcvt.s32.f32 %v1801
        %v2698 = vcvt.s32.f32 %v1802
        %v2699 = vcvt.s32.f32 %v1803
        %v2700 = vcvt.s32.f32 %v1804
        %v2701 = vcvt.s32.f32 %v1805
        %v2702 = vcvt.s32.f32 %v1806
        %v2703 = vcvt.s32.f32 %v1807
        %v2704 = vcvt.s32.f32 %v1808
        %v2705 = vcvt.s32.f32 %v1809
        %v2706 = vcvt.s32.f32 %v1810
        %v2707 = vcvt.s32.f32 %v1811
        %v2708 = vcvt.s32.f32 %v1812
        %v2709 = vcvt.s32.f32 %v1813
        %v2710 = vcvt.s32.f32 %v1814
        %v2711 = vcvt.s32.f32 %v1815
        %v2712 = vcvt.s32.f32 %v1816
        %v2713 = vcvt.s32.f32 %v1817
        %v2714 = vcvt.s32.f32 %v1818
        %v2715 = vcvt.s32.f32 %v1819
        %v2716 = vcvt.s32.f32 %v1820
        %v2717 = vcvt.s32.f32 %v1821
        %v2718 = vcvt.s32.f32 %v1822
        %v2719 = vcvt.s32.f32 %v1823
        %v2720 = vcvt.s32.f32 %v1824
        %v2721 = vcvt.s32.f32 %v1825
        %v2722 = vcvt.s32.f32 %v1826
        %v2723 = vcvt.s32.f32 %v1827
        %v2724 = vcvt.s32.f32 %v1828
        %v2725 = vcvt.s32.f32 %v1829
        %v2726 = vcvt.s32.f32 %v1830
        %v2727 = vcvt.s32.f32 %v1831
        %v2728 = vcvt.s32.f32 %v1832
        %v2729 = vcvt.s32.f32 %v1833
        %v2730 = vcvt.s32.f32 %v1834
        %v2731 = vcvt.s32.f32 %v1835
        %v2732 = vcvt.s32.f32 %v1836
        %v2733 = vcvt.s32.f32 %v1837
        %v2734 = vcvt.s32.f32 %v1838
        %v2735 = vcvt.s32.f32 %v1839
        %v2736 = vcvt.s32.f32 %v1840
        %v2737 = vcvt.s32.f32 %v1841
        %v2738 = vcvt.s32.f32 %v1842
        %v2739 = vcvt.s32.f32 %v1843
        %v2740 = vcvt.s32.f32 %v1844
        %v2741 = vcvt.s32.f32 %v1845
        %v2742 = vcvt.s32.f32 %v1846
        %v2743 = vcvt.s32.f32 %v1847
        %v2744 = vcvt.s32.f32 %v1848
        %v2745 = vcvt.s32.f32 %v1849
        %v2746 = vcvt.s32.f32 %v1850
        %v2747 = vcvt.s32.f32 %v1851
        %v2748 = vcvt.s32.f32 %v1852
        %v2749 = vcvt.s32.f32 %v1853
        %v2750 = vcvt.s32.f32 %v1854
        %v2751 = vcvt.s32.f32 %v1855
        %v2752 = vcvt.s32.f32 %v1856
        %v2753 = vcvt.s32.f32 %v1857
        %v2754 = vcvt.s32.f32 %v1858
        %v2755 = vcvt.s32.f32 %v1859
        %v2756 = vcvt.s32.f32 %v1860
        %v2757 = vcvt.s32.f32 %v1861
        %v2758 = vcvt.s32.f32 %v1862
        %v2759 = vcvt.s32.f32 %v1863
        %v2760 = vcvt.s32.f32 %v1864
        %v2761 = vcvt.s32.f32 %v1865
        %v2762 = vcvt.s32.f32 %v1866
        %v2763 = vcvt.s32.f32 %v1867
        %v2764 = vcvt.s32.f32 %v1868
        %v2765 = vcvt.s32.f32 %v1869
        %v2766 = vcvt.s32.f32 %v1870
        %v2767 = vcvt.s32.f32 %v1871
        %v2768 = vcvt.s32.f32 %v1872
        %v2769 = vcvt.s32.f32 %v1873
        %v2770 = vcvt.s32.f32 %v1874
        %v2771 = vcvt.s32.f32 %v1875
        %v2772 = vcvt.s32.f32 %v1876
        %v2773 = vcvt.s32.f32 %v1877
        %v2774 = vcvt.s32.f32 %v1878
        %v2775 = vcvt.s32.f32 %v1879
        %v2776 = vcvt.s32.f32 %v1880
        %v2777 = vcvt.s32.f32 %v1881
        %v2778 = vcvt.s32.f32 %v1882
        %v2779 = vcvt.s32.f32 %v1883
        %v2780 = vcvt.s32.f32 %v1884
        %v2781 = vcvt.s32.f32 %v1885
        %v2782 = vcvt.s32.f32 %v1886
        %v2783 = vcvt.s32.f32 %v1887
        %v2784 = vcvt.s32.f32 %v1888
        %v2785 = vcvt.s32.f32 %v1889
        %v2786 = vcvt.s32.f32 %v1890
        %v2787 = vcvt.s32.f32 %v1891
        %v2788 = vcvt.s32.f32 %v1892
        %v2789 = vcvt.s32.f32 %v1893
        %v2790 = vcvt.s32.f32 %v1894
        %v2791 = vcvt.s32.f32 %v1895
        %v2792 = vcvt.s32.f32 %v1896
        %v2793 = vcvt.s32.f32 %v1897
        %v2794 = vcvt.s32.f32 %v1898
        %v2795 = vcvt.s32.f32 %v1899
        %v2796 = vcvt.s32.f32 %v1900
        %v2797 = vcvt.s32.f32 %v1901
        %v2798 = vcvt.s32.f32 %v1902
        %v2799 = vcvt.s32.f32 %v1903
        %v2800 = vcvt.s32.f32 %v1904
        %v2801 = vcvt.s32.f32 %v1905
        %v2802 = vcvt.s32.f32 %v1906
        %v2803 = vcvt.s32.f32 %v1907
        %v2804 = vcvt.s32.f32 %v1908
        %v2805 = vcvt.s32.f32 %v1909
        %v2806 = vcvt.s32.f32 %v1910
        %v2807 = vcvt.s32.f32 %v1911
        %v2808 = vcvt.s32.f32 %v1912
        %v2809 = vcvt.s32.f32 %v1913
        %v2810 = vcvt.s32.f32 %v1914
        %v2811 = vcvt.s32.f32 %v1915
        %v2812 = vcvt.s32.f32 %v1916
        %v2813 = vcvt.s32.f32 %v1917
        %v2814 = vcvt.s32.f32 %v1918
        %v2815 = vcvt.s32.f32 %v1919
        %v2816 = vcvt.s32.f32 %v1920
        %v2817 = vcvt.s32.f32 %v1921
        %v2818 = vcvt.s32.f32 %v1922
        %v2819 = vcvt.s32.f32 %v1923
        %v2820 = vcvt.s32.f32 %v1924
        %v2821 = vcvt.s32.f32 %v1925
        %v2822 = vcvt.s32.f32 %v1926
        %v2823 = vcvt.s32.f32 %v1927
        %v2824 = vcvt.s32.f32 %v1928
        %v2825 = vcvt.s32.f32 %v1929
        %v2826 = vcvt.s32.f32 %v1930
        %v2827 = vcvt.s32.f32 %v1931
        %v2828 = vcvt.s32.f32 %v1932
        %v2829 = vcvt.s32.f32 %v1933
        %v2830 = vcvt.s32.f32 %v1934
        %v2831 = vcvt.s32.f32 %v1935
        %v2832 = vcvt.s32.f32 %v1936
        %v2833 = vcvt.s32.f32 %v1937
        %v2834 = vcvt.s32.f32 %v1938
        %v2835 = vcvt.s32.f32 %v1939
        %v2836 = vcvt.s32.f32 %v1940
        %v2837 = vcvt.s32.f32 %v1941
        %v2838 = vcvt.s32.f32 %v1942
        %v2839 = vcvt.s32.f32 %v1943
        %v2840 = vcvt.s32.f32 %v1944
        %v2841 = vcvt.s32.f32 %v1945
        %v2842 = vcvt.s32.f32 %v1946
        %v2843 = vcvt.s32.f32 %v1947
        %v2844 = vcvt.s32.f32 %v1948
        %v2845 = vcvt.s32.f32 %v1949
        %v2846 = vcvt.s32.f32 %v1950
        %v2847 = vcvt.s32.f32 %v1951
        %v2848 = vcvt.s32.f32 %v1952
        %v2849 = vcvt.s32.f32 %v1953
        %v2850 = vcvt.s32.f32 %v1954
        %v2851 = vcvt.s32.f32 %v1955
        %v2852 = vcvt.s32.f32 %v1956
        %v2853 = vcvt.s32.f32 %v1957
        %v2854 = vcvt.s32.f32 %v1958
        %v2855 = vcvt.s32.f32 %v1959
        %v2856 = vcvt.s32.f32 %v1960
        %v2857 = vcvt.s32.f32 %v1961
        %v2858 = vcvt.s32.f32 %v1962
        %v2859 = vcvt.s32.f32 %v1963
        %v2860 = vcvt.s32.f32 %v1964
        %v2861 = vcvt.s32.f32 %v1965
        %v2862 = vcvt.s32.f32 %v1966
        %v2863 = vcvt.s32.f32 %v1967
        %v2864 = vcvt.s32.f32 %v1968
        %v2865 = vcvt.s32.f32 %v1969
        %v2866 = vcvt.s32.f32 %v1970
        %v2867 = vcvt.s32.f32 %v1971
        %v2868 = vcvt.s32.f32 %v1972
        %v2869 = vcvt.s32.f32 %v1973
        %v2870 = vcvt.s32.f32 %v1974
        %v2871 = vcvt.s32.f32 %v1975
        %v2872 = vcvt.s32.f32 %v1976
        %v2873 = vcvt.s32.f32 %v1977
        %v2874 = vcvt.s32.f32 %v1978
        %v2875 = vcvt.s32.f32 %v1979
        %v2876 = vcvt.s32.f32 %v1980
        %v2877 = vcvt.s32.f32 %v1981
        %v2878 = vcvt.s32.f32 %v1982
        %v2879 = vcvt.s32.f32 %v1983
        %v2880 = vcvt.s32.f32 %v1984
        %v2881 = vcvt.s32.f32 %v1985
        %v2882 = vcvt.s32.f32 %v1986
        %v2883 = vcvt.s32.f32 %v1987
        %v2884 = vcvt.s32.f32 %v1988
        %v2885 = vcvt.s32.f32 %v1989
        %v2886 = vcvt.s32.f32 %v1990
        %v2887 = vcvt.s32.f32 %v1991
        %v2888 = vcvt.s32.f32 %v1992
        %v2889 = vcvt.s32.f32 %v1993
        %v2890 = vcvt.s32.f32 %v1994
        %v2891 = vcvt.s32.f32 %v1995
        %v2892 = vcvt.s32.f32 %v1996
        %v2893 = vcvt.s32.f32 %v1997
        %v2894 = vcvt.s32.f32 %v1998
        %v2895 = vcvt.s32.f32 %v1999
        %v2896 = vcvt.s32.f32 %v2000
        %v2897 = vcvt.s32.f32 %v2001
        %v2898 = vcvt.s32.f32 %v2002
        %v2899 = vcvt.s32.f32 %v2003
        %v2900 = vcvt.s32.f32 %v2004
        %v2901 = vcvt.s32.f32 %v2005
        %v2902 = vcvt.s32.f32 %v2006
        %v2903 = vcvt.s32.f32 %v2007
        %v2904 = vcvt.s32.f32 %v2008
        %v2905 = vcvt.s32.f32 %v2009
        %v2906 = vcvt.s32.f32 %v2010
        %v2907 = vcvt.s32.f32 %v2011
        %v2908 = vcvt.s32.f32 %v2012
        %v2909 = vcvt.s32.f32 %v2013
        %v2910 = vcvt.s32.f32 %v2014
        %v2911 = vcvt.s32.f32 %v2015
        %v2912 = vcvt.s32.f32 %v2016
        %v2913 = vcvt.s32.f32 %v2017
        %v2914 = vcvt.s32.f32 %v2018
        %v2915 = vcvt.s32.f32 %v2019
        %v2916 = vcvt.s32.f32 %v2020
        %v2917 = vcvt.s32.f32 %v2021
        %v2918 = vcvt.s32.f32 %v2022
        %v2919 = vcvt.s32.f32 %v2023
        %v2920 = vcvt.s32.f32 %v2024
        %v2921 = vcvt.s32.f32 %v2025
        %v2922 = vcvt.s32.f32 %v2026
        %v2923 = vcvt.s32.f32 %v2027
        %v2924 = vcvt.s32.f32 %v2028
        %v2925 = vcvt.s32.f32 %v2029
        %v2926 = vcvt.s32.f32 %v2030
        %v2927 = vcvt.s32.f32 %v2031
        %v2928 = vcvt.s32.f32 %v2032
        %v2929 = vcvt.s32.f32 %v2033
        %v2930 = vcvt.s32.f32 %v2034
        %v2931 = vcvt.s32.f32 %v2035
        %v2932 = vcvt.s32.f32 %v2036
        %v2933 = vcvt.s32.f32 %v2037
        %v2934 = vcvt.s32.f32 %v2038
        %v2935 = vcvt.s32.f32 %v2039
        %v2936 = vcvt.s32.f32 %v2040
        %v2937 = vcvt.s32.f32 %v2041
        %v2938 = vcvt.s32.f32 %v2042
        %v2939 = vcvt.s32.f32 %v2043
        %v2940 = vcvt.s32.f32 %v2044
        %v2941 = vcvt.s32.f32 %v2045
        %v2942 = vcvt.s32.f32 %v2046
        %v2943 = vcvt.s32.f32 %v2047
        %v2944 = vcvt.s32.f32 %v2048
        %v2945 = vcvt.s32.f32 %v2049
        %v2946 = vcvt.s32.f32 %v2050
        %v2947 = vcvt.s32.f32 %v2051
        %v2948 = vcvt.s32.f32 %v2052
        %v2949 = vcvt.s32.f32 %v2053
        %v2950 = vcvt.s32.f32 %v2054
        %v2951 = vcvt.s32.f32 %v2055
        %v2952 = vcvt.s32.f32 %v2056
        %v2953 = vcvt.s32.f32 %v2057
        %v2954 = vcvt.s32.f32 %v2058
        %v2955 = vcvt.s32.f32 %v2059
        %v2956 = vcvt.s32.f32 %v2060
        %v2957 = vcvt.s32.f32 %v2061
        %v2958 = vcvt.s32.f32 %v2062
        %v2959 = vcvt.s32.f32 %v2063
        %v2960 = vcvt.s32.f32 %v2064
        %v2961 = vcvt.s32.f32 %v2065
        %v2962 = vcvt.s32.f32 %v2066
        %v2963 = vcvt.s32.f32 %v2067
        %v2964 = vcvt.s32.f32 %v2068
        %v2965 = vcvt.s32.f32 %v2069
        %v2966 = vcvt.s32.f32 %v2070
        %v2967 = vcvt.s32.f32 %v2071
        %v2968 = vcvt.s32.f32 %v2072
        %v2969 = vcvt.s32.f32 %v2073
        %v2970 = vcvt.s32.f32 %v2074
        %v2971 = vcvt.s32.f32 %v2075
        %v2972 = vcvt.s32.f32 %v2076
        %v2973 = vcvt.s32.f32 %v2077
        %v2974 = vcvt.s32.f32 %v2078
        %v2975 = vcvt.s32.f32 %v2079
        %v2976 = vcvt.s32.f32 %v2080
        %v2977 = vcvt.s32.f32 %v2081
        %v2978 = vcvt.s32.f32 %v2082
        %v2979 = vcvt.s32.f32 %v2083
        %v2980 = vcvt.s32.f32 %v2084
        %v2981 = vcvt.s32.f32 %v2085
        %v2982 = vcvt.s32.f32 %v2086
        %v2983 = vcvt.s32.f32 %v2087
        %v2984 = vcvt.s32.f32 %v2088
        %v2985 = vcvt.s32.f32 %v2089
        %v2986 = vcvt.s32.f32 %v2090
        %v2987 = vcvt.s32.f32 %v2091
        %v2988 = vcvt.s32.f32 %v2092
        %v2989 = vcvt.s32.f32 %v2093
        %v2990 = vcvt.s32.f32 %v2094
        %v2991 = vcvt.s32.f32 %v2095
        %v2992 = vcvt.s32.f32 %v2096
        %v2993 = vcvt.s32.f32 %v2097
        %v2994 = vcvt.s32.f32 %v2098
        %v2995 = vcvt.s32.f32 %v2099
        %v2996 = vcvt.s32.f32 %v2100
        %v2997 = vcvt.s32.f32 %v2101
        %v2998 = vcvt.s32.f32 %v2102
        %v2999 = vcvt.s32.f32 %v2103
        %v3000 = vcvt.s32.f32 %v2104
        %v3001 = vcvt.s32.f32 %v2105
        %v3002 = vcvt.s32.f32 %v2106
        %v3003 = vcvt.s32.f32 %v2107
        %v3004 = vcvt.s32.f32 %v2108
        %v3005 = vcvt.s32.f32 %v2109
        %v3006 = vcvt.s32.f32 %v2110
        %v3007 = vcvt.s32.f32 %v2111
        %v3008 = vcvt.s32.f32 %v2112
        %v3009 = vcvt.s32.f32 %v2113
        %v3010 = vcvt.s32.f32 %v2114
        %v3011 = vcvt.s32.f32 %v2115
        %v3012 = vcvt.s32.f32 %v2116
        %v3013 = vcvt.s32.f32 %v2117
        %v3014 = vcvt.s32.f32 %v2118
        %v3015 = vcvt.s32.f32 %v2119
        %v3016 = vcvt.s32.f32 %v2120
        %v3017 = vcvt.s32.f32 %v2121
        %v3018 = vcvt.s32.f32 %v2122
        %v3019 = vcvt.s32.f32 %v2123
        %v3020 = vcvt.s32.f32 %v2124
        %v3021 = vcvt.s32.f32 %v2125
        %v3022 = vcvt.s32.f32 %v2126
        %v3023 = vcvt.s32.f32 %v2127
        %v3024 = vcvt.s32.f32 %v2128
        %v3025 = vcvt.s32.f32 %v2129
        %v3026 = vcvt.s32.f32 %v2130
        %v3027 = vcvt.s32.f32 %v2131
        %v3028 = vcvt.s32.f32 %v2132
        %v3029 = vcvt.s32.f32 %v2133
        %v3030 = vcvt.s32.f32 %v2134
        %v3031 = vcvt.s32.f32 %v2135
        %v3032 = vcvt.s32.f32 %v2136
        %v3033 = vcvt.s32.f32 %v2137
        %v3034 = vcvt.s32.f32 %v2138
        %v3035 = vcvt.s32.f32 %v2139
        %v3036 = vcvt.s32.f32 %v2140
        %v3037 = vcvt.s32.f32 %v2141
        %v3038 = vcvt.s32.f32 %v2142
        %v3039 = vcvt.s32.f32 %v2143
        %v3040 = vcvt.s32.f32 %v2144
        %v3041 = vcvt.s32.f32 %v2145
        %v3042 = vcvt.s32.f32 %v2146
        %v3043 = vpack.c.bf16 %v2154, %v2147
        %v3044 = vpack.c.bf16 %v2155, %v2148
        %v3045 = vpack.c.bf16 %v2156, %v2149
        %v3046 = vpack.c.bf16 %v2157, %v2150
        %v3047 = vpack.c.bf16 %v2158, %v2151
        %v3048 = vpack.c.bf16 %v2159, %v2152
        %v3049 = vpack.c.bf16 %v2160, %v2153
        %v3050 = vpack.c.bf16 %v2168, %v2161
        %v3051 = vpack.c.bf16 %v2169, %v2162
        %v3052 = vpack.c.bf16 %v2170, %v2163
        %v3053 = vpack.c.bf16 %v2171, %v2164
        %v3054 = vpack.c.bf16 %v2172, %v2165
        %v3055 = vpack.c.bf16 %v2173, %v2166
        %v3056 = vpack.c.bf16 %v2174, %v2167
        %v3057 = vpack.c.bf16 %v2182, %v2175
        %v3058 = vpack.c.bf16 %v2183, %v2176
        %v3059 = vpack.c.bf16 %v2184, %v2177
        %v3060 = vpack.c.bf16 %v2185, %v2178
        %v3061 = vpack.c.bf16 %v2186, %v2179
        %v3062 = vpack.c.bf16 %v2187, %v2180
        %v3063 = vpack.c.bf16 %v2188, %v2181
        %v3064 = vpack.c.bf16 %v2196, %v2189
        %v3065 = vpack.c.bf16 %v2197, %v2190
        %v3066 = vpack.c.bf16 %v2198, %v2191
        %v3067 = vpack.c.bf16 %v2199, %v2192
        %v3068 = vpack.c.bf16 %v2200, %v2193
        %v3069 = vpack.c.bf16 %v2201, %v2194
        %v3070 = vpack.c.bf16 %v2202, %v2195
        %v3071 = vpack.c.bf16 %v2210, %v2203
        %v3072 = vpack.c.bf16 %v2211, %v2204
        %v3073 = vpack.c.bf16 %v2212, %v2205
        %v3074 = vpack.c.bf16 %v2213, %v2206
        %v3075 = vpack.c.bf16 %v2214, %v2207
        %v3076 = vpack.c.bf16 %v2215, %v2208
        %v3077 = vpack.c.bf16 %v2216, %v2209
        %v3078 = vpack.c.bf16 %v2224, %v2217
        %v3079 = vpack.c.bf16 %v2225, %v2218
        %v3080 = vpack.c.bf16 %v2226, %v2219
        %v3081 = vpack.c.bf16 %v2227, %v2220
        %v3082 = vpack.c.bf16 %v2228, %v2221
        %v3083 = vpack.c.bf16 %v2229, %v2222
        %v3084 = vpack.c.bf16 %v2230, %v2223
        %v3085 = vpack.c.bf16 %v2238, %v2231
        %v3086 = vpack.c.bf16 %v2239, %v2232
        %v3087 = vpack.c.bf16 %v2240, %v2233
        %v3088 = vpack.c.bf16 %v2241, %v2234
        %v3089 = vpack.c.bf16 %v2242, %v2235
        %v3090 = vpack.c.bf16 %v2243, %v2236
        %v3091 = vpack.c.bf16 %v2244, %v2237
        %v3092 = vpack.c.bf16 %v2252, %v2245
        %v3093 = vpack.c.bf16 %v2253, %v2246
        %v3094 = vpack.c.bf16 %v2254, %v2247
        %v3095 = vpack.c.bf16 %v2255, %v2248
        %v3096 = vpack.c.bf16 %v2256, %v2249
        %v3097 = vpack.c.bf16 %v2257, %v2250
        %v3098 = vpack.c.bf16 %v2258, %v2251
        %v3099 = vpack.c.bf16 %v2266, %v2259
        %v3100 = vpack.c.bf16 %v2267, %v2260
        %v3101 = vpack.c.bf16 %v2268, %v2261
        %v3102 = vpack.c.bf16 %v2269, %v2262
        %v3103 = vpack.c.bf16 %v2270, %v2263
        %v3104 = vpack.c.bf16 %v2271, %v2264
        %v3105 = vpack.c.bf16 %v2272, %v2265
        %v3106 = vpack.c.bf16 %v2280, %v2273
        %v3107 = vpack.c.bf16 %v2281, %v2274
        %v3108 = vpack.c.bf16 %v2282, %v2275
        %v3109 = vpack.c.bf16 %v2283, %v2276
        %v3110 = vpack.c.bf16 %v2284, %v2277
        %v3111 = vpack.c.bf16 %v2285, %v2278
        %v3112 = vpack.c.bf16 %v2286, %v2279
        %v3113 = vpack.c.bf16 %v2294, %v2287
        %v3114 = vpack.c.bf16 %v2295, %v2288
        %v3115 = vpack.c.bf16 %v2296, %v2289
        %v3116 = vpack.c.bf16 %v2297, %v2290
        %v3117 = vpack.c.bf16 %v2298, %v2291
        %v3118 = vpack.c.bf16 %v2299, %v2292
        %v3119 = vpack.c.bf16 %v2300, %v2293
        %v3120 = vpack.c.bf16 %v2308, %v2301
        %v3121 = vpack.c.bf16 %v2309, %v2302
        %v3122 = vpack.c.bf16 %v2310, %v2303
        %v3123 = vpack.c.bf16 %v2311, %v2304
        %v3124 = vpack.c.bf16 %v2312, %v2305
        %v3125 = vpack.c.bf16 %v2313, %v2306
        %v3126 = vpack.c.bf16 %v2314, %v2307
        %v3127 = vpack.c.bf16 %v2322, %v2315
        %v3128 = vpack.c.bf16 %v2323, %v2316
        %v3129 = vpack.c.bf16 %v2324, %v2317
        %v3130 = vpack.c.bf16 %v2325, %v2318
        %v3131 = vpack.c.bf16 %v2326, %v2319
        %v3132 = vpack.c.bf16 %v2327, %v2320
        %v3133 = vpack.c.bf16 %v2328, %v2321
        %v3134 = vpack.c.bf16 %v2336, %v2329
        %v3135 = vpack.c.bf16 %v2337, %v2330
        %v3136 = vpack.c.bf16 %v2338, %v2331
        %v3137 = vpack.c.bf16 %v2339, %v2332
        %v3138 = vpack.c.bf16 %v2340, %v2333
        %v3139 = vpack.c.bf16 %v2341, %v2334
        %v3140 = vpack.c.bf16 %v2342, %v2335
        %v3141 = vpack.c.bf16 %v2350, %v2343
        %v3142 = vpack.c.bf16 %v2351, %v2344
        %v3143 = vpack.c.bf16 %v2352, %v2345
        %v3144 = vpack.c.bf16 %v2353, %v2346
        %v3145 = vpack.c.bf16 %v2354, %v2347
        %v3146 = vpack.c.bf16 %v2355, %v2348
        %v3147 = vpack.c.bf16 %v2356, %v2349
        %v3148 = vpack.c.bf16 %v2364, %v2357
        %v3149 = vpack.c.bf16 %v2365, %v2358
        %v3150 = vpack.c.bf16 %v2366, %v2359
        %v3151 = vpack.c.bf16 %v2367, %v2360
        %v3152 = vpack.c.bf16 %v2368, %v2361
        %v3153 = vpack.c.bf16 %v2369, %v2362
        %v3154 = vpack.c.bf16 %v2370, %v2363
        %v3155 = vpack.c.bf16 %v2378, %v2371
        %v3156 = vpack.c.bf16 %v2379, %v2372
        %v3157 = vpack.c.bf16 %v2380, %v2373
        %v3158 = vpack.c.bf16 %v2381, %v2374
        %v3159 = vpack.c.bf16 %v2382, %v2375
        %v3160 = vpack.c.bf16 %v2383, %v2376
        %v3161 = vpack.c.bf16 %v2384, %v2377
        %v3162 = vpack.c.bf16 %v2392, %v2385
        %v3163 = vpack.c.bf16 %v2393, %v2386
        %v3164 = vpack.c.bf16 %v2394, %v2387
        %v3165 = vpack.c.bf16 %v2395, %v2388
        %v3166 = vpack.c.bf16 %v2396, %v2389
        %v3167 = vpack.c.bf16 %v2397, %v2390
        %v3168 = vpack.c.bf16 %v2398, %v2391
        %v3169 = vpack.c.bf16 %v2406, %v2399
        %v3170 = vpack.c.bf16 %v2407, %v2400
        %v3171 = vpack.c.bf16 %v2408, %v2401
        %v3172 = vpack.c.bf16 %v2409, %v2402
        %v3173 = vpack.c.bf16 %v2410, %v2403
        %v3174 = vpack.c.bf16 %v2411, %v2404
        %v3175 = vpack.c.bf16 %v2412, %v2405
        %v3176 = vpack.c.bf16 %v2420, %v2413
        %v3177 = vpack.c.bf16 %v2421, %v2414
        %v3178 = vpack.c.bf16 %v2422, %v2415
        %v3179 = vpack.c.bf16 %v2423, %v2416
        %v3180 = vpack.c.bf16 %v2424, %v2417
        %v3181 = vpack.c.bf16 %v2425, %v2418
        %v3182 = vpack.c.bf16 %v2426, %v2419
        %v3183 = vpack.c.bf16 %v2434, %v2427
        %v3184 = vpack.c.bf16 %v2435, %v2428
        %v3185 = vpack.c.bf16 %v2436, %v2429
        %v3186 = vpack.c.bf16 %v2437, %v2430
        %v3187 = vpack.c.bf16 %v2438, %v2431
        %v3188 = vpack.c.bf16 %v2439, %v2432
        %v3189 = vpack.c.bf16 %v2440, %v2433
        %v3190 = vpack.c.bf16 %v2448, %v2441
        %v3191 = vpack.c.bf16 %v2449, %v2442
        %v3192 = vpack.c.bf16 %v2450, %v2443
        %v3193 = vpack.c.bf16 %v2451, %v2444
        %v3194 = vpack.c.bf16 %v2452, %v2445
        %v3195 = vpack.c.bf16 %v2453, %v2446
        %v3196 = vpack.c.bf16 %v2454, %v2447
        %v3197 = vpack.c.bf16 %v2462, %v2455
        %v3198 = vpack.c.bf16 %v2463, %v2456
        %v3199 = vpack.c.bf16 %v2464, %v2457
        %v3200 = vpack.c.bf16 %v2465, %v2458
        %v3201 = vpack.c.bf16 %v2466, %v2459
        %v3202 = vpack.c.bf16 %v2467, %v2460
        %v3203 = vpack.c.bf16 %v2468, %v2461
        %v3204 = vpack.c.bf16 %v2476, %v2469
        %v3205 = vpack.c.bf16 %v2477, %v2470
        %v3206 = vpack.c.bf16 %v2478, %v2471
        %v3207 = vpack.c.bf16 %v2479, %v2472
        %v3208 = vpack.c.bf16 %v2480, %v2473
        %v3209 = vpack.c.bf16 %v2481, %v2474
        %v3210 = vpack.c.bf16 %v2482, %v2475
        %v3211 = vpack.c.bf16 %v2490, %v2483
        %v3212 = vpack.c.bf16 %v2491, %v2484
        %v3213 = vpack.c.bf16 %v2492, %v2485
        %v3214 = vpack.c.bf16 %v2493, %v2486
        %v3215 = vpack.c.bf16 %v2494, %v2487
        %v3216 = vpack.c.bf16 %v2495, %v2488
        %v3217 = vpack.c.bf16 %v2496, %v2489
        %v3218 = vpack.c.bf16 %v2504, %v2497
        %v3219 = vpack.c.bf16 %v2505, %v2498
        %v3220 = vpack.c.bf16 %v2506, %v2499
        %v3221 = vpack.c.bf16 %v2507, %v2500
        %v3222 = vpack.c.bf16 %v2508, %v2501
        %v3223 = vpack.c.bf16 %v2509, %v2502
        %v3224 = vpack.c.bf16 %v2510, %v2503
        %v3225 = vpack.c.bf16 %v2518, %v2511
        %v3226 = vpack.c.bf16 %v2519, %v2512
        %v3227 = vpack.c.bf16 %v2520, %v2513
        %v3228 = vpack.c.bf16 %v2521, %v2514
        %v3229 = vpack.c.bf16 %v2522, %v2515
        %v3230 = vpack.c.bf16 %v2523, %v2516
        %v3231 = vpack.c.bf16 %v2524, %v2517
        %v3232 = vpack.c.bf16 %v2532, %v2525
        %v3233 = vpack.c.bf16 %v2533, %v2526
        %v3234 = vpack.c.bf16 %v2534, %v2527
        %v3235 = vpack.c.bf16 %v2535, %v2528
        %v3236 = vpack.c.bf16 %v2536, %v2529
        %v3237 = vpack.c.bf16 %v2537, %v2530
        %v3238 = vpack.c.bf16 %v2538, %v2531
        %v3239 = vpack.c.bf16 %v2546, %v2539
        %v3240 = vpack.c.bf16 %v2547, %v2540
        %v3241 = vpack.c.bf16 %v2548, %v2541
        %v3242 = vpack.c.bf16 %v2549, %v2542
        %v3243 = vpack.c.bf16 %v2550, %v2543
        %v3244 = vpack.c.bf16 %v2551, %v2544
        %v3245 = vpack.c.bf16 %v2552, %v2545
        %v3246 = vpack.c.bf16 %v2560, %v2553
        %v3247 = vpack.c.bf16 %v2561, %v2554
        %v3248 = vpack.c.bf16 %v2562, %v2555
        %v3249 = vpack.c.bf16 %v2563, %v2556
        %v3250 = vpack.c.bf16 %v2564, %v2557
        %v3251 = vpack.c.bf16 %v2565, %v2558
        %v3252 = vpack.c.bf16 %v2566, %v2559
        %v3253 = vpack.c.bf16 %v2574, %v2567
        %v3254 = vpack.c.bf16 %v2575, %v2568
        %v3255 = vpack.c.bf16 %v2576, %v2569
        %v3256 = vpack.c.bf16 %v2577, %v2570
        %v3257 = vpack.c.bf16 %v2578, %v2571
        %v3258 = vpack.c.bf16 %v2579, %v2572
        %v3259 = vpack.c.bf16 %v2580, %v2573
        %v3260 = vpack.c.bf16 %v2588, %v2581
        %v3261 = vpack.c.bf16 %v2589, %v2582
        %v3262 = vpack.c.bf16 %v2590, %v2583
        %v3263 = vpack.c.bf16 %v2591, %v2584
        %v3264 = vpack.c.bf16 %v2592, %v2585
        %v3265 = vpack.c.bf16 %v2593, %v2586
        %v3266 = vpack.c.bf16 %v2594, %v2587
        %v3267 = vpack.c.bf16 %v2602, %v2595
        %v3268 = vpack.c.bf16 %v2603, %v2596
        %v3269 = vpack.c.bf16 %v2604, %v2597
        %v3270 = vpack.c.bf16 %v2605, %v2598
        %v3271 = vpack.c.bf16 %v2606, %v2599
        %v3272 = vpack.c.bf16 %v2607, %v2600
        %v3273 = vpack.c.bf16 %v2608, %v2601
        %v3274 = vpack.c.bf16 %v2616, %v2609
        %v3275 = vpack.c.bf16 %v2617, %v2610
        %v3276 = vpack.c.bf16 %v2618, %v2611
        %v3277 = vpack.c.bf16 %v2619, %v2612
        %v3278 = vpack.c.bf16 %v2620, %v2613
        %v3279 = vpack.c.bf16 %v2621, %v2614
        %v3280 = vpack.c.bf16 %v2622, %v2615
        %v3281 = vpack.c.bf16 %v2630, %v2623
        %v3282 = vpack.c.bf16 %v2631, %v2624
        %v3283 = vpack.c.bf16 %v2632, %v2625
        %v3284 = vpack.c.bf16 %v2633, %v2626
        %v3285 = vpack.c.bf16 %v2634, %v2627
        %v3286 = vpack.c.bf16 %v2635, %v2628
        %v3287 = vpack.c.bf16 %v2636, %v2629
        %v3288 = vpack.c.bf16 %v2644, %v2637
        %v3289 = vpack.c.bf16 %v2645, %v2638
        %v3290 = vpack.c.bf16 %v2646, %v2639
        %v3291 = vpack.c.bf16 %v2647, %v2640
        %v3292 = vpack.c.bf16 %v2648, %v2641
        %v3293 = vpack.c.bf16 %v2649, %v2642
        %v3294 = vpack.c.bf16 %v2650, %v2643
        %v3295 = vpack.c.bf16 %v2658, %v2651
        %v3296 = vpack.c.bf16 %v2659, %v2652
        %v3297 = vpack.c.bf16 %v2660, %v2653
        %v3298 = vpack.c.bf16 %v2661, %v2654
        %v3299 = vpack.c.bf16 %v2662, %v2655
        %v3300 = vpack.c.bf16 %v2663, %v2656
        %v3301 = vpack.c.bf16 %v2664, %v2657
        %v3302 = vpack.c.bf16 %v2672, %v2665
        %v3303 = vpack.c.bf16 %v2673, %v2666
        %v3304 = vpack.c.bf16 %v2674, %v2667
        %v3305 = vpack.c.bf16 %v2675, %v2668
        %v3306 = vpack.c.bf16 %v2676, %v2669
        %v3307 = vpack.c.bf16 %v2677, %v2670
        %v3308 = vpack.c.bf16 %v2678, %v2671
        %v3309 = vpack.c.bf16 %v2686, %v2679
        %v3310 = vpack.c.bf16 %v2687, %v2680
        %v3311 = vpack.c.bf16 %v2688, %v2681
        %v3312 = vpack.c.bf16 %v2689, %v2682
        %v3313 = vpack.c.bf16 %v2690, %v2683
        %v3314 = vpack.c.bf16 %v2691, %v2684
        %v3315 = vpack.c.bf16 %v2692, %v2685
        %v3316 = vpack.c.bf16 %v2700, %v2693
        %v3317 = vpack.c.bf16 %v2701, %v2694
        %v3318 = vpack.c.bf16 %v2702, %v2695
        %v3319 = vpack.c.bf16 %v2703, %v2696
        %v3320 = vpack.c.bf16 %v2704, %v2697
        %v3321 = vpack.c.bf16 %v2705, %v2698
        %v3322 = vpack.c.bf16 %v2706, %v2699
        %v3323 = vpack.c.bf16 %v2714, %v2707
        %v3324 = vpack.c.bf16 %v2715, %v2708
        %v3325 = vpack.c.bf16 %v2716, %v2709
        %v3326 = vpack.c.bf16 %v2717, %v2710
        %v3327 = vpack.c.bf16 %v2718, %v2711
        %v3328 = vpack.c.bf16 %v2719, %v2712
        %v3329 = vpack.c.bf16 %v2720, %v2713
        %v3330 = vpack.c.bf16 %v2728, %v2721
        %v3331 = vpack.c.bf16 %v2729, %v2722
        %v3332 = vpack.c.bf16 %v2730, %v2723
        %v3333 = vpack.c.bf16 %v2731, %v2724
        %v3334 = vpack.c.bf16 %v2732, %v2725
        %v3335 = vpack.c.bf16 %v2733, %v2726
        %v3336 = vpack.c.bf16 %v2734, %v2727
        %v3337 = vpack.c.bf16 %v2742, %v2735
        %v3338 = vpack.c.bf16 %v2743, %v2736
        %v3339 = vpack.c.bf16 %v2744, %v2737
        %v3340 = vpack.c.bf16 %v2745, %v2738
        %v3341 = vpack.c.bf16 %v2746, %v2739
        %v3342 = vpack.c.bf16 %v2747, %v2740
        %v3343 = vpack.c.bf16 %v2748, %v2741
        %v3344 = vpack.c.bf16 %v2756, %v2749
        %v3345 = vpack.c.bf16 %v2757, %v2750
        %v3346 = vpack.c.bf16 %v2758, %v2751
        %v3347 = vpack.c.bf16 %v2759, %v2752
        %v3348 = vpack.c.bf16 %v2760, %v2753
        %v3349 = vpack.c.bf16 %v2761, %v2754
        %v3350 = vpack.c.bf16 %v2762, %v2755
        %v3351 = vpack.c.bf16 %v2770, %v2763
        %v3352 = vpack.c.bf16 %v2771, %v2764
        %v3353 = vpack.c.bf16 %v2772, %v2765
        %v3354 = vpack.c.bf16 %v2773, %v2766
        %v3355 = vpack.c.bf16 %v2774, %v2767
        %v3356 = vpack.c.bf16 %v2775, %v2768
        %v3357 = vpack.c.bf16 %v2776, %v2769
        %v3358 = vpack.c.bf16 %v2784, %v2777
        %v3359 = vpack.c.bf16 %v2785, %v2778
        %v3360 = vpack.c.bf16 %v2786, %v2779
        %v3361 = vpack.c.bf16 %v2787, %v2780
        %v3362 = vpack.c.bf16 %v2788, %v2781
        %v3363 = vpack.c.bf16 %v2789, %v2782
        %v3364 = vpack.c.bf16 %v2790, %v2783
        %v3365 = vpack.c.bf16 %v2798, %v2791
        %v3366 = vpack.c.bf16 %v2799, %v2792
        %v3367 = vpack.c.bf16 %v2800, %v2793
        %v3368 = vpack.c.bf16 %v2801, %v2794
        %v3369 = vpack.c.bf16 %v2802, %v2795
        %v3370 = vpack.c.bf16 %v2803, %v2796
        %v3371 = vpack.c.bf16 %v2804, %v2797
        %v3372 = vpack.c.bf16 %v2812, %v2805
        %v3373 = vpack.c.bf16 %v2813, %v2806
        %v3374 = vpack.c.bf16 %v2814, %v2807
        %v3375 = vpack.c.bf16 %v2815, %v2808
        %v3376 = vpack.c.bf16 %v2816, %v2809
        %v3377 = vpack.c.bf16 %v2817, %v2810
        %v3378 = vpack.c.bf16 %v2818, %v2811
        %v3379 = vpack.c.bf16 %v2826, %v2819
        %v3380 = vpack.c.bf16 %v2827, %v2820
        %v3381 = vpack.c.bf16 %v2828, %v2821
        %v3382 = vpack.c.bf16 %v2829, %v2822
        %v3383 = vpack.c.bf16 %v2830, %v2823
        %v3384 = vpack.c.bf16 %v2831, %v2824
        %v3385 = vpack.c.bf16 %v2832, %v2825
        %v3386 = vpack.c.bf16 %v2840, %v2833
        %v3387 = vpack.c.bf16 %v2841, %v2834
        %v3388 = vpack.c.bf16 %v2842, %v2835
        %v3389 = vpack.c.bf16 %v2843, %v2836
        %v3390 = vpack.c.bf16 %v2844, %v2837
        %v3391 = vpack.c.bf16 %v2845, %v2838
        %v3392 = vpack.c.bf16 %v2846, %v2839
        %v3393 = vpack.c.bf16 %v2854, %v2847
        %v3394 = vpack.c.bf16 %v2855, %v2848
        %v3395 = vpack.c.bf16 %v2856, %v2849
        %v3396 = vpack.c.bf16 %v2857, %v2850
        %v3397 = vpack.c.bf16 %v2858, %v2851
        %v3398 = vpack.c.bf16 %v2859, %v2852
        %v3399 = vpack.c.bf16 %v2860, %v2853
        %v3400 = vpack.c.bf16 %v2868, %v2861
        %v3401 = vpack.c.bf16 %v2869, %v2862
        %v3402 = vpack.c.bf16 %v2870, %v2863
        %v3403 = vpack.c.bf16 %v2871, %v2864
        %v3404 = vpack.c.bf16 %v2872, %v2865
        %v3405 = vpack.c.bf16 %v2873, %v2866
        %v3406 = vpack.c.bf16 %v2874, %v2867
        %v3407 = vpack.c.bf16 %v2882, %v2875
        %v3408 = vpack.c.bf16 %v2883, %v2876
        %v3409 = vpack.c.bf16 %v2884, %v2877
        %v3410 = vpack.c.bf16 %v2885, %v2878
        %v3411 = vpack.c.bf16 %v2886, %v2879
        %v3412 = vpack.c.bf16 %v2887, %v2880
        %v3413 = vpack.c.bf16 %v2888, %v2881
        %v3414 = vpack.c.bf16 %v2896, %v2889
        %v3415 = vpack.c.bf16 %v2897, %v2890
        %v3416 = vpack.c.bf16 %v2898, %v2891
        %v3417 = vpack.c.bf16 %v2899, %v2892
        %v3418 = vpack.c.bf16 %v2900, %v2893
        %v3419 = vpack.c.bf16 %v2901, %v2894
        %v3420 = vpack.c.bf16 %v2902, %v2895
        %v3421 = vpack.c.bf16 %v2910, %v2903
        %v3422 = vpack.c.bf16 %v2911, %v2904
        %v3423 = vpack.c.bf16 %v2912, %v2905
        %v3424 = vpack.c.bf16 %v2913, %v2906
        %v3425 = vpack.c.bf16 %v2914, %v2907
        %v3426 = vpack.c.bf16 %v2915, %v2908
        %v3427 = vpack.c.bf16 %v2916, %v2909
        %v3428 = vpack.c.bf16 %v2924, %v2917
        %v3429 = vpack.c.bf16 %v2925, %v2918
        %v3430 = vpack.c.bf16 %v2926, %v2919
        %v3431 = vpack.c.bf16 %v2927, %v2920
        %v3432 = vpack.c.bf16 %v2928, %v2921
        %v3433 = vpack.c.bf16 %v2929, %v2922
        %v3434 = vpack.c.bf16 %v2930, %v2923
        %v3435 = vpack.c.bf16 %v2938, %v2931
        %v3436 = vpack.c.bf16 %v2939, %v2932
        %v3437 = vpack.c.bf16 %v2940, %v2933
        %v3438 = vpack.c.bf16 %v2941, %v2934
        %v3439 = vpack.c.bf16 %v2942, %v2935
        %v3440 = vpack.c.bf16 %v2943, %v2936
        %v3441 = vpack.c.bf16 %v2944, %v2937
        %v3442 = vpack.c.bf16 %v2952, %v2945
        %v3443 = vpack.c.bf16 %v2953, %v2946
        %v3444 = vpack.c.bf16 %v2954, %v2947
        %v3445 = vpack.c.bf16 %v2955, %v2948
        %v3446 = vpack.c.bf16 %v2956, %v2949
        %v3447 = vpack.c.bf16 %v2957, %v2950
        %v3448 = vpack.c.bf16 %v2958, %v2951
        %v3449 = vpack.c.bf16 %v2966, %v2959
        %v3450 = vpack.c.bf16 %v2967, %v2960
        %v3451 = vpack.c.bf16 %v2968, %v2961
        %v3452 = vpack.c.bf16 %v2969, %v2962
        %v3453 = vpack.c.bf16 %v2970, %v2963
        %v3454 = vpack.c.bf16 %v2971, %v2964
        %v3455 = vpack.c.bf16 %v2972, %v2965
        %v3456 = vpack.c.bf16 %v2980, %v2973
        %v3457 = vpack.c.bf16 %v2981, %v2974
        %v3458 = vpack.c.bf16 %v2982, %v2975
        %v3459 = vpack.c.bf16 %v2983, %v2976
        %v3460 = vpack.c.bf16 %v2984, %v2977
        %v3461 = vpack.c.bf16 %v2985, %v2978
        %v3462 = vpack.c.bf16 %v2986, %v2979
        %v3463 = vpack.c.bf16 %v2994, %v2987
        %v3464 = vpack.c.bf16 %v2995, %v2988
        %v3465 = vpack.c.bf16 %v2996, %v2989
        %v3466 = vpack.c.bf16 %v2997, %v2990
        %v3467 = vpack.c.bf16 %v2998, %v2991
        %v3468 = vpack.c.bf16 %v2999, %v2992
        %v3469 = vpack.c.bf16 %v3000, %v2993
        %v3470 = vpack.c.bf16 %v3008, %v3001
        %v3471 = vpack.c.bf16 %v3009, %v3002
        %v3472 = vpack.c.bf16 %v3010, %v3003
        %v3473 = vpack.c.bf16 %v3011, %v3004
        %v3474 = vpack.c.bf16 %v3012, %v3005
        %v3475 = vpack.c.bf16 %v3013, %v3006
        %v3476 = vpack.c.bf16 %v3014, %v3007
        %v3477 = vpack.c.bf16 %v3022, %v3015
        %v3478 = vpack.c.bf16 %v3023, %v3016
        %v3479 = vpack.c.bf16 %v3024, %v3017
        %v3480 = vpack.c.bf16 %v3025, %v3018
        %v3481 = vpack.c.bf16 %v3026, %v3019
        %v3482 = vpack.c.bf16 %v3027, %v3020
        %v3483 = vpack.c.bf16 %v3028, %v3021
        %v3484 = vpack.c.bf16 %v3036, %v3029
        %v3485 = vpack.c.bf16 %v3037, %v3030
        %v3486 = vpack.c.bf16 %v3038, %v3031
        %v3487 = vpack.c.bf16 %v3039, %v3032
        %v3488 = vpack.c.bf16 %v3040, %v3033
        %v3489 = vpack.c.bf16 %v3041, %v3034
        %v3490 = vpack.c.bf16 %v3042, %v3035
        %v3507 = vunpack.c.l.b16 %v175
        %v3508 = vunpack.c.h.b16 %v175
        %v3509 = vunpack.c.l.b16 %v176
        %v3510 = vunpack.c.h.b16 %v176
        %v3511 = vunpack.c.l.b16 %v177
        %v3512 = vunpack.c.h.b16 %v177
        %v3513 = vunpack.c.l.b16 %v178
        %v3514 = vunpack.c.h.b16 %v178
        %v3515 = vunpack.c.l.b16 %v179
        %v3516 = vunpack.c.h.b16 %v179
        %v3517 = vunpack.c.l.b16 %v180
        %v3518 = vunpack.c.h.b16 %v180
        %v3519 = vunpack.c.l.b16 %v181
        %v3520 = vunpack.c.h.b16 %v181
        %v3521 = vunpack.c.l.b16 %v182
        %v3522 = vunpack.c.h.b16 %v182
        %v3523 = vunpack.c.l.b16 %v183
        %v3524 = vunpack.c.h.b16 %v183
        %v3525 = vunpack.c.l.b16 %v184
        %v3526 = vunpack.c.h.b16 %v184
        %v3527 = vunpack.c.l.b16 %v185
        %v3528 = vunpack.c.h.b16 %v185
        %v3529 = vunpack.c.l.b16 %v186
        %v3530 = vunpack.c.h.b16 %v186
        %v3531 = vunpack.c.l.b16 %v187
        %v3532 = vunpack.c.h.b16 %v187
        %v3533 = vunpack.c.l.b16 %v188
        %v3534 = vunpack.c.h.b16 %v188
        %v3535 = vunpack.c.l.b16 %v189
        %v3536 = vunpack.c.h.b16 %v189
        %v3537 = vunpack.c.l.b16 %v190
        %v3538 = vunpack.c.h.b16 %v190
        %v3539 = vpack.c.b16 %v3515, %v3507
        %v3540 = vpack.c.b16 %v3516, %v3508
        %v3541 = vpack.c.b16 %v3517, %v3509
        %v3542 = vpack.c.b16 %v3518, %v3510
        %v3543 = vpack.c.b16 %v3519, %v3511
        %v3544 = vpack.c.b16 %v3520, %v3512
        %v3545 = vpack.c.b16 %v3521, %v3513
        %v3546 = vpack.c.b16 %v3522, %v3514
        %v3547 = vpack.c.b16 %v3531, %v3523
        %v3548 = vpack.c.b16 %v3532, %v3524
        %v3549 = vpack.c.b16 %v3533, %v3525
        %v3550 = vpack.c.b16 %v3534, %v3526
        %v3551 = vpack.c.b16 %v3535, %v3527
        %v3552 = vpack.c.b16 %v3536, %v3528
        %v3553 = vpack.c.b16 %v3537, %v3529
        %v3554 = vpack.c.b16 %v3538, %v3530
        %3571 = vmatprep.subr.bf16.mxu0 %v3044
        %3572 = vmatpush1.bf16.msra.mxu0 %v3043
        %3573 = vmatprep.subr.bf16.mxu0 %v3051
        %3574 = vmatpush1.bf16.msra.mxu0 %v3050
        %3575 = vmatprep.subr.bf16.mxu0 %v3058
        %3576 = vmatpush1.bf16.msra.mxu0 %v3057
        %3577 = vmatprep.subr.bf16.mxu0 %v3065
        %3578 = vmatpush1.bf16.msra.mxu0 %v3064
        %3579 = vmatprep.subr.bf16.mxu0 %v3072
        %3580 = vmatpush1.bf16.msra.mxu0 %v3071
        %3581 = vmatprep.subr.bf16.mxu0 %v3079
        %3582 = vmatpush1.bf16.msra.mxu0 %v3078
        %3583 = vmatprep.subr.bf16.mxu0 %v3086
        %3584 = vmatpush1.bf16.msra.mxu0 %v3085
        %3585 = vmatprep.subr.bf16.mxu0 %v3093
        %3586 = vmatpush1.bf16.msra.mxu0 %v3092
        %3587 = vmatprep.subr.bf16.mxu0 %v3100
        %3588 = vmatpush1.bf16.msra.mxu0 %v3099
        %3589 = vmatprep.subr.bf16.mxu0 %v3107
        %3590 = vmatpush1.bf16.msra.mxu0 %v3106
        %3591 = vmatprep.subr.bf16.mxu0 %v3114
        %3592 = vmatpush1.bf16.msra.mxu0 %v3113
        %3593 = vmatprep.subr.bf16.mxu0 %v3121
        %3594 = vmatpush1.bf16.msra.mxu0 %v3120
        %3595 = vmatprep.subr.bf16.mxu0 %v3128
        %3596 = vmatpush1.bf16.msra.mxu0 %v3127
        %3597 = vmatprep.subr.bf16.mxu0 %v3135
        %3598 = vmatpush1.bf16.msra.mxu0 %v3134
        %3599 = vmatprep.subr.bf16.mxu0 %v3142
        %3600 = vmatpush1.bf16.msra.mxu0 %v3141
        %3601 = vmatprep.subr.bf16.mxu0 %v3149
        %3602 = vmatpush1.bf16.msra.mxu0 %v3148
        %3603 = vmatprep.mubr.bf16.mxu0 %v3540
        %3604 = vmatmul.mubr.bf16.gmra.mrb[0].mxu0 %v3539
        %v3605 = vpop.f32.mrb[0].mxu0
        %v3606 = vadd.f32 0.0, %v3605
        %v3607 = vpop.f32.mrb[0].mxu0
        %v3608 = vadd.f32 0.0, %v3607
        %v3609 = vpop.f32.mrb[0].mxu0
        %v3610 = vadd.f32 0.0, %v3609
        %v3611 = vpop.f32.mrb[0].mxu0
        %v3612 = vadd.f32 0.0, %v3611
        %3613 = vmatprep.mubr.bf16.mxu0 %v3548
        %3614 = vmatmul.mubr.bf16.gmra.mrb[0].mxu0 %v3547
        %v3615 = vpop.f32.mrb[0].mxu0
        %v3616 = vadd.f32 0.0, %v3615
        %v3617 = vpop.f32.mrb[0].mxu0
        %v3618 = vadd.f32 0.0, %v3617
        %v3619 = vpop.f32.mrb[0].mxu0
        %v3620 = vadd.f32 0.0, %v3619
        %v3621 = vpop.f32.mrb[0].mxu0
        %v3622 = vadd.f32 0.0, %v3621
        %3623 = vdwg.mxu0
        %3624 = vmatprep.subr.bf16.mxu0 %v3156
        %3625 = vmatpush1.bf16.msra.mxu0 %v3155
        %3626 = vmatprep.subr.bf16.mxu0 %v3163
        %3627 = vmatpush1.bf16.msra.mxu0 %v3162
        %3628 = vmatprep.subr.bf16.mxu0 %v3170
        %3629 = vmatpush1.bf16.msra.mxu0 %v3169
        %3630 = vmatprep.subr.bf16.mxu0 %v3177
        %3631 = vmatpush1.bf16.msra.mxu0 %v3176
        %3632 = vmatprep.subr.bf16.mxu0 %v3184
        %3633 = vmatpush1.bf16.msra.mxu0 %v3183
        %3634 = vmatprep.subr.bf16.mxu0 %v3191
        %3635 = vmatpush1.bf16.msra.mxu0 %v3190
        %3636 = vmatprep.subr.bf16.mxu0 %v3198
        %3637 = vmatpush1.bf16.msra.mxu0 %v3197
        %3638 = vmatprep.subr.bf16.mxu0 %v3205
        %3639 = vmatpush1.bf16.msra.mxu0 %v3204
        %3640 = vmatprep.subr.bf16.mxu0 %v3212
        %3641 = vmatpush1.bf16.msra.mxu0 %v3211
        %3642 = vmatprep.subr.bf16.mxu0 %v3219
        %3643 = vmatpush1.bf16.msra.mxu0 %v3218
        %3644 = vmatprep.subr.bf16.mxu0 %v3226
        %3645 = vmatpush1.bf16.msra.mxu0 %v3225
        %3646 = vmatprep.subr.bf16.mxu0 %v3233
        %3647 = vmatpush1.bf16.msra.mxu0 %v3232
        %3648 = vmatprep.subr.bf16.mxu0 %v3240
        %3649 = vmatpush1.bf16.msra.mxu0 %v3239
        %3650 = vmatprep.subr.bf16.mxu0 %v3247
        %3651 = vmatpush1.bf16.msra.mxu0 %v3246
        %3652 = vmatprep.subr.bf16.mxu0 %v3254
        %3653 = vmatpush1.bf16.msra.mxu0 %v3253
        %3654 = vmatprep.subr.bf16.mxu0 %v3261
        %3655 = vmatpush1.bf16.msra.mxu0 %v3260
        %3656 = vmatprep.mubr.bf16.mxu0 %v3542
        %3657 = vmatmul.mubr.bf16.gmra.mrb[0].mxu0 %v3541
        %v3658 = vpop.f32.mrb[0].mxu0
        %v3659 = vadd.f32 %v3606, %v3658
        %v3660 = vpop.f32.mrb[0].mxu0
        %v3661 = vadd.f32 %v3608, %v3660
        %v3662 = vpop.f32.mrb[0].mxu0
        %v3663 = vadd.f32 %v3610, %v3662
        %v3664 = vpop.f32.mrb[0].mxu0
        %v3665 = vadd.f32 %v3612, %v3664
        %3666 = vmatprep.mubr.bf16.mxu0 %v3550
        %3667 = vmatmul.mubr.bf16.gmra.mrb[0].mxu0 %v3549
        %v3668 = vpop.f32.mrb[0].mxu0
        %v3669 = vadd.f32 %v3616, %v3668
        %v3670 = vpop.f32.mrb[0].mxu0
        %v3671 = vadd.f32 %v3618, %v3670
        %v3672 = vpop.f32.mrb[0].mxu0
        %v3673 = vadd.f32 %v3620, %v3672
        %v3674 = vpop.f32.mrb[0].mxu0
        %v3675 = vadd.f32 %v3622, %v3674
        %3676 = vdwg.mxu0
        %3677 = vmatprep.subr.bf16.mxu0 %v3268
        %3678 = vmatpush1.bf16.msra.mxu0 %v3267
        %3679 = vmatprep.subr.bf16.mxu0 %v3275
        %3680 = vmatpush1.bf16.msra.mxu0 %v3274
        %3681 = vmatprep.subr.bf16.mxu0 %v3282
        %3682 = vmatpush1.bf16.msra.mxu0 %v3281
        %3683 = vmatprep.subr.bf16.mxu0 %v3289
        %3684 = vmatpush1.bf16.msra.mxu0 %v3288
        %3685 = vmatprep.subr.bf16.mxu0 %v3296
        %3686 = vmatpush1.bf16.msra.mxu0 %v3295
        %3687 = vmatprep.subr.bf16.mxu0 %v3303
        %3688 = vmatpush1.bf16.msra.mxu0 %v3302
        %3689 = vmatprep.subr.bf16.mxu0 %v3310
        %3690 = vmatpush1.bf16.msra.mxu0 %v3309
        %3691 = vmatprep.subr.bf16.mxu0 %v3317
        %3692 = vmatpush1.bf16.msra.mxu0 %v3316
        %3693 = vmatprep.subr.bf16.mxu0 %v3324
        %3694 = vmatpush1.bf16.msra.mxu0 %v3323
        %3695 = vmatprep.subr.bf16.mxu0 %v3331
        %3696 = vmatpush1.bf16.msra.mxu0 %v3330
        %3697 = vmatprep.subr.bf16.mxu0 %v3338
        %3698 = vmatpush1.bf16.msra.mxu0 %v3337
        %3699 = vmatprep.subr.bf16.mxu0 %v3345
        %3700 = vmatpush1.bf16.msra.mxu0 %v3344
        %3701 = vmatprep.subr.bf16.mxu0 %v3352
        %3702 = vmatpush1.bf16.msra.mxu0 %v3351
        %3703 = vmatprep.subr.bf16.mxu0 %v3359
        %3704 = vmatpush1.bf16.msra.mxu0 %v3358
        %3705 = vmatprep.subr.bf16.mxu0 %v3366
        %3706 = vmatpush1.bf16.msra.mxu0 %v3365
        %3707 = vmatprep.subr.bf16.mxu0 %v3373
        %3708 = vmatpush1.bf16.msra.mxu0 %v3372
        %3709 = vmatprep.mubr.bf16.mxu0 %v3544
        %3710 = vmatmul.mubr.bf16.gmra.mrb[0].mxu0 %v3543
        %v3711 = vpop.f32.mrb[0].mxu0
        %v3712 = vadd.f32 %v3659, %v3711
        %v3713 = vpop.f32.mrb[0].mxu0
        %v3714 = vadd.f32 %v3661, %v3713
        %v3715 = vpop.f32.mrb[0].mxu0
        %v3716 = vadd.f32 %v3663, %v3715
        %v3717 = vpop.f32.mrb[0].mxu0
        %v3718 = vadd.f32 %v3665, %v3717
        %3719 = vmatprep.mubr.bf16.mxu0 %v3552
        %3720 = vmatmul.mubr.bf16.gmra.mrb[0].mxu0 %v3551
        %v3721 = vpop.f32.mrb[0].mxu0
        %v3722 = vadd.f32 %v3669, %v3721
        %v3723 = vpop.f32.mrb[0].mxu0
        %v3724 = vadd.f32 %v3671, %v3723
        %v3725 = vpop.f32.mrb[0].mxu0
        %v3726 = vadd.f32 %v3673, %v3725
        %v3727 = vpop.f32.mrb[0].mxu0
        %v3728 = vadd.f32 %v3675, %v3727
        %3729 = vdwg.mxu0
        %3730 = vmatprep.subr.bf16.mxu0 %v3380
        %3731 = vmatpush1.bf16.msra.mxu0 %v3379
        %3732 = vmatprep.subr.bf16.mxu0 %v3387
        %3733 = vmatpush1.bf16.msra.mxu0 %v3386
        %3734 = vmatprep.subr.bf16.mxu0 %v3394
        %3735 = vmatpush1.bf16.msra.mxu0 %v3393
        %3736 = vmatprep.subr.bf16.mxu0 %v3401
        %3737 = vmatpush1.bf16.msra.mxu0 %v3400
        %3738 = vmatprep.subr.bf16.mxu0 %v3408
        %3739 = vmatpush1.bf16.msra.mxu0 %v3407
        %3740 = vmatprep.subr.bf16.mxu0 %v3415
        %3741 = vmatpush1.bf16.msra.mxu0 %v3414
        %3742 = vmatprep.subr.bf16.mxu0 %v3422
        %3743 = vmatpush1.bf16.msra.mxu0 %v3421
        %3744 = vmatprep.subr.bf16.mxu0 %v3429
        %3745 = vmatpush1.bf16.msra.mxu0 %v3428
        %3746 = vmatprep.subr.bf16.mxu0 %v3436
        %3747 = vmatpush1.bf16.msra.mxu0 %v3435
        %3748 = vmatprep.subr.bf16.mxu0 %v3443
        %3749 = vmatpush1.bf16.msra.mxu0 %v3442
        %3750 = vmatprep.subr.bf16.mxu0 %v3450
        %3751 = vmatpush1.bf16.msra.mxu0 %v3449
        %3752 = vmatprep.subr.bf16.mxu0 %v3457
        %3753 = vmatpush1.bf16.msra.mxu0 %v3456
        %3754 = vmatprep.subr.bf16.mxu0 %v3464
        %3755 = vmatpush1.bf16.msra.mxu0 %v3463
        %3756 = vmatprep.subr.bf16.mxu0 %v3471
        %3757 = vmatpush1.bf16.msra.mxu0 %v3470
        %3758 = vmatprep.subr.bf16.mxu0 %v3478
        %3759 = vmatpush1.bf16.msra.mxu0 %v3477
        %3760 = vmatprep.subr.bf16.mxu0 %v3485
        %3761 = vmatpush1.bf16.msra.mxu0 %v3484
        %3762 = vmatprep.mubr.bf16.mxu0 %v3546
        %3763 = vmatmul.mubr.bf16.gmra.mrb[0].mxu0 %v3545
        %v3764 = vpop.f32.mrb[0].mxu0
        %v3765 = vadd.f32 %v3712, %v3764
        %v3766 = vpop.f32.mrb[0].mxu0
        %v3767 = vadd.f32 %v3714, %v3766
        %v3768 = vpop.f32.mrb[0].mxu0
        %v3769 = vadd.f32 %v3716, %v3768
        %v3770 = vpop.f32.mrb[0].mxu0
        %v3771 = vadd.f32 %v3718, %v3770
        %3772 = vmatprep.mubr.bf16.mxu0 %v3554
        %3773 = vmatmul.mubr.bf16.gmra.mrb[0].mxu0 %v3553
        %v3774 = vpop.f32.mrb[0].mxu0
        %v3775 = vadd.f32 %v3722, %v3774
        %v3776 = vpop.f32.mrb[0].mxu0
        %v3777 = vadd.f32 %v3724, %v3776
        %v3778 = vpop.f32.mrb[0].mxu0
        %v3779 = vadd.f32 %v3726, %v3778
        %v3780 = vpop.f32.mrb[0].mxu0
        %v3781 = vadd.f32 %v3728, %v3780
        %3782 = vdwg.mxu0
        %3783 = vmatprep.subr.bf16.mxu0 %v3046
        %3784 = vmatpush1.bf16.msra.mxu0 %v3045
        %3785 = vmatprep.subr.bf16.mxu0 %v3053
        %3786 = vmatpush1.bf16.msra.mxu0 %v3052
        %3787 = vmatprep.subr.bf16.mxu0 %v3060
        %3788 = vmatpush1.bf16.msra.mxu0 %v3059
        %3789 = vmatprep.subr.bf16.mxu0 %v3067
        %3790 = vmatpush1.bf16.msra.mxu0 %v3066
        %3791 = vmatprep.subr.bf16.mxu0 %v3074
        %3792 = vmatpush1.bf16.msra.mxu0 %v3073
        %3793 = vmatprep.subr.bf16.mxu0 %v3081
        %3794 = vmatpush1.bf16.msra.mxu0 %v3080
        %3795 = vmatprep.subr.bf16.mxu0 %v3088
        %3796 = vmatpush1.bf16.msra.mxu0 %v3087
        %3797 = vmatprep.subr.bf16.mxu0 %v3095
        %3798 = vmatpush1.bf16.msra.mxu0 %v3094
        %3799 = vmatprep.subr.bf16.mxu0 %v3102
        %3800 = vmatpush1.bf16.msra.mxu0 %v3101
        %3801 = vmatprep.subr.bf16.mxu0 %v3109
        %3802 = vmatpush1.bf16.msra.mxu0 %v3108
        %3803 = vmatprep.subr.bf16.mxu0 %v3116
        %3804 = vmatpush1.bf16.msra.mxu0 %v3115
        %3805 = vmatprep.subr.bf16.mxu0 %v3123
        %3806 = vmatpush1.bf16.msra.mxu0 %v3122
        %3807 = vmatprep.subr.bf16.mxu0 %v3130
        %3808 = vmatpush1.bf16.msra.mxu0 %v3129
        %3809 = vmatprep.subr.bf16.mxu0 %v3137
        %3810 = vmatpush1.bf16.msra.mxu0 %v3136
        %3811 = vmatprep.subr.bf16.mxu0 %v3144
        %3812 = vmatpush1.bf16.msra.mxu0 %v3143
        %3813 = vmatprep.subr.bf16.mxu0 %v3151
        %3814 = vmatpush1.bf16.msra.mxu0 %v3150
        %3815 = vmatprep.mubr.bf16.mxu0 %v3540
        %3816 = vmatmul.mubr.bf16.gmra.mrb[0].mxu0 %v3539
        %v3817 = vpop.f32.mrb[0].mxu0
        %v3818 = vadd.f32 0.0, %v3817
        %v3819 = vpop.f32.mrb[0].mxu0
        %v3820 = vadd.f32 0.0, %v3819
        %v3821 = vpop.f32.mrb[0].mxu0
        %v3822 = vadd.f32 0.0, %v3821
        %v3823 = vpop.f32.mrb[0].mxu0
        %v3824 = vadd.f32 0.0, %v3823
        %3825 = vmatprep.mubr.bf16.mxu0 %v3548
        %3826 = vmatmul.mubr.bf16.gmra.mrb[0].mxu0 %v3547
        %v3827 = vpop.f32.mrb[0].mxu0
        %v3828 = vadd.f32 0.0, %v3827
        %v3829 = vpop.f32.mrb[0].mxu0
        %v3830 = vadd.f32 0.0, %v3829
        %v3831 = vpop.f32.mrb[0].mxu0
        %v3832 = vadd.f32 0.0, %v3831
        %v3833 = vpop.f32.mrb[0].mxu0
        %v3834 = vadd.f32 0.0, %v3833
        %3835 = vdwg.mxu0
        %3836 = vmatprep.subr.bf16.mxu0 %v3158
        %3837 = vmatpush1.bf16.msra.mxu0 %v3157
        %3838 = vmatprep.subr.bf16.mxu0 %v3165
        %3839 = vmatpush1.bf16.msra.mxu0 %v3164
        %3840 = vmatprep.subr.bf16.mxu0 %v3172
        %3841 = vmatpush1.bf16.msra.mxu0 %v3171
        %3842 = vmatprep.subr.bf16.mxu0 %v3179
        %3843 = vmatpush1.bf16.msra.mxu0 %v3178
        %3844 = vmatprep.subr.bf16.mxu0 %v3186
        %3845 = vmatpush1.bf16.msra.mxu0 %v3185
        %3846 = vmatprep.subr.bf16.mxu0 %v3193
        %3847 = vmatpush1.bf16.msra.mxu0 %v3192
        %3848 = vmatprep.subr.bf16.mxu0 %v3200
        %3849 = vmatpush1.bf16.msra.mxu0 %v3199
        %3850 = vmatprep.subr.bf16.mxu0 %v3207
        %3851 = vmatpush1.bf16.msra.mxu0 %v3206
        %3852 = vmatprep.subr.bf16.mxu0 %v3214
        %3853 = vmatpush1.bf16.msra.mxu0 %v3213
        %3854 = vmatprep.subr.bf16.mxu0 %v3221
        %3855 = vmatpush1.bf16.msra.mxu0 %v3220
        %3856 = vmatprep.subr.bf16.mxu0 %v3228
        %3857 = vmatpush1.bf16.msra.mxu0 %v3227
        %3858 = vmatprep.subr.bf16.mxu0 %v3235
        %3859 = vmatpush1.bf16.msra.mxu0 %v3234
        %3860 = vmatprep.subr.bf16.mxu0 %v3242
        %3861 = vmatpush1.bf16.msra.mxu0 %v3241
        %3862 = vmatprep.subr.bf16.mxu0 %v3249
        %3863 = vmatpush1.bf16.msra.mxu0 %v3248
        %3864 = vmatprep.subr.bf16.mxu0 %v3256
        %3865 = vmatpush1.bf16.msra.mxu0 %v3255
        %3866 = vmatprep.subr.bf16.mxu0 %v3263
        %3867 = vmatpush1.bf16.msra.mxu0 %v3262
        %3868 = vmatprep.mubr.bf16.mxu0 %v3542
        %3869 = vmatmul.mubr.bf16.gmra.mrb[0].mxu0 %v3541
        %v3870 = vpop.f32.mrb[0].mxu0
        %v3871 = vadd.f32 %v3818, %v3870
        %v3872 = vpop.f32.mrb[0].mxu0
        %v3873 = vadd.f32 %v3820, %v3872
        %v3874 = vpop.f32.mrb[0].mxu0
        %v3875 = vadd.f32 %v3822, %v3874
        %v3876 = vpop.f32.mrb[0].mxu0
        %v3877 = vadd.f32 %v3824, %v3876
        %3878 = vmatprep.mubr.bf16.mxu0 %v3550
        %3879 = vmatmul.mubr.bf16.gmra.mrb[0].mxu0 %v3549
        %v3880 = vpop.f32.mrb[0].mxu0
        %v3881 = vadd.f32 %v3828, %v3880
        %v3882 = vpop.f32.mrb[0].mxu0
        %v3883 = vadd.f32 %v3830, %v3882
        %v3884 = vpop.f32.mrb[0].mxu0
        %v3885 = vadd.f32 %v3832, %v3884
        %v3886 = vpop.f32.mrb[0].mxu0
        %v3887 = vadd.f32 %v3834, %v3886
        %3888 = vdwg.mxu0
        %3889 = vmatprep.subr.bf16.mxu0 %v3270
        %3890 = vmatpush1.bf16.msra.mxu0 %v3269
        %3891 = vmatprep.subr.bf16.mxu0 %v3277
        %3892 = vmatpush1.bf16.msra.mxu0 %v3276
        %3893 = vmatprep.subr.bf16.mxu0 %v3284
        %3894 = vmatpush1.bf16.msra.mxu0 %v3283
        %3895 = vmatprep.subr.bf16.mxu0 %v3291
        %3896 = vmatpush1.bf16.msra.mxu0 %v3290
        %3897 = vmatprep.subr.bf16.mxu0 %v3298
        %3898 = vmatpush1.bf16.msra.mxu0 %v3297
        %3899 = vmatprep.subr.bf16.mxu0 %v3305
        %3900 = vmatpush1.bf16.msra.mxu0 %v3304
        %3901 = vmatprep.subr.bf16.mxu0 %v3312
        %3902 = vmatpush1.bf16.msra.mxu0 %v3311
        %3903 = vmatprep.subr.bf16.mxu0 %v3319
        %3904 = vmatpush1.bf16.msra.mxu0 %v3318
        %3905 = vmatprep.subr.bf16.mxu0 %v3326
        %3906 = vmatpush1.bf16.msra.mxu0 %v3325
        %3907 = vmatprep.subr.bf16.mxu0 %v3333
        %3908 = vmatpush1.bf16.msra.mxu0 %v3332
        %3909 = vmatprep.subr.bf16.mxu0 %v3340
        %3910 = vmatpush1.bf16.msra.mxu0 %v3339
        %3911 = vmatprep.subr.bf16.mxu0 %v3347
        %3912 = vmatpush1.bf16.msra.mxu0 %v3346
        %3913 = vmatprep.subr.bf16.mxu0 %v3354
        %3914 = vmatpush1.bf16.msra.mxu0 %v3353
        %3915 = vmatprep.subr.bf16.mxu0 %v3361
        %3916 = vmatpush1.bf16.msra.mxu0 %v3360
        %3917 = vmatprep.subr.bf16.mxu0 %v3368
        %3918 = vmatpush1.bf16.msra.mxu0 %v3367
        %3919 = vmatprep.subr.bf16.mxu0 %v3375
        %3920 = vmatpush1.bf16.msra.mxu0 %v3374
        %3921 = vmatprep.mubr.bf16.mxu0 %v3544
        %3922 = vmatmul.mubr.bf16.gmra.mrb[0].mxu0 %v3543
        %v3923 = vpop.f32.mrb[0].mxu0
        %v3924 = vadd.f32 %v3871, %v3923
        %v3925 = vpop.f32.mrb[0].mxu0
        %v3926 = vadd.f32 %v3873, %v3925
        %v3927 = vpop.f32.mrb[0].mxu0
        %v3928 = vadd.f32 %v3875, %v3927
        %v3929 = vpop.f32.mrb[0].mxu0
        %v3930 = vadd.f32 %v3877, %v3929
        %3931 = vmatprep.mubr.bf16.mxu0 %v3552
        %3932 = vmatmul.mubr.bf16.gmra.mrb[0].mxu0 %v3551
        %v3933 = vpop.f32.mrb[0].mxu0
        %v3934 = vadd.f32 %v3881, %v3933
        %v3935 = vpop.f32.mrb[0].mxu0
        %v3936 = vadd.f32 %v3883, %v3935
        %v3937 = vpop.f32.mrb[0].mxu0
        %v3938 = vadd.f32 %v3885, %v3937
        %v3939 = vpop.f32.mrb[0].mxu0
        %v3940 = vadd.f32 %v3887, %v3939
        %3941 = vdwg.mxu0
        %3942 = vmatprep.subr.bf16.mxu0 %v3382
        %3943 = vmatpush1.bf16.msra.mxu0 %v3381
        %3944 = vmatprep.subr.bf16.mxu0 %v3389
        %3945 = vmatpush1.bf16.msra.mxu0 %v3388
        %3946 = vmatprep.subr.bf16.mxu0 %v3396
        %3947 = vmatpush1.bf16.msra.mxu0 %v3395
        %3948 = vmatprep.subr.bf16.mxu0 %v3403
        %3949 = vmatpush1.bf16.msra.mxu0 %v3402
        %3950 = vmatprep.subr.bf16.mxu0 %v3410
        %3951 = vmatpush1.bf16.msra.mxu0 %v3409
        %3952 = vmatprep.subr.bf16.mxu0 %v3417
        %3953 = vmatpush1.bf16.msra.mxu0 %v3416
        %3954 = vmatprep.subr.bf16.mxu0 %v3424
        %3955 = vmatpush1.bf16.msra.mxu0 %v3423
        %3956 = vmatprep.subr.bf16.mxu0 %v3431
        %3957 = vmatpush1.bf16.msra.mxu0 %v3430
        %3958 = vmatprep.subr.bf16.mxu0 %v3438
        %3959 = vmatpush1.bf16.msra.mxu0 %v3437
        %3960 = vmatprep.subr.bf16.mxu0 %v3445
        %3961 = vmatpush1.bf16.msra.mxu0 %v3444
        %3962 = vmatprep.subr.bf16.mxu0 %v3452
        %3963 = vmatpush1.bf16.msra.mxu0 %v3451
        %3964 = vmatprep.subr.bf16.mxu0 %v3459
        %3965 = vmatpush1.bf16.msra.mxu0 %v3458
        %3966 = vmatprep.subr.bf16.mxu0 %v3466
        %3967 = vmatpush1.bf16.msra.mxu0 %v3465
        %3968 = vmatprep.subr.bf16.mxu0 %v3473
        %3969 = vmatpush1.bf16.msra.mxu0 %v3472
        %3970 = vmatprep.subr.bf16.mxu0 %v3480
        %3971 = vmatpush1.bf16.msra.mxu0 %v3479
        %3972 = vmatprep.subr.bf16.mxu0 %v3487
        %3973 = vmatpush1.bf16.msra.mxu0 %v3486
        %3974 = vmatprep.mubr.bf16.mxu0 %v3546
        %3975 = vmatmul.mubr.bf16.gmra.mrb[0].mxu0 %v3545
        %v3976 = vpop.f32.mrb[0].mxu0
        %v3977 = vadd.f32 %v3924, %v3976
        %v3978 = vpop.f32.mrb[0].mxu0
        %v3979 = vadd.f32 %v3926, %v3978
        %v3980 = vpop.f32.mrb[0].mxu0
        %v3981 = vadd.f32 %v3928, %v3980
        %v3982 = vpop.f32.mrb[0].mxu0
        %v3983 = vadd.f32 %v3930, %v3982
        %3984 = vmatprep.mubr.bf16.mxu0 %v3554
        %3985 = vmatmul.mubr.bf16.gmra.mrb[0].mxu0 %v3553
        %v3986 = vpop.f32.mrb[0].mxu0
        %v3987 = vadd.f32 %v3934, %v3986
        %v3988 = vpop.f32.mrb[0].mxu0
        %v3989 = vadd.f32 %v3936, %v3988
        %v3990 = vpop.f32.mrb[0].mxu0
        %v3991 = vadd.f32 %v3938, %v3990
        %v3992 = vpop.f32.mrb[0].mxu0
        %v3993 = vadd.f32 %v3940, %v3992
        %3994 = vdwg.mxu0
        %3995 = vmatprep.subr.bf16.mxu0 %v3048
        %3996 = vmatpush1.bf16.msra.mxu0 %v3047
        %3997 = vmatprep.subr.bf16.mxu0 %v3055
        %3998 = vmatpush1.bf16.msra.mxu0 %v3054
        %3999 = vmatprep.subr.bf16.mxu0 %v3062
        %4000 = vmatpush1.bf16.msra.mxu0 %v3061
        %4001 = vmatprep.subr.bf16.mxu0 %v3069
        %4002 = vmatpush1.bf16.msra.mxu0 %v3068
        %4003 = vmatprep.subr.bf16.mxu0 %v3076
        %4004 = vmatpush1.bf16.msra.mxu0 %v3075
        %4005 = vmatprep.subr.bf16.mxu0 %v3083
        %4006 = vmatpush1.bf16.msra.mxu0 %v3082
        %4007 = vmatprep.subr.bf16.mxu0 %v3090
        %4008 = vmatpush1.bf16.msra.mxu0 %v3089
        %4009 = vmatprep.subr.bf16.mxu0 %v3097
        %4010 = vmatpush1.bf16.msra.mxu0 %v3096
        %4011 = vmatprep.subr.bf16.mxu0 %v3104
        %4012 = vmatpush1.bf16.msra.mxu0 %v3103
        %4013 = vmatprep.subr.bf16.mxu0 %v3111
        %4014 = vmatpush1.bf16.msra.mxu0 %v3110
        %4015 = vmatprep.subr.bf16.mxu0 %v3118
        %4016 = vmatpush1.bf16.msra.mxu0 %v3117
        %4017 = vmatprep.subr.bf16.mxu0 %v3125
        %4018 = vmatpush1.bf16.msra.mxu0 %v3124
        %4019 = vmatprep.subr.bf16.mxu0 %v3132
        %4020 = vmatpush1.bf16.msra.mxu0 %v3131
        %4021 = vmatprep.subr.bf16.mxu0 %v3139
        %4022 = vmatpush1.bf16.msra.mxu0 %v3138
        %4023 = vmatprep.subr.bf16.mxu0 %v3146
        %4024 = vmatpush1.bf16.msra.mxu0 %v3145
        %4025 = vmatprep.subr.bf16.mxu0 %v3153
        %4026 = vmatpush1.bf16.msra.mxu0 %v3152
        %4027 = vmatprep.mubr.bf16.mxu0 %v3540
        %4028 = vmatmul.mubr.bf16.gmra.mrb[0].mxu0 %v3539
        %v4029 = vpop.f32.mrb[0].mxu0
        %v4030 = vadd.f32 0.0, %v4029
        %v4031 = vpop.f32.mrb[0].mxu0
        %v4032 = vadd.f32 0.0, %v4031
        %v4033 = vpop.f32.mrb[0].mxu0
        %v4034 = vadd.f32 0.0, %v4033
        %v4035 = vpop.f32.mrb[0].mxu0
        %v4036 = vadd.f32 0.0, %v4035
        %4037 = vmatprep.mubr.bf16.mxu0 %v3548
        %4038 = vmatmul.mubr.bf16.gmra.mrb[0].mxu0 %v3547
        %v4039 = vpop.f32.mrb[0].mxu0
        %v4040 = vadd.f32 0.0, %v4039
        %v4041 = vpop.f32.mrb[0].mxu0
        %v4042 = vadd.f32 0.0, %v4041
        %v4043 = vpop.f32.mrb[0].mxu0
        %v4044 = vadd.f32 0.0, %v4043
        %v4045 = vpop.f32.mrb[0].mxu0
        %v4046 = vadd.f32 0.0, %v4045
        %4047 = vdwg.mxu0
        %4048 = vmatprep.subr.bf16.mxu0 %v3160
        %4049 = vmatpush1.bf16.msra.mxu0 %v3159
        %4050 = vmatprep.subr.bf16.mxu0 %v3167
        %4051 = vmatpush1.bf16.msra.mxu0 %v3166
        %4052 = vmatprep.subr.bf16.mxu0 %v3174
        %4053 = vmatpush1.bf16.msra.mxu0 %v3173
        %4054 = vmatprep.subr.bf16.mxu0 %v3181
        %4055 = vmatpush1.bf16.msra.mxu0 %v3180
        %4056 = vmatprep.subr.bf16.mxu0 %v3188
        %4057 = vmatpush1.bf16.msra.mxu0 %v3187
        %4058 = vmatprep.subr.bf16.mxu0 %v3195
        %4059 = vmatpush1.bf16.msra.mxu0 %v3194
        %4060 = vmatprep.subr.bf16.mxu0 %v3202
        %4061 = vmatpush1.bf16.msra.mxu0 %v3201
        %4062 = vmatprep.subr.bf16.mxu0 %v3209
        %4063 = vmatpush1.bf16.msra.mxu0 %v3208
        %4064 = vmatprep.subr.bf16.mxu0 %v3216
        %4065 = vmatpush1.bf16.msra.mxu0 %v3215
        %4066 = vmatprep.subr.bf16.mxu0 %v3223
        %4067 = vmatpush1.bf16.msra.mxu0 %v3222
        %4068 = vmatprep.subr.bf16.mxu0 %v3230
        %4069 = vmatpush1.bf16.msra.mxu0 %v3229
        %4070 = vmatprep.subr.bf16.mxu0 %v3237
        %4071 = vmatpush1.bf16.msra.mxu0 %v3236
        %4072 = vmatprep.subr.bf16.mxu0 %v3244
        %4073 = vmatpush1.bf16.msra.mxu0 %v3243
        %4074 = vmatprep.subr.bf16.mxu0 %v3251
        %4075 = vmatpush1.bf16.msra.mxu0 %v3250
        %4076 = vmatprep.subr.bf16.mxu0 %v3258
        %4077 = vmatpush1.bf16.msra.mxu0 %v3257
        %4078 = vmatprep.subr.bf16.mxu0 %v3265
        %4079 = vmatpush1.bf16.msra.mxu0 %v3264
        %4080 = vmatprep.mubr.bf16.mxu0 %v3542
        %4081 = vmatmul.mubr.bf16.gmra.mrb[0].mxu0 %v3541
        %v4082 = vpop.f32.mrb[0].mxu0
        %v4083 = vadd.f32 %v4030, %v4082
        %v4084 = vpop.f32.mrb[0].mxu0
        %v4085 = vadd.f32 %v4032, %v4084
        %v4086 = vpop.f32.mrb[0].mxu0
        %v4087 = vadd.f32 %v4034, %v4086
        %v4088 = vpop.f32.mrb[0].mxu0
        %v4089 = vadd.f32 %v4036, %v4088
        %4090 = vmatprep.mubr.bf16.mxu0 %v3550
        %4091 = vmatmul.mubr.bf16.gmra.mrb[0].mxu0 %v3549
        %v4092 = vpop.f32.mrb[0].mxu0
        %v4093 = vadd.f32 %v4040, %v4092
        %v4094 = vpop.f32.mrb[0].mxu0
        %v4095 = vadd.f32 %v4042, %v4094
        %v4096 = vpop.f32.mrb[0].mxu0
        %v4097 = vadd.f32 %v4044, %v4096
        %v4098 = vpop.f32.mrb[0].mxu0
        %v4099 = vadd.f32 %v4046, %v4098
        %4100 = vdwg.mxu0
        %4101 = vmatprep.subr.bf16.mxu0 %v3272
        %4102 = vmatpush1.bf16.msra.mxu0 %v3271
        %4103 = vmatprep.subr.bf16.mxu0 %v3279
        %4104 = vmatpush1.bf16.msra.mxu0 %v3278
        %4105 = vmatprep.subr.bf16.mxu0 %v3286
        %4106 = vmatpush1.bf16.msra.mxu0 %v3285
        %4107 = vmatprep.subr.bf16.mxu0 %v3293
        %4108 = vmatpush1.bf16.msra.mxu0 %v3292
        %4109 = vmatprep.subr.bf16.mxu0 %v3300
        %4110 = vmatpush1.bf16.msra.mxu0 %v3299
        %4111 = vmatprep.subr.bf16.mxu0 %v3307
        %4112 = vmatpush1.bf16.msra.mxu0 %v3306
        %4113 = vmatprep.subr.bf16.mxu0 %v3314
        %4114 = vmatpush1.bf16.msra.mxu0 %v3313
        %4115 = vmatprep.subr.bf16.mxu0 %v3321
        %4116 = vmatpush1.bf16.msra.mxu0 %v3320
        %4117 = vmatprep.subr.bf16.mxu0 %v3328
        %4118 = vmatpush1.bf16.msra.mxu0 %v3327
        %4119 = vmatprep.subr.bf16.mxu0 %v3335
        %4120 = vmatpush1.bf16.msra.mxu0 %v3334
        %4121 = vmatprep.subr.bf16.mxu0 %v3342
        %4122 = vmatpush1.bf16.msra.mxu0 %v3341
        %4123 = vmatprep.subr.bf16.mxu0 %v3349
        %4124 = vmatpush1.bf16.msra.mxu0 %v3348
        %4125 = vmatprep.subr.bf16.mxu0 %v3356
        %4126 = vmatpush1.bf16.msra.mxu0 %v3355
        %4127 = vmatprep.subr.bf16.mxu0 %v3363
        %4128 = vmatpush1.bf16.msra.mxu0 %v3362
        %4129 = vmatprep.subr.bf16.mxu0 %v3370
        %4130 = vmatpush1.bf16.msra.mxu0 %v3369
        %4131 = vmatprep.subr.bf16.mxu0 %v3377
        %4132 = vmatpush1.bf16.msra.mxu0 %v3376
        %4133 = vmatprep.mubr.bf16.mxu0 %v3544
        %4134 = vmatmul.mubr.bf16.gmra.mrb[0].mxu0 %v3543
        %v4135 = vpop.f32.mrb[0].mxu0
        %v4136 = vadd.f32 %v4083, %v4135
        %v4137 = vpop.f32.mrb[0].mxu0
        %v4138 = vadd.f32 %v4085, %v4137
        %v4139 = vpop.f32.mrb[0].mxu0
        %v4140 = vadd.f32 %v4087, %v4139
        %v4141 = vpop.f32.mrb[0].mxu0
        %v4142 = vadd.f32 %v4089, %v4141
        %4143 = vmatprep.mubr.bf16.mxu0 %v3552
        %4144 = vmatmul.mubr.bf16.gmra.mrb[0].mxu0 %v3551
        %v4145 = vpop.f32.mrb[0].mxu0
        %v4146 = vadd.f32 %v4093, %v4145
        %v4147 = vpop.f32.mrb[0].mxu0
        %v4148 = vadd.f32 %v4095, %v4147
        %v4149 = vpop.f32.mrb[0].mxu0
        %v4150 = vadd.f32 %v4097, %v4149
        %v4151 = vpop.f32.mrb[0].mxu0
        %v4152 = vadd.f32 %v4099, %v4151
        %4153 = vdwg.mxu0
        %4154 = vmatprep.subr.bf16.mxu0 %v3384
        %4155 = vmatpush1.bf16.msra.mxu0 %v3383
        %4156 = vmatprep.subr.bf16.mxu0 %v3391
        %4157 = vmatpush1.bf16.msra.mxu0 %v3390
        %4158 = vmatprep.subr.bf16.mxu0 %v3398
        %4159 = vmatpush1.bf16.msra.mxu0 %v3397
        %4160 = vmatprep.subr.bf16.mxu0 %v3405
        %4161 = vmatpush1.bf16.msra.mxu0 %v3404
        %4162 = vmatprep.subr.bf16.mxu0 %v3412
        %4163 = vmatpush1.bf16.msra.mxu0 %v3411
        %4164 = vmatprep.subr.bf16.mxu0 %v3419
        %4165 = vmatpush1.bf16.msra.mxu0 %v3418
        %4166 = vmatprep.subr.bf16.mxu0 %v3426
        %4167 = vmatpush1.bf16.msra.mxu0 %v3425
        %4168 = vmatprep.subr.bf16.mxu0 %v3433
        %4169 = vmatpush1.bf16.msra.mxu0 %v3432
        %4170 = vmatprep.subr.bf16.mxu0 %v3440
        %4171 = vmatpush1.bf16.msra.mxu0 %v3439
        %4172 = vmatprep.subr.bf16.mxu0 %v3447
        %4173 = vmatpush1.bf16.msra.mxu0 %v3446
        %4174 = vmatprep.subr.bf16.mxu0 %v3454
        %4175 = vmatpush1.bf16.msra.mxu0 %v3453
        %4176 = vmatprep.subr.bf16.mxu0 %v3461
        %4177 = vmatpush1.bf16.msra.mxu0 %v3460
        %4178 = vmatprep.subr.bf16.mxu0 %v3468
        %4179 = vmatpush1.bf16.msra.mxu0 %v3467
        %4180 = vmatprep.subr.bf16.mxu0 %v3475
        %4181 = vmatpush1.bf16.msra.mxu0 %v3474
        %4182 = vmatprep.subr.bf16.mxu0 %v3482
        %4183 = vmatpush1.bf16.msra.mxu0 %v3481
        %4184 = vmatprep.subr.bf16.mxu0 %v3489
        %4185 = vmatpush1.bf16.msra.mxu0 %v3488
        %4186 = vmatprep.mubr.bf16.mxu0 %v3546
        %4187 = vmatmul.mubr.bf16.gmra.mrb[0].mxu0 %v3545
        %v4188 = vpop.f32.mrb[0].mxu0
        %v4189 = vadd.f32 %v4136, %v4188
        %v4190 = vpop.f32.mrb[0].mxu0
        %v4191 = vadd.f32 %v4138, %v4190
        %v4192 = vpop.f32.mrb[0].mxu0
        %v4193 = vadd.f32 %v4140, %v4192
        %v4194 = vpop.f32.mrb[0].mxu0
        %v4195 = vadd.f32 %v4142, %v4194
        %4196 = vmatprep.mubr.bf16.mxu0 %v3554
        %4197 = vmatmul.mubr.bf16.gmra.mrb[0].mxu0 %v3553
        %v4198 = vpop.f32.mrb[0].mxu0
        %v4199 = vadd.f32 %v4146, %v4198
        %v4200 = vpop.f32.mrb[0].mxu0
        %v4201 = vadd.f32 %v4148, %v4200
        %v4202 = vpop.f32.mrb[0].mxu0
        %v4203 = vadd.f32 %v4150, %v4202
        %v4204 = vpop.f32.mrb[0].mxu0
        %v4205 = vadd.f32 %v4152, %v4204
        %4206 = vdwg.mxu0
        %4207 = vmatprep.subr.bf16.mxu0 0
        %4208 = vmatpush1.bf16.msra.mxu0 %v3049
        %4209 = vmatprep.subr.bf16.mxu0 0
        %4210 = vmatpush1.bf16.msra.mxu0 %v3056
        %4211 = vmatprep.subr.bf16.mxu0 0
        %4212 = vmatpush1.bf16.msra.mxu0 %v3063
        %4213 = vmatprep.subr.bf16.mxu0 0
        %4214 = vmatpush1.bf16.msra.mxu0 %v3070
        %4215 = vmatprep.subr.bf16.mxu0 0
        %4216 = vmatpush1.bf16.msra.mxu0 %v3077
        %4217 = vmatprep.subr.bf16.mxu0 0
        %4218 = vmatpush1.bf16.msra.mxu0 %v3084
        %4219 = vmatprep.subr.bf16.mxu0 0
        %4220 = vmatpush1.bf16.msra.mxu0 %v3091
        %4221 = vmatprep.subr.bf16.mxu0 0
        %4222 = vmatpush1.bf16.msra.mxu0 %v3098
        %4223 = vmatprep.subr.bf16.mxu0 0
        %4224 = vmatpush1.bf16.msra.mxu0 %v3105
        %4225 = vmatprep.subr.bf16.mxu0 0
        %4226 = vmatpush1.bf16.msra.mxu0 %v3112
        %4227 = vmatprep.subr.bf16.mxu0 0
        %4228 = vmatpush1.bf16.msra.mxu0 %v3119
        %4229 = vmatprep.subr.bf16.mxu0 0
        %4230 = vmatpush1.bf16.msra.mxu0 %v3126
        %4231 = vmatprep.subr.bf16.mxu0 0
        %4232 = vmatpush1.bf16.msra.mxu0 %v3133
        %4233 = vmatprep.subr.bf16.mxu0 0
        %4234 = vmatpush1.bf16.msra.mxu0 %v3140
        %4235 = vmatprep.subr.bf16.mxu0 0
        %4236 = vmatpush1.bf16.msra.mxu0 %v3147
        %4237 = vmatprep.subr.bf16.mxu0 0
        %4238 = vmatpush1.bf16.msra.mxu0 %v3154
        %4239 = vmatprep.mubr.bf16.mxu0 %v3540
        %4240 = vmatmul.mubr.bf16.gmra.mrb[0].mxu0 %v3539
        %v4241 = vpop.f32.mrb[0].mxu0
        %v4242 = vadd.f32 0.0, %v4241
        %v4243 = vpop.f32.mrb[0].mxu0
        %v4244 = vpop.f32.mrb[0].mxu0
        %v4245 = vadd.f32 0.0, %v4244
        %v4246 = vpop.f32.mrb[0].mxu0
        %4247 = vmatprep.mubr.bf16.mxu0 %v3548
        %4248 = vmatmul.mubr.bf16.gmra.mrb[0].mxu0 %v3547
        %v4249 = vpop.f32.mrb[0].mxu0
        %v4250 = vadd.f32 0.0, %v4249
        %v4251 = vpop.f32.mrb[0].mxu0
        %v4252 = vpop.f32.mrb[0].mxu0
        %v4253 = vadd.f32 0.0, %v4252
        %v4254 = vpop.f32.mrb[0].mxu0
        %4255 = vdwg.mxu0
        %4256 = vmatprep.subr.bf16.mxu0 0
        %4257 = vmatpush1.bf16.msra.mxu0 %v3161
        %4258 = vmatprep.subr.bf16.mxu0 0
        %4259 = vmatpush1.bf16.msra.mxu0 %v3168
        %4260 = vmatprep.subr.bf16.mxu0 0
        %4261 = vmatpush1.bf16.msra.mxu0 %v3175
        %4262 = vmatprep.subr.bf16.mxu0 0
        %4263 = vmatpush1.bf16.msra.mxu0 %v3182
        %4264 = vmatprep.subr.bf16.mxu0 0
        %4265 = vmatpush1.bf16.msra.mxu0 %v3189
        %4266 = vmatprep.subr.bf16.mxu0 0
        %4267 = vmatpush1.bf16.msra.mxu0 %v3196
        %4268 = vmatprep.subr.bf16.mxu0 0
        %4269 = vmatpush1.bf16.msra.mxu0 %v3203
        %4270 = vmatprep.subr.bf16.mxu0 0
        %4271 = vmatpush1.bf16.msra.mxu0 %v3210
        %4272 = vmatprep.subr.bf16.mxu0 0
        %4273 = vmatpush1.bf16.msra.mxu0 %v3217
        %4274 = vmatprep.subr.bf16.mxu0 0
        %4275 = vmatpush1.bf16.msra.mxu0 %v3224
        %4276 = vmatprep.subr.bf16.mxu0 0
        %4277 = vmatpush1.bf16.msra.mxu0 %v3231
        %4278 = vmatprep.subr.bf16.mxu0 0
        %4279 = vmatpush1.bf16.msra.mxu0 %v3238
        %4280 = vmatprep.subr.bf16.mxu0 0
        %4281 = vmatpush1.bf16.msra.mxu0 %v3245
        %4282 = vmatprep.subr.bf16.mxu0 0
        %4283 = vmatpush1.bf16.msra.mxu0 %v3252
        %4284 = vmatprep.subr.bf16.mxu0 0
        %4285 = vmatpush1.bf16.msra.mxu0 %v3259
        %4286 = vmatprep.subr.bf16.mxu0 0
        %4287 = vmatpush1.bf16.msra.mxu0 %v3266
        %4288 = vmatprep.mubr.bf16.mxu0 %v3542
        %4289 = vmatmul.mubr.bf16.gmra.mrb[0].mxu0 %v3541
        %v4290 = vpop.f32.mrb[0].mxu0
        %v4291 = vadd.f32 %v4242, %v4290
        %v4292 = vpop.f32.mrb[0].mxu0
        %v4293 = vpop.f32.mrb[0].mxu0
        %v4294 = vadd.f32 %v4245, %v4293
        %v4295 = vpop.f32.mrb[0].mxu0
        %4296 = vmatprep.mubr.bf16.mxu0 %v3550
        %4297 = vmatmul.mubr.bf16.gmra.mrb[0].mxu0 %v3549
        %v4298 = vpop.f32.mrb[0].mxu0
        %v4299 = vadd.f32 %v4250, %v4298
        %v4300 = vpop.f32.mrb[0].mxu0
        %v4301 = vpop.f32.mrb[0].mxu0
        %v4302 = vadd.f32 %v4253, %v4301
        %v4303 = vpop.f32.mrb[0].mxu0
        %4304 = vdwg.mxu0
        %4305 = vmatprep.subr.bf16.mxu0 0
        %4306 = vmatpush1.bf16.msra.mxu0 %v3273
        %4307 = vmatprep.subr.bf16.mxu0 0
        %4308 = vmatpush1.bf16.msra.mxu0 %v3280
        %4309 = vmatprep.subr.bf16.mxu0 0
        %4310 = vmatpush1.bf16.msra.mxu0 %v3287
        %4311 = vmatprep.subr.bf16.mxu0 0
        %4312 = vmatpush1.bf16.msra.mxu0 %v3294
        %4313 = vmatprep.subr.bf16.mxu0 0
        %4314 = vmatpush1.bf16.msra.mxu0 %v3301
        %4315 = vmatprep.subr.bf16.mxu0 0
        %4316 = vmatpush1.bf16.msra.mxu0 %v3308
        %4317 = vmatprep.subr.bf16.mxu0 0
        %4318 = vmatpush1.bf16.msra.mxu0 %v3315
        %4319 = vmatprep.subr.bf16.mxu0 0
        %4320 = vmatpush1.bf16.msra.mxu0 %v3322
        %4321 = vmatprep.subr.bf16.mxu0 0
        %4322 = vmatpush1.bf16.msra.mxu0 %v3329
        %4323 = vmatprep.subr.bf16.mxu0 0
        %4324 = vmatpush1.bf16.msra.mxu0 %v3336
        %4325 = vmatprep.subr.bf16.mxu0 0
        %4326 = vmatpush1.bf16.msra.mxu0 %v3343
        %4327 = vmatprep.subr.bf16.mxu0 0
        %4328 = vmatpush1.bf16.msra.mxu0 %v3350
        %4329 = vmatprep.subr.bf16.mxu0 0
        %4330 = vmatpush1.bf16.msra.mxu0 %v3357
        %4331 = vmatprep.subr.bf16.mxu0 0
        %4332 = vmatpush1.bf16.msra.mxu0 %v3364
        %4333 = vmatprep.subr.bf16.mxu0 0
        %4334 = vmatpush1.bf16.msra.mxu0 %v3371
        %4335 = vmatprep.subr.bf16.mxu0 0
        %4336 = vmatpush1.bf16.msra.mxu0 %v3378
        %4337 = vmatprep.mubr.bf16.mxu0 %v3544
        %4338 = vmatmul.mubr.bf16.gmra.mrb[0].mxu0 %v3543
        %v4339 = vpop.f32.mrb[0].mxu0
        %v4340 = vadd.f32 %v4291, %v4339
        %v4341 = vpop.f32.mrb[0].mxu0
        %v4342 = vpop.f32.mrb[0].mxu0
        %v4343 = vadd.f32 %v4294, %v4342
        %v4344 = vpop.f32.mrb[0].mxu0
        %4345 = vmatprep.mubr.bf16.mxu0 %v3552
        %4346 = vmatmul.mubr.bf16.gmra.mrb[0].mxu0 %v3551
        %v4347 = vpop.f32.mrb[0].mxu0
        %v4348 = vadd.f32 %v4299, %v4347
        %v4349 = vpop.f32.mrb[0].mxu0
        %v4350 = vpop.f32.mrb[0].mxu0
        %v4351 = vadd.f32 %v4302, %v4350
        %v4352 = vpop.f32.mrb[0].mxu0
        %4353 = vdwg.mxu0
        %4354 = vmatprep.subr.bf16.mxu0 0
        %4355 = vmatpush1.bf16.msra.mxu0 %v3385
        %4356 = vmatprep.subr.bf16.mxu0 0
        %4357 = vmatpush1.bf16.msra.mxu0 %v3392
        %4358 = vmatprep.subr.bf16.mxu0 0
        %4359 = vmatpush1.bf16.msra.mxu0 %v3399
        %4360 = vmatprep.subr.bf16.mxu0 0
        %4361 = vmatpush1.bf16.msra.mxu0 %v3406
        %4362 = vmatprep.subr.bf16.mxu0 0
        %4363 = vmatpush1.bf16.msra.mxu0 %v3413
        %4364 = vmatprep.subr.bf16.mxu0 0
        %4365 = vmatpush1.bf16.msra.mxu0 %v3420
        %4366 = vmatprep.subr.bf16.mxu0 0
        %4367 = vmatpush1.bf16.msra.mxu0 %v3427
        %4368 = vmatprep.subr.bf16.mxu0 0
        %4369 = vmatpush1.bf16.msra.mxu0 %v3434
        %4370 = vmatprep.subr.bf16.mxu0 0
        %4371 = vmatpush1.bf16.msra.mxu0 %v3441
        %4372 = vmatprep.subr.bf16.mxu0 0
        %4373 = vmatpush1.bf16.msra.mxu0 %v3448
        %4374 = vmatprep.subr.bf16.mxu0 0
        %4375 = vmatpush1.bf16.msra.mxu0 %v3455
        %4376 = vmatprep.subr.bf16.mxu0 0
        %4377 = vmatpush1.bf16.msra.mxu0 %v3462
        %4378 = vmatprep.subr.bf16.mxu0 0
        %4379 = vmatpush1.bf16.msra.mxu0 %v3469
        %4380 = vmatprep.subr.bf16.mxu0 0
        %4381 = vmatpush1.bf16.msra.mxu0 %v3476
        %4382 = vmatprep.subr.bf16.mxu0 0
        %4383 = vmatpush1.bf16.msra.mxu0 %v3483
        %4384 = vmatprep.subr.bf16.mxu0 0
        %4385 = vmatpush1.bf16.msra.mxu0 %v3490
        %4386 = vmatprep.mubr.bf16.mxu0 %v3546
        %4387 = vmatmul.mubr.bf16.gmra.mrb[0].mxu0 %v3545
        %v4388 = vpop.f32.mrb[0].mxu0
        %v4389 = vadd.f32 %v4340, %v4388
        %v4390 = vpop.f32.mrb[0].mxu0
        %v4391 = vpop.f32.mrb[0].mxu0
        %v4392 = vadd.f32 %v4343, %v4391
        %v4393 = vpop.f32.mrb[0].mxu0
        %4394 = vmatprep.mubr.bf16.mxu0 %v3554
        %4395 = vmatmul.mubr.bf16.gmra.mrb[0].mxu0 %v3553
        %v4396 = vpop.f32.mrb[0].mxu0
        %v4397 = vadd.f32 %v4348, %v4396
        %v4398 = vpop.f32.mrb[0].mxu0
        %v4399 = vpop.f32.mrb[0].mxu0
        %v4400 = vadd.f32 %v4351, %v4399
        %v4401 = vpop.f32.mrb[0].mxu0
        %4402 = vdwg.mxu0
        %v4403 = vmul.f32 %v3765, %v3767
        %v4404 = vmul.f32 %v3769, %v3771
        %v4405 = vmul.f32 %v3775, %v3777
        %v4406 = vmul.f32 %v3779, %v3781
        %v4407 = vadd.f32 %v4403, %v4404
        %v4408 = vadd.f32 %v4407, %v4405
        %v4409 = vadd.f32 %v4408, %v4406
        %v4410 = vrot.slane %v4409, 4
        %v4411 = vadd.f32 %v4409, %v4410
        %v4412 = vrot.slane %v4411, 2
        %v4413 = vadd.f32 %v4411, %v4412
        %v4414 = vrot.slane %v4413, 1
        %v4415 = vadd.f32 %v4413, %v4414
        %4416 = vst [vmem:[%s173] sm:$0x1] %v4415
        %v4417 = vmul.f32 %v3765, %v3977
        %v4418 = vmul.f32 %v3769, %v3981
        %v4419 = vmul.f32 %v3775, %v3987
        %v4420 = vmul.f32 %v3779, %v3991
        %v4421 = vadd.f32 %v4417, %v4418
        %v4422 = vadd.f32 %v4421, %v4419
        %v4423 = vadd.f32 %v4422, %v4420
        %v4424 = vrot.slane %v4423, 4
        %v4425 = vadd.f32 %v4423, %v4424
        %v4426 = vrot.slane %v4425, 2
        %v4427 = vadd.f32 %v4425, %v4426
        %v4428 = vrot.slane %v4427, 1
        %v4429 = vadd.f32 %v4427, %v4428
        %4430 = vst [vmem:[%s173 + $0x1] sm:$0x1] %v4429
        %v4431 = vmul.f32 %v3765, %v3979
        %v4432 = vmul.f32 %v3769, %v3983
        %v4433 = vmul.f32 %v3775, %v3989
        %v4434 = vmul.f32 %v3779, %v3993
        %v4435 = vadd.f32 %v4431, %v4432
        %v4436 = vadd.f32 %v4435, %v4433
        %v4437 = vadd.f32 %v4436, %v4434
        %v4438 = vrot.slane %v4437, 4
        %v4439 = vadd.f32 %v4437, %v4438
        %v4440 = vrot.slane %v4439, 2
        %v4441 = vadd.f32 %v4439, %v4440
        %v4442 = vrot.slane %v4441, 1
        %v4443 = vadd.f32 %v4441, %v4442
        %4444 = vst [vmem:[%s173 + $0x2] sm:$0x1] %v4443
        %v4445 = vmul.f32 %v3765, %v4189
        %v4446 = vmul.f32 %v3769, %v4193
        %v4447 = vmul.f32 %v3775, %v4199
        %v4448 = vmul.f32 %v3779, %v4203
        %v4449 = vadd.f32 %v4445, %v4446
        %v4450 = vadd.f32 %v4449, %v4447
        %v4451 = vadd.f32 %v4450, %v4448
        %v4452 = vrot.slane %v4451, 4
        %v4453 = vadd.f32 %v4451, %v4452
        %v4454 = vrot.slane %v4453, 2
        %v4455 = vadd.f32 %v4453, %v4454
        %v4456 = vrot.slane %v4455, 1
        %v4457 = vadd.f32 %v4455, %v4456
        %4458 = vst [vmem:[%s173 + $0x3] sm:$0x1] %v4457
        %v4459 = vmul.f32 %v3765, %v4191
        %v4460 = vmul.f32 %v3769, %v4195
        %v4461 = vmul.f32 %v3775, %v4201
        %v4462 = vmul.f32 %v3779, %v4205
        %v4463 = vadd.f32 %v4459, %v4460
        %v4464 = vadd.f32 %v4463, %v4461
        %v4465 = vadd.f32 %v4464, %v4462
        %v4466 = vrot.slane %v4465, 4
        %v4467 = vadd.f32 %v4465, %v4466
        %v4468 = vrot.slane %v4467, 2
        %v4469 = vadd.f32 %v4467, %v4468
        %v4470 = vrot.slane %v4469, 1
        %v4471 = vadd.f32 %v4469, %v4470
        %4472 = vst [vmem:[%s173 + $0x4] sm:$0x1] %v4471
        %v4473 = vmul.f32 %v3765, %v4389
        %v4474 = vmul.f32 %v3769, %v4392
        %v4475 = vmul.f32 %v3775, %v4397
        %v4476 = vmul.f32 %v3779, %v4400
        %v4477 = vadd.f32 %v4473, %v4474
        %v4478 = vadd.f32 %v4477, %v4475
        %v4479 = vadd.f32 %v4478, %v4476
        %v4480 = vrot.slane %v4479, 4
        %v4481 = vadd.f32 %v4479, %v4480
        %v4482 = vrot.slane %v4481, 2
        %v4483 = vadd.f32 %v4481, %v4482
        %v4484 = vrot.slane %v4483, 1
        %v4485 = vadd.f32 %v4483, %v4484
        %4486 = vst [vmem:[%s173 + $0x5] sm:$0x1] %v4485
        %s4487 = sand.u32 %s75, 1
        %s4488 = scalar_lea.sflag [#allocation4], %s4487
        %s4489 = sand.u32 %s75, 1
        %s4490 = smul.addr %s4489, 8
        %s4491 = scalar_lea.vmem [#allocation7], %s4490
        // Predicated region
        $region37: #{tpu_custom_call.1} parent=27 // pred_check
          %p4492 = pneg %p85
        $region38: #{tpu_custom_call.1} parent=27 // pred_check_branch
          %4494 = sbr.rel (%p4492) target = $region40
        $region39: #{tpu_custom_call.1} parent=27 // pred_region
          %s4496 = ssub.s32 128, 128
          %4497 = vsyncadd %s4488, %s4496
          %s4498 = smul.addr %s20, 128
          %s4499 = scalar_lea.hbm %s2, %s4498
          %s4501 = sshll.u32 %s4491, 4
          %s4502 = int_to_ptr.vmem [resolvable:$true] %s4501
          %4504 = dma.vmem_to_hbm [thread:$0]  %s4502, 128, %s4499, %s4488
        $region40: #{tpu_custom_call.1} parent=27 // pred_fallthru
          _
      $region28: #{tpu_custom_call.1} parent=5 // pred_fallthru
        _
      %p4505 = scmp.le.s32.totalorder 2, %s15
      // Predicated region
      $region41: #{tpu_custom_call.1} parent=5 // pred_check
        %p4506 = pneg %p4505
      $region42: #{tpu_custom_call.1} parent=5 // pred_check_branch
        %4508 = sbr.rel (%p4506) target = $region44
      $region43: #{tpu_custom_call.1} parent=5 // pred_region
        %s4509 = ssub.s32 %s15, 2
        // Predicated region
        $region45: #{tpu_custom_call.1} parent=43 // pred_check
          %p4510 = pneg %p91
        $region46: #{tpu_custom_call.1} parent=43 // pred_check_branch
          %4512 = sbr.rel (%p4510) target = $region48
        $region47: #{tpu_custom_call.1} parent=43 // pred_region
          %s4513 = sand.u32 %s76, 1
          %s4514 = scalar_lea.sflag [#allocation4], %s4513
          %s4515 = sand.u32 %s76, 1
          %s4516 = smul.addr %s4515, 8
          %s4517 = scalar_lea.vmem [#allocation7], %s4516
          %4518 = dma.done %s4514, 128
        $region48: #{tpu_custom_call.1} parent=43 // pred_fallthru
          _
      $region44: #{tpu_custom_call.1} parent=5 // pred_fallthru
        _
    $region6: #{tpu_custom_call.1} parent=1 // loop_footer
      %s19 = sadd.s32 1, %s15
    $region7: #{tpu_custom_call.1} parent=1 // loop_footer_branch
      %14 = sbr.rel target = $region3
    $region8: #{tpu_custom_call.1} parent=1 // loop_exit
      _
    %4519 = vsyncpa [#allocation3], 1
    %s4520 = scalar_lea.sflag [#allocation3], 1
    %4521 = vsyncpa %s4520, 1
    %4522 = vsyncpa [#allocation6], 1
    %4523 = vsyncpa [#allocation4], 1
    %s4524 = scalar_lea.sflag [#allocation4], 1
    %4525 = vsyncpa %s4524, 1

</llo_original>
